<compile_context>
chip_gen: v7x
topology: tpu7x:2x2x1
jax: 0.10.0
libtpu: 0.0.40
codegen_flags: <defaults>
</compile_context>

<pallas_src>
import functools

import jax
import jax.numpy as jnp
from jax.experimental import pallas as pl
from jax.experimental.pallas import tpu as pltpu


# ----------------------------------------------------------------------------
# Helpers
# ----------------------------------------------------------------------------
def _round_up(x, m):
    return (x + m - 1) // m * m


def _pad2d(a, rows, cols):
    return jnp.pad(a, ((0, rows - a.shape[0]), (0, cols - a.shape[1])))


def _pad_bias(b, cols):
    return jnp.pad(b, (0, cols - b.shape[0])).reshape(1, cols)


def _fixed2(n, s):  # grid-invariant operand index map for the main (N, n_tiles) grid
    return (0, 0)


def _vmem_budget():
    """(data budget for tile sizing, explicit scoped-VMEM limit), generation aware."""
    try:
        cap = int(pltpu.get_tpu_info().vmem_capacity_bytes)
    except Exception:
        cap = 64 * 1024 * 1024
    if cap >= 96 * 1024 * 1024:                      # v5e / v6e: 128 MiB physical VMEM
        return 40 * 1024 * 1024, 64 * 1024 * 1024
    return 20 * 1024 * 1024, 36 * 1024 * 1024        # v7x: 64 MiB physical VMEM


def _choose_spatial_tile(hw, per_row_bytes, fixed_bytes, budget, max_tile=2048):
    """Rows per grid step. 256-aligned (clean MXU M cadence on v6e/v7x); sized so that
    double-buffered tiles + intermediates + single-buffered weights fit the budget."""
    align = 256 if hw >= 256 else 8
    tile = min(_round_up(max_tile, align), _round_up(hw, align))
    while tile > align and fixed_bytes + tile * per_row_bytes > budget:
        tile = max(align, _round_up(tile // 2, align))
    return tile


# ----------------------------------------------------------------------------
# Kernel 1: stem (1x1 conv + ReLU) + remap_local (1x1 conv) + pooled-sum accumulation
# ----------------------------------------------------------------------------
def _backbone_local_kernel(x_ref, stem_w_ref, stem_b_ref, rl_w_ref, rl_b_ref,
                           l_ref, pooled_ref,
                           *, hw_valid, tile_s, cin, vpu_stem, needs_mask, matmul_dtype):
    s = pl.program_id(1)

    x = x_ref[0]                                               # (tile_s, Cin)

    # ---- synthetic backbone stem ---------------------------------------------
    if vpu_stem:
        # Tiny Cin: unrolled VPU outer-product sum (avoids a K=cin MXU pass + x cast).
        h = x[:, 0:1].astype(jnp.float32) * stem_w_ref[pl.ds(0, 1), :]
        for c in range(1, cin):
            h = h + x[:, c:c + 1].astype(jnp.float32) * stem_w_ref[pl.ds(c, 1), :]
    else:
        # x and stem_w are pre-cast to matmul_dtype in the wrapper (no per-step casts).
        h = jnp.dot(x, stem_w_ref[...], preferred_element_type=jnp.float32)
    h = jnp.maximum(h + stem_b_ref[...], 0.0)                  # (tile_s, cb_p) f32

    # ---- remap_local: 1x1 conv, lane-dense (128-multiple) store ---------------
    l = jnp.dot(h.astype(matmul_dtype), rl_w_ref[...],
                preferred_element_type=jnp.float32) + rl_b_ref[...]
    l_ref[0] = l.astype(l_ref.dtype)

    # ---- pooled-feature accumulation (output block revisited across s) --------
    @pl.when(s == 0)
    def _():
        pooled_ref[...] = jnp.zeros_like(pooled_ref)

    if needs_mask:
        last = pl.num_programs(1) - 1

        @pl.when(s != last)
        def _():
            pooled_ref[0] += jnp.sum(h, axis=0, keepdims=True)

        @pl.when(s == last)
        def _():
            valid = hw_valid - s * tile_s                      # real pixels in last tile
            row_ids = jax.lax.broadcasted_iota(jnp.int32, (tile_s, 1), 0)
            pooled_ref[0] += jnp.sum(jnp.where(row_ids < valid, h, 0.0),
                                     axis=0, keepdims=True)
    else:
        pooled_ref[0] += jnp.sum(h, axis=0, keepdims=True)


# ----------------------------------------------------------------------------
# Kernel 2: batched global head (mean pool -> remap -> L2 normalize -> classifier)
# ----------------------------------------------------------------------------
def _global_head_kernel(pooled_ref, remap_w_ref, remap_b_ref, cls_w_ref, cls_b_ref,
                        g_ref, logits_ref, *, inv_hw, normalize, matmul_dtype):
    g_b = pooled_ref[...] * inv_hw                             # (N, cb_p) mean pool, f32
    g = jnp.dot(g_b.astype(matmul_dtype), remap_w_ref[...],
                preferred_element_type=jnp.float32) + remap_b_ref[...]
    if normalize:
        # == g / max(||g||, 1e-12) via rsqrt (EUP slot) instead of sqrt + divide.
        ss = jnp.sum(g * g, axis=-1, keepdims=True)
        g = g * jax.lax.rsqrt(jnp.maximum(ss, 1e-24))
    g_ref[...] = g.astype(g_ref.dtype)
    # dropout(p=0), detach, norm_layer=Identity, normalize_weight=False are no-ops.
    logits = jnp.dot(g.astype(matmul_dtype), cls_w_ref[...],
                     preferred_element_type=jnp.float32) + cls_b_ref[...]
    logits_ref[...] = logits.astype(logits_ref.dtype)


# ----------------------------------------------------------------------------
# BaseModel parameters + forward wrapper
# ----------------------------------------------------------------------------
def init_base_model_params(key, *, in_channels, backbone_features,
                           num_global_features, num_local_features, num_classes):
    k_stem, k_remap, k_local = jax.random.split(key, 3)
    return {
        # synthetic backbone stem (stand-in for the abstract feature_extractor)
        "stem_w": 0.1 * jax.random.normal(
            k_stem, (in_channels, backbone_features), jnp.float32),
        "stem_b": jnp.zeros((backbone_features,), jnp.float32),
        # self.remap = nn.Linear(backbone_features, num_global_features); bias zero-init
        "remap_w": 0.1 * jax.random.normal(
            k_remap, (backbone_features, num_global_features), jnp.float32),
        "remap_b": jnp.zeros((num_global_features,), jnp.float32),
        # self.remap_local = nn.Conv2d(backbone_features, num_local_features, 1); bias zero-init
        "remap_local_w": 0.1 * jax.random.normal(
            k_local, (backbone_features, num_local_features), jnp.float32),
        "remap_local_b": jnp.zeros((num_local_features,), jnp.float32),
        # self.classifier = nn.Linear(num_global_features, num_classes); weight & bias zero-init
        "classifier_w_t": jnp.zeros((num_global_features, num_classes), jnp.float32),
        "classifier_b": jnp.zeros((num_classes,), jnp.float32),
    }


def base_model_forward(images, params, *, normalize=True, matmul_dtype=jnp.bfloat16,
                       spatial_tile=None, local_dtype=None, local_layout="NCHW"):
    """Returns (logits, g, l) matching BaseModel.forward (pairwise_matching=False).

    images: (N, Cin, H, W), as in PyTorch.
    local_dtype:  dtype of the local feature map output (default images.dtype; pass
                  jnp.bfloat16 to halve the dominant HBM writeback if downstream tolerates).
    local_layout: "NCHW" (PyTorch semantics, costs one extra HBM round trip of l) or
                  "NHWC" (channels-last, skips the post-kernel transpose).
    """
    N, Cin, H, W = images.shape
    HW = H * W
    Cb = params["stem_w"].shape[1]
    Cl = params["remap_local_w"].shape[1]
    G = params["remap_w"].shape[1]
    C = params["classifier_w_t"].shape[1]

    lane = 128
    # cb_p is the K (contraction) dim of the h->l and pooled->g matmuls: align to 256
    # for the 256-deep v6e/v7x MXUs once it exceeds 128 (K padding costs no HBM output).
    cb_p = _round_up(Cb, 256 if Cb > 128 else 128)
    cl_p = _round_up(Cl, lane)
    g_p = _round_up(G, lane)
    c_p = _round_up(C, lane)

    vpu_stem = Cin <= 8
    x_dtype = images.dtype if vpu_stem else matmul_dtype
    l_dtype = local_dtype or images.dtype
    x_itemsize = jnp.dtype(x_dtype).itemsize
    l_itemsize = jnp.dtype(l_dtype).itemsize
    w_itemsize = jnp.dtype(matmul_dtype).itemsize

    # Honest VMEM model: double-buffered x / l tiles (x lane-pads Cin -> 128 in VMEM),
    # f32 h plus its matmul_dtype copy, single-buffered weights/biases, pooled block.
    per_row = (2 * _round_up(Cin, lane) * x_itemsize
               + 2 * cl_p * l_itemsize
               + cb_p * (4 + w_itemsize))
    fixed_bytes = (_round_up(Cin, 8) * cb_p * (4 if vpu_stem else w_itemsize)
                   + cb_p * cl_p * w_itemsize
                   + (cb_p + cl_p) * 4
                   + 4 * cb_p * 4)
    data_budget, vmem_limit = _vmem_budget()
    tile_s = spatial_tile or _choose_spatial_tile(HW, per_row, fixed_bytes, data_budget)
    n_tiles = pl.cdiv(HW, tile_s)
    hw_pad = n_tiles * tile_s
    needs_mask = hw_pad != HW

    # Single NCHW -> channels-last transpose at the model boundary; flatten spatial.
    x = jnp.transpose(images, (0, 2, 3, 1)).reshape(N, HW, Cin).astype(x_dtype)
    if needs_mask:
        x = jnp.pad(x, ((0, 0), (0, hw_pad - HW), (0, 0)))

    # Pre-cast weights once (no per-iteration f32->bf16 casts inside the kernel).
    stem_w = _pad2d(params["stem_w"], Cin, cb_p)
    if not vpu_stem:
        stem_w = stem_w.astype(matmul_dtype)
    stem_b = _pad_bias(params["stem_b"], cb_p)
    rl_w = _pad2d(params["remap_local_w"], cb_p, cl_p).astype(matmul_dtype)
    rl_b = _pad_bias(params["remap_local_b"], cl_p)
    remap_w = _pad2d(params["remap_w"], cb_p, g_p).astype(matmul_dtype)
    remap_b = _pad_bias(params["remap_b"], g_p)
    cls_w_t = _pad2d(params["classifier_w_t"], g_p, c_p).astype(matmul_dtype)
    cls_b = _pad_bias(params["classifier_b"], c_p)

    main_kernel = functools.partial(
        _backbone_local_kernel, hw_valid=HW, tile_s=tile_s, cin=Cin,
        vpu_stem=vpu_stem, needs_mask=needs_mask, matmul_dtype=matmul_dtype)

    flops_main = 2 * N * hw_pad * (Cin * cb_p + cb_p * cl_p)
    bytes_main = (N * hw_pad * Cin * x_itemsize + N * hw_pad * cl_p * l_itemsize
                  + N * cb_p * 4 + Cin * cb_p * (4 if vpu_stem else w_itemsize)
                  + cb_p * cl_p * w_itemsize + (cb_p + cl_p) * 4)

    def _run_main(single_buffer_weights):
        def inv_spec(shape):
            if single_buffer_weights:
                return pl.BlockSpec(shape, _fixed2, pipeline_mode=pl.Buffered(1))
            return pl.BlockSpec(shape, _fixed2)

        return pl.pallas_call(
            main_kernel,
            out_shape=(jax.ShapeDtypeStruct((N, hw_pad, cl_p), l_dtype),   # l (padded)
                       jax.ShapeDtypeStruct((N, 1, cb_p), jnp.float32)),   # pooled sums
            grid=(N, n_tiles),
            in_specs=[
                pl.BlockSpec((1, tile_s, Cin), lambda n, s: (n, s, 0)),    # x tile
                inv_spec((Cin, cb_p)),                                     # stem_w
                inv_spec((1, cb_p)),                                       # stem_b
                inv_spec((cb_p, cl_p)),                                    # remap_local_w
                inv_spec((1, cl_p)),                                       # remap_local_b
            ],
            out_specs=(
                pl.BlockSpec((1, tile_s, cl_p), lambda n, s: (n, s, 0)),
                pl.BlockSpec((1, 1, cb_p), lambda n, s: (n, 0, 0)),
            ),
            compiler_params=pltpu.CompilerParams(
                dimension_semantics=("parallel", "arbitrary"),
                vmem_limit_bytes=vmem_limit),
            cost_estimate=pl.CostEstimate(
                flops=flops_main, transcendentals=0, bytes_accessed=bytes_main),
        )(x, stem_w, stem_b, rl_w, rl_b)

    try:
        l_pad, pooled = _run_main(True)
    except Exception:
        # Fallback if this JAX build rejects single-buffered pipeline_mode.
        l_pad, pooled = _run_main(False)

    # ---- tiny batched head kernel --------------------------------------------
    pooled2d = pooled.reshape(N, cb_p)
    head_kernel = functools.partial(
        _global_head_kernel, inv_hw=1.0 / HW, normalize=normalize,
        matmul_dtype=matmul_dtype)
    g_out, logits_out = pl.pallas_call(
        head_kernel,
        out_shape=(jax.ShapeDtypeStruct((N, g_p), images.dtype),
                   jax.ShapeDtypeStruct((N, c_p), images.dtype)),
        grid=(1,),
        in_specs=[
            pl.BlockSpec((N, cb_p), lambda i: (0, 0)),
            pl.BlockSpec((cb_p, g_p), lambda i: (0, 0)),
            pl.BlockSpec((1, g_p), lambda i: (0, 0)),
            pl.BlockSpec((g_p, c_p), lambda i: (0, 0)),
            pl.BlockSpec((1, c_p), lambda i: (0, 0)),
        ],
        out_specs=(pl.BlockSpec((N, g_p), lambda i: (0, 0)),
                   pl.BlockSpec((N, c_p), lambda i: (0, 0))),
        compiler_params=pltpu.CompilerParams(dimension_semantics=("arbitrary",)),
        cost_estimate=pl.CostEstimate(
            flops=2 * N * (cb_p * g_p + g_p * c_p), transcendentals=N,
            bytes_accessed=(N * (cb_p + g_p + c_p) * 4
                            + (cb_p * g_p + g_p * c_p) * w_itemsize
                            + (g_p + c_p) * 4)),
    )(pooled2d, remap_w, remap_b, cls_w_t, cls_b)

    g = g_out[:, :G]
    logits = logits_out[:, :C]

    l = l_pad[:, :HW, :Cl].reshape(N, H, W, Cl)
    if local_layout == "NCHW":
        # PyTorch Conv2d layout; note this transpose is a full extra HBM round trip of
        # the largest tensor -- pass local_layout="NHWC" to skip it.
        l = l.transpose(0, 3, 1, 2)
    return logits, g, l


# ----------------------------------------------------------------------------
# Pure-JAX reference (f32) for tolerance checking
# ----------------------------------------------------------------------------
def _reference_forward(images, params, normalize=True):
    N, Cin, H, W = images.shape
    x = jnp.transpose(images, (0, 2, 3, 1)).reshape(N, H * W, Cin)
    h = jax.nn.relu(x @ params["stem_w"] + params["stem_b"])
    l = h @ params["remap_local_w"] + params["remap_local_b"]
    l = l.reshape(N, H, W, -1).transpose(0, 3, 1, 2)
    g = h.mean(axis=1) @ params["remap_w"] + params["remap_b"]
    if normalize:
        g = g / jnp.maximum(jnp.linalg.norm(g, axis=-1, keepdims=True), 1e-12)
    logits = g @ params["classifier_w_t"] + params["classifier_b"]
    return logits, g, l


if __name__ == "__main__":
    # Small shapes consistent with the module.
    N, Cin, H, W = 2, 4, 16, 16
    backbone_features = 32
    num_global_features = 48
    num_local_features = 24
    num_classes = 10

    key = jax.random.PRNGKey(0)
    k_img, k_params = jax.random.split(key)
    images = jax.random.normal(k_img, (N, Cin, H, W), jnp.float32)

    params = init_base_model_params(
        k_params,
        in_channels=Cin,
        backbone_features=backbone_features,
        num_global_features=num_global_features,
        num_local_features=num_local_features,
        num_classes=num_classes,
    )

    logits, g, l = base_model_forward(images, params, normalize=True)
    jax.block_until_ready((logits, g, l))

    # shape / semantics checks
    assert logits.shape == (N, num_classes)
    assert g.shape == (N, num_global_features)
    assert l.shape == (N, num_local_features, H, W)
    # classifier weight & bias are zero-initialized in __init__ -> logits are exactly zero
    assert bool(jnp.all(logits == 0.0))
    # normalize=True -> g rows are unit L2 norm
    assert bool(jnp.allclose(jnp.linalg.norm(g, axis=-1), 1.0, atol=1e-3))
    # tolerance check vs f32 reference (bf16 matmul operands, f32 accumulation)
    ref_logits, ref_g, ref_l = _reference_forward(images, params, normalize=True)
    assert bool(jnp.allclose(g, ref_g, atol=3e-2, rtol=3e-2))
    assert bool(jnp.allclose(l, ref_l, atol=3e-2, rtol=3e-2))

    print("KERNEL_OK")
</pallas_src>

<mosaic_0001>
module attributes {stable_mosaic.version = 11 : i64} {
  func.func @_backbone_local_kernel(%arg0: i32, %arg1: i32, %arg2: memref<1x256x4xf32, #tpu.memory_space<vmem>>, %arg3: memref<4x128xf32, #tpu.memory_space<vmem>>, %arg4: memref<1x128xf32, #tpu.memory_space<vmem>>, %arg5: memref<128x128xbf16, #tpu.memory_space<vmem>>, %arg6: memref<1x128xf32, #tpu.memory_space<vmem>>, %arg7: memref<1x256x128xf32, #tpu.memory_space<vmem>>, %arg8: memref<1x1x128xf32, #tpu.memory_space<vmem>>) attributes {dimension_semantics = [#tpu.dimension_semantics<parallel>, #tpu.dimension_semantics<arbitrary>], iteration_bounds = array<i64: 2, 1>, scalar_prefetch = 0 : i64, scratch_operands = 0 : i64, tpu.core_type = #tpu.core_type<tc>, window_params = [{transform_indices = @transform_0, window_bounds = array<i64: 1, 256, 4>}, {pipeline_mode = #tpu.pipeline_mode<synchronous>, transform_indices = @transform_1, window_bounds = array<i64: 4, 128>}, {pipeline_mode = #tpu.pipeline_mode<synchronous>, transform_indices = @transform_2, window_bounds = array<i64: 1, 128>}, {pipeline_mode = #tpu.pipeline_mode<synchronous>, transform_indices = @transform_3, window_bounds = array<i64: 128, 128>}, {pipeline_mode = #tpu.pipeline_mode<synchronous>, transform_indices = @transform_4, window_bounds = array<i64: 1, 128>}, {transform_indices = @transform_5, window_bounds = array<i64: 1, 256, 128>}, {transform_indices = @transform_6, window_bounds = array<i64: 1, 1, 128>}]} {
    %c0 = arith.constant 0 : index
    %c0_0 = arith.constant 0 : index
    %c0_1 = arith.constant 0 : index
    %0 = vector.load %arg2[%c0, %c0_0, %c0_1] : memref<1x256x4xf32, #tpu.memory_space<vmem>>, vector<1x256x4xf32>
    %1 = vector.shape_cast %0 : vector<1x256x4xf32> to vector<256x4xf32>
    %2 = vector.extract_strided_slice %1 {offsets = [0, 0], sizes = [256, 1], strides = [1, 1]} : vector<256x4xf32> to vector<256x1xf32>
    %c0_2 = arith.constant 0 : index
    %c0_3 = arith.constant 0 : index
    %3 = vector.load %arg3[%c0_2, %c0_3] : memref<4x128xf32, #tpu.memory_space<vmem>>, vector<1x128xf32>
    %4 = vector.broadcast %2 : vector<256x1xf32> to vector<256x128xf32>
    %5 = vector.broadcast %3 : vector<1x128xf32> to vector<256x128xf32>
    %6 = arith.mulf %4, %5 : vector<256x128xf32>
    %7 = vector.extract_strided_slice %1 {offsets = [0, 1], sizes = [256, 1], strides = [1, 1]} : vector<256x4xf32> to vector<256x1xf32>
    %c1 = arith.constant 1 : index
    %c0_4 = arith.constant 0 : index
    %8 = vector.load %arg3[%c1, %c0_4] : memref<4x128xf32, #tpu.memory_space<vmem>>, vector<1x128xf32>
    %9 = vector.broadcast %7 : vector<256x1xf32> to vector<256x128xf32>
    %10 = vector.broadcast %8 : vector<1x128xf32> to vector<256x128xf32>
    %11 = arith.mulf %9, %10 : vector<256x128xf32>
    %12 = arith.addf %6, %11 : vector<256x128xf32>
    %13 = vector.extract_strided_slice %1 {offsets = [0, 2], sizes = [256, 1], strides = [1, 1]} : vector<256x4xf32> to vector<256x1xf32>
    %c2 = arith.constant 2 : index
    %c0_5 = arith.constant 0 : index
    %14 = vector.load %arg3[%c2, %c0_5] : memref<4x128xf32, #tpu.memory_space<vmem>>, vector<1x128xf32>
    %15 = vector.broadcast %13 : vector<256x1xf32> to vector<256x128xf32>
    %16 = vector.broadcast %14 : vector<1x128xf32> to vector<256x128xf32>
    %17 = arith.mulf %15, %16 : vector<256x128xf32>
    %18 = arith.addf %12, %17 : vector<256x128xf32>
    %19 = vector.extract_strided_slice %1 {offsets = [0, 3], sizes = [256, 1], strides = [1, 1]} : vector<256x4xf32> to vector<256x1xf32>
    %c3 = arith.constant 3 : index
    %c0_6 = arith.constant 0 : index
    %20 = vector.load %arg3[%c3, %c0_6] : memref<4x128xf32, #tpu.memory_space<vmem>>, vector<1x128xf32>
    %21 = vector.broadcast %19 : vector<256x1xf32> to vector<256x128xf32>
    %22 = vector.broadcast %20 : vector<1x128xf32> to vector<256x128xf32>
    %23 = arith.mulf %21, %22 : vector<256x128xf32>
    %24 = arith.addf %18, %23 : vector<256x128xf32>
    %c0_7 = arith.constant 0 : index
    %c0_8 = arith.constant 0 : index
    %25 = vector.load %arg4[%c0_7, %c0_8] : memref<1x128xf32, #tpu.memory_space<vmem>>, vector<1x128xf32>
    %26 = vector.broadcast %25 : vector<1x128xf32> to vector<256x128xf32>
    %27 = arith.addf %24, %26 : vector<256x128xf32>
    %cst = arith.constant 0.000000e+00 : f32
    %28 = vector.broadcast %cst : f32 to vector<256x128xf32>
    %29 = arith.maximumf %27, %28 : vector<256x128xf32>
    %30 = arith.truncf %29 : vector<256x128xf32> to vector<256x128xbf16>
    %c0_9 = arith.constant 0 : index
    %c0_10 = arith.constant 0 : index
    %31 = vector.load %arg5[%c0_9, %c0_10] : memref<128x128xbf16, #tpu.memory_space<vmem>>, vector<128x128xbf16>
    %cst_11 = arith.constant dense<0.000000e+00> : vector<256x128xf32>
    %32 = tpu.matmul %30, %31, %cst_11 {dimension_numbers = #tpu.dot_dimension_numbers<[1], [0], [0], [1], [0, 0, 1, 1], [], []>} : vector<256x128xbf16>, vector<128x128xbf16>, vector<256x128xf32> -> vector<256x128xf32>
    %c0_12 = arith.constant 0 : index
    %c0_13 = arith.constant 0 : index
    %33 = vector.load %arg6[%c0_12, %c0_13] : memref<1x128xf32, #tpu.memory_space<vmem>>, vector<1x128xf32>
    %34 = vector.broadcast %33 : vector<1x128xf32> to vector<256x128xf32>
    %35 = arith.addf %32, %34 : vector<256x128xf32>
    %c0_14 = arith.constant 0 : index
    %c0_15 = arith.constant 0 : index
    %c0_16 = arith.constant 0 : index
    %36 = vector.load %arg7[%c0_14, %c0_15, %c0_16] : memref<1x256x128xf32, #tpu.memory_space<vmem>>, vector<1x256x128xf32>
    %37 = vector.shape_cast %36 : vector<1x256x128xf32> to vector<256x128xf32>
    %38 = vector.shape_cast %35 : vector<256x128xf32> to vector<1x256x128xf32>
    tpu.vector_store %arg7[%c0_14, %c0_15, %c0_16], %38 {strides = array<i32>} : memref<1x256x128xf32, #tpu.memory_space<vmem>>, vector<1x256x128xf32>,
    %c0_i32 = arith.constant 0 : i32
    %39 = arith.cmpi eq, %arg1, %c0_i32 : i32
    %40 = arith.extui %39 : i1 to i32
    %c0_i32_17 = arith.constant 0 : i32
    %41 = arith.cmpi ne, %40, %c0_i32_17 : i32
    scf.if %41 {
      %cst_25 = arith.constant 0.000000e+00 : f32
      %50 = vector.broadcast %cst_25 : f32 to vector<1x1x128xf32>
      %c0_26 = arith.constant 0 : index
      %c0_27 = arith.constant 0 : index
      %c0_28 = arith.constant 0 : index
      %51 = vector.load %arg8[%c0_26, %c0_27, %c0_28] : memref<1x1x128xf32, #tpu.memory_space<vmem>>, vector<1x1x128xf32>
      tpu.vector_store %arg8[%c0_26, %c0_27, %c0_28], %50 {strides = array<i32>} : memref<1x1x128xf32, #tpu.memory_space<vmem>>, vector<1x1x128xf32>,
    } else {
    }
    %c0_18 = arith.constant 0 : index
    %c0_19 = arith.constant 0 : index
    %c0_20 = arith.constant 0 : index
    %42 = vector.load %arg8[%c0_18, %c0_19, %c0_20] : memref<1x1x128xf32, #tpu.memory_space<vmem>>, vector<1x1x128xf32>
    %43 = vector.shape_cast %42 : vector<1x1x128xf32> to vector<1x128xf32>
    %cst_21 = arith.constant dense<0.000000e+00> : vector<128xf32>
    %44 = vector.multi_reduction <add>, %29, %cst_21 [0] : vector<256x128xf32> to vector<128xf32>
    %45 = vector.shape_cast %44 : vector<128xf32> to vector<1x128xf32>
    %46 = arith.addf %43, %45 : vector<1x128xf32>
    %c0_22 = arith.constant 0 : index
    %c0_23 = arith.constant 0 : index
    %c0_24 = arith.constant 0 : index
    %47 = vector.load %arg8[%c0_22, %c0_23, %c0_24] : memref<1x1x128xf32, #tpu.memory_space<vmem>>, vector<1x1x128xf32>
    %48 = vector.shape_cast %47 : vector<1x1x128xf32> to vector<1x128xf32>
    %49 = vector.shape_cast %46 : vector<1x128xf32> to vector<1x1x128xf32>
    tpu.vector_store %arg8[%c0_22, %c0_23, %c0_24], %49 {strides = array<i32>} : memref<1x1x128xf32, #tpu.memory_space<vmem>>, vector<1x1x128xf32>,
    return
  }
  func.func @transform_0(%arg0: i32, %arg1: i32) -> (i32, i32, i32) {
    %c0_i32 = arith.constant 0 : i32
    %c0_i32_0 = arith.constant 0 : i32
    return %arg0, %arg1, %c0_i32 : i32, i32, i32
  }
  func.func @transform_1(%arg0: i32, %arg1: i32) -> (i32, i32) {
    %c0_i32 = arith.constant 0 : i32
    %c0_i32_0 = arith.constant 0 : i32
    %c0_i32_1 = arith.constant 0 : i32
    return %c0_i32, %c0_i32_0 : i32, i32
  }
  func.func @transform_2(%arg0: i32, %arg1: i32) -> (i32, i32) {
    %c0_i32 = arith.constant 0 : i32
    %c0_i32_0 = arith.constant 0 : i32
    %c0_i32_1 = arith.constant 0 : i32
    return %c0_i32, %c0_i32_0 : i32, i32
  }
  func.func @transform_3(%arg0: i32, %arg1: i32) -> (i32, i32) {
    %c0_i32 = arith.constant 0 : i32
    %c0_i32_0 = arith.constant 0 : i32
    %c0_i32_1 = arith.constant 0 : i32
    return %c0_i32, %c0_i32_0 : i32, i32
  }
  func.func @transform_4(%arg0: i32, %arg1: i32) -> (i32, i32) {
    %c0_i32 = arith.constant 0 : i32
    %c0_i32_0 = arith.constant 0 : i32
    %c0_i32_1 = arith.constant 0 : i32
    return %c0_i32, %c0_i32_0 : i32, i32
  }
  func.func @transform_5(%arg0: i32, %arg1: i32) -> (i32, i32, i32) {
    %c0_i32 = arith.constant 0 : i32
    %c0_i32_0 = arith.constant 0 : i32
    return %arg0, %arg1, %c0_i32 : i32, i32, i32
  }
  func.func @transform_6(%arg0: i32, %arg1: i32) -> (i32, i32, i32) {
    %c0_i32 = arith.constant 0 : i32
    %c0_i32_0 = arith.constant 0 : i32
    %c0_i32_1 = arith.constant 0 : i32
    return %arg0, %c0_i32, %c0_i32_0 : i32, i32, i32
  }
}

module attributes {stable_mosaic.version = 11 : i64} {
  func.func @_backbone_local_kernel(%arg0: i32, %arg1: i32, %arg2: memref<1x256x4xf32, #tpu.memory_space<vmem>>, %arg3: memref<4x128xf32, #tpu.memory_space<vmem>>, %arg4: memref<1x128xf32, #tpu.memory_space<vmem>>, %arg5: memref<128x128xbf16, #tpu.memory_space<vmem>>, %arg6: memref<1x128xf32, #tpu.memory_space<vmem>>, %arg7: memref<1x256x128xf32, #tpu.memory_space<vmem>>, %arg8: memref<1x1x128xf32, #tpu.memory_space<vmem>>) attributes {dimension_semantics = [#tpu.dimension_semantics<parallel>, #tpu.dimension_semantics<arbitrary>], iteration_bounds = array<i64: 2, 1>, scalar_prefetch = 0 : i64, scratch_operands = 0 : i64, tpu.core_type = #tpu.core_type<tc>, window_params = [{transform_indices = @transform_0, window_bounds = array<i64: 1, 256, 4>}, {pipeline_mode = #tpu.pipeline_mode<synchronous>, transform_indices = @transform_1, window_bounds = array<i64: 4, 128>}, {pipeline_mode = #tpu.pipeline_mode<synchronous>, transform_indices = @transform_2, window_bounds = array<i64: 1, 128>}, {pipeline_mode = #tpu.pipeline_mode<synchronous>, transform_indices = @transform_3, window_bounds = array<i64: 128, 128>}, {pipeline_mode = #tpu.pipeline_mode<synchronous>, transform_indices = @transform_4, window_bounds = array<i64: 1, 128>}, {transform_indices = @transform_5, window_bounds = array<i64: 1, 256, 128>}, {transform_indices = @transform_6, window_bounds = array<i64: 1, 1, 128>}]} {
    %c0 = arith.constant 0 : index
    %c0_0 = arith.constant 0 : index
    %c0_1 = arith.constant 0 : index
    %0 = vector.load %arg2[%c0, %c0_0, %c0_1] : memref<1x256x4xf32, #tpu.memory_space<vmem>>, vector<1x256x4xf32>
    %1 = vector.shape_cast %0 : vector<1x256x4xf32> to vector<256x4xf32>
    %2 = vector.extract_strided_slice %1 {offsets = [0, 0], sizes = [256, 1], strides = [1, 1]} : vector<256x4xf32> to vector<256x1xf32>
    %c0_2 = arith.constant 0 : index
    %c0_3 = arith.constant 0 : index
    %3 = vector.load %arg3[%c0_2, %c0_3] : memref<4x128xf32, #tpu.memory_space<vmem>>, vector<1x128xf32>
    %4 = vector.broadcast %2 : vector<256x1xf32> to vector<256x128xf32>
    %5 = vector.broadcast %3 : vector<1x128xf32> to vector<256x128xf32>
    %6 = arith.mulf %4, %5 : vector<256x128xf32>
    %7 = vector.extract_strided_slice %1 {offsets = [0, 1], sizes = [256, 1], strides = [1, 1]} : vector<256x4xf32> to vector<256x1xf32>
    %c1 = arith.constant 1 : index
    %c0_4 = arith.constant 0 : index
    %8 = vector.load %arg3[%c1, %c0_4] : memref<4x128xf32, #tpu.memory_space<vmem>>, vector<1x128xf32>
    %9 = vector.broadcast %7 : vector<256x1xf32> to vector<256x128xf32>
    %10 = vector.broadcast %8 : vector<1x128xf32> to vector<256x128xf32>
    %11 = arith.mulf %9, %10 : vector<256x128xf32>
    %12 = arith.addf %6, %11 : vector<256x128xf32>
    %13 = vector.extract_strided_slice %1 {offsets = [0, 2], sizes = [256, 1], strides = [1, 1]} : vector<256x4xf32> to vector<256x1xf32>
    %c2 = arith.constant 2 : index
    %c0_5 = arith.constant 0 : index
    %14 = vector.load %arg3[%c2, %c0_5] : memref<4x128xf32, #tpu.memory_space<vmem>>, vector<1x128xf32>
    %15 = vector.broadcast %13 : vector<256x1xf32> to vector<256x128xf32>
    %16 = vector.broadcast %14 : vector<1x128xf32> to vector<256x128xf32>
    %17 = arith.mulf %15, %16 : vector<256x128xf32>
    %18 = arith.addf %12, %17 : vector<256x128xf32>
    %19 = vector.extract_strided_slice %1 {offsets = [0, 3], sizes = [256, 1], strides = [1, 1]} : vector<256x4xf32> to vector<256x1xf32>
    %c3 = arith.constant 3 : index
    %c0_6 = arith.constant 0 : index
    %20 = vector.load %arg3[%c3, %c0_6] : memref<4x128xf32, #tpu.memory_space<vmem>>, vector<1x128xf32>
    %21 = vector.broadcast %19 : vector<256x1xf32> to vector<256x128xf32>
    %22 = vector.broadcast %20 : vector<1x128xf32> to vector<256x128xf32>
    %23 = arith.mulf %21, %22 : vector<256x128xf32>
    %24 = arith.addf %18, %23 : vector<256x128xf32>
    %c0_7 = arith.constant 0 : index
    %c0_8 = arith.constant 0 : index
    %25 = vector.load %arg4[%c0_7, %c0_8] : memref<1x128xf32, #tpu.memory_space<vmem>>, vector<1x128xf32>
    %26 = vector.broadcast %25 : vector<1x128xf32> to vector<256x128xf32>
    %27 = arith.addf %24, %26 : vector<256x128xf32>
    %cst = arith.constant 0.000000e+00 : f32
    %28 = vector.broadcast %cst : f32 to vector<256x128xf32>
    %29 = arith.maximumf %27, %28 : vector<256x128xf32>
    %30 = arith.truncf %29 : vector<256x128xf32> to vector<256x128xbf16>
    %c0_9 = arith.constant 0 : index
    %c0_10 = arith.constant 0 : index
    %31 = vector.load %arg5[%c0_9, %c0_10] : memref<128x128xbf16, #tpu.memory_space<vmem>>, vector<128x128xbf16>
    %cst_11 = arith.constant dense<0.000000e+00> : vector<256x128xf32>
    %32 = tpu.matmul %30, %31, %cst_11 {dimension_numbers = #tpu.dot_dimension_numbers<[1], [0], [0], [1], [0, 0, 1, 1], [], []>} : vector<256x128xbf16>, vector<128x128xbf16>, vector<256x128xf32> -> vector<256x128xf32>
    %c0_12 = arith.constant 0 : index
    %c0_13 = arith.constant 0 : index
    %33 = vector.load %arg6[%c0_12, %c0_13] : memref<1x128xf32, #tpu.memory_space<vmem>>, vector<1x128xf32>
    %34 = vector.broadcast %33 : vector<1x128xf32> to vector<256x128xf32>
    %35 = arith.addf %32, %34 : vector<256x128xf32>
    %c0_14 = arith.constant 0 : index
    %c0_15 = arith.constant 0 : index
    %c0_16 = arith.constant 0 : index
    %36 = vector.load %arg7[%c0_14, %c0_15, %c0_16] : memref<1x256x128xf32, #tpu.memory_space<vmem>>, vector<1x256x128xf32>
    %37 = vector.shape_cast %36 : vector<1x256x128xf32> to vector<256x128xf32>
    %38 = vector.shape_cast %35 : vector<256x128xf32> to vector<1x256x128xf32>
    tpu.vector_store %arg7[%c0_14, %c0_15, %c0_16], %38 {strides = array<i32>} : memref<1x256x128xf32, #tpu.memory_space<vmem>>, vector<1x256x128xf32>,
    %c0_i32 = arith.constant 0 : i32
    %39 = arith.cmpi eq, %arg1, %c0_i32 : i32
    %40 = arith.extui %39 : i1 to i32
    %c0_i32_17 = arith.constant 0 : i32
    %41 = arith.cmpi ne, %40, %c0_i32_17 : i32
    scf.if %41 {
      %cst_25 = arith.constant 0.000000e+00 : f32
      %50 = vector.broadcast %cst_25 : f32 to vector<1x1x128xf32>
      %c0_26 = arith.constant 0 : index
      %c0_27 = arith.constant 0 : index
      %c0_28 = arith.constant 0 : index
      %51 = vector.load %arg8[%c0_26, %c0_27, %c0_28] : memref<1x1x128xf32, #tpu.memory_space<vmem>>, vector<1x1x128xf32>
      tpu.vector_store %arg8[%c0_26, %c0_27, %c0_28], %50 {strides = array<i32>} : memref<1x1x128xf32, #tpu.memory_space<vmem>>, vector<1x1x128xf32>,
    } else {
    }
    %c0_18 = arith.constant 0 : index
    %c0_19 = arith.constant 0 : index
    %c0_20 = arith.constant 0 : index
    %42 = vector.load %arg8[%c0_18, %c0_19, %c0_20] : memref<1x1x128xf32, #tpu.memory_space<vmem>>, vector<1x1x128xf32>
    %43 = vector.shape_cast %42 : vector<1x1x128xf32> to vector<1x128xf32>
    %cst_21 = arith.constant dense<0.000000e+00> : vector<128xf32>
    %44 = vector.multi_reduction <add>, %29, %cst_21 [0] : vector<256x128xf32> to vector<128xf32>
    %45 = vector.shape_cast %44 : vector<128xf32> to vector<1x128xf32>
    %46 = arith.addf %43, %45 : vector<1x128xf32>
    %c0_22 = arith.constant 0 : index
    %c0_23 = arith.constant 0 : index
    %c0_24 = arith.constant 0 : index
    %47 = vector.load %arg8[%c0_22, %c0_23, %c0_24] : memref<1x1x128xf32, #tpu.memory_space<vmem>>, vector<1x1x128xf32>
    %48 = vector.shape_cast %47 : vector<1x1x128xf32> to vector<1x128xf32>
    %49 = vector.shape_cast %46 : vector<1x128xf32> to vector<1x1x128xf32>
    tpu.vector_store %arg8[%c0_22, %c0_23, %c0_24], %49 {strides = array<i32>} : memref<1x1x128xf32, #tpu.memory_space<vmem>>, vector<1x1x128xf32>,
    return
  }
  func.func @transform_0(%arg0: i32, %arg1: i32) -> (i32, i32, i32) {
    %c0_i32 = arith.constant 0 : i32
    %c0_i32_0 = arith.constant 0 : i32
    return %arg0, %arg1, %c0_i32 : i32, i32, i32
  }
  func.func @transform_1(%arg0: i32, %arg1: i32) -> (i32, i32) {
    %c0_i32 = arith.constant 0 : i32
    %c0_i32_0 = arith.constant 0 : i32
    %c0_i32_1 = arith.constant 0 : i32
    return %c0_i32, %c0_i32_0 : i32, i32
  }
  func.func @transform_2(%arg0: i32, %arg1: i32) -> (i32, i32) {
    %c0_i32 = arith.constant 0 : i32
    %c0_i32_0 = arith.constant 0 : i32
    %c0_i32_1 = arith.constant 0 : i32
    return %c0_i32, %c0_i32_0 : i32, i32
  }
  func.func @transform_3(%arg0: i32, %arg1: i32) -> (i32, i32) {
    %c0_i32 = arith.constant 0 : i32
    %c0_i32_0 = arith.constant 0 : i32
    %c0_i32_1 = arith.constant 0 : i32
    return %c0_i32, %c0_i32_0 : i32, i32
  }
  func.func @transform_4(%arg0: i32, %arg1: i32) -> (i32, i32) {
    %c0_i32 = arith.constant 0 : i32
    %c0_i32_0 = arith.constant 0 : i32
    %c0_i32_1 = arith.constant 0 : i32
    return %c0_i32, %c0_i32_0 : i32, i32
  }
  func.func @transform_5(%arg0: i32, %arg1: i32) -> (i32, i32, i32) {
    %c0_i32 = arith.constant 0 : i32
    %c0_i32_0 = arith.constant 0 : i32
    return %arg0, %arg1, %c0_i32 : i32, i32, i32
  }
  func.func @transform_6(%arg0: i32, %arg1: i32) -> (i32, i32, i32) {
    %c0_i32 = arith.constant 0 : i32
    %c0_i32_0 = arith.constant 0 : i32
    %c0_i32_1 = arith.constant 0 : i32
    return %arg0, %c0_i32, %c0_i32_0 : i32, i32, i32
  }
}

</mosaic_0001>

<llo_original>
// kernel: tpu_custom_call.1
$region0: #{tpu_custom_call.1}
  #allocation0 [shape = 'u32[]', space=smem, size = 0x4, offset = 0x4, fixed_abs, tag = 'smem constant byte address 0x4 - core index']
  #allocation1 [shape = 'u32[144,128]{1,0:T(1,128)}', space=vmem, size = 0x12000, scoped, tag = 'internal scratch']
  %s0 = inlined_call_operand.vmem [shape: f32[2,256,4], index: 0, kind: input, shape index: {}]
  %s1 = inlined_call_operand.vmem [shape: f32[4,128], index: 1, kind: input, shape index: {}]
  %s2 = inlined_call_operand.vmem [shape: f32[1,128], index: 2, kind: input, shape index: {}]
  %s3 = inlined_call_operand.vmem [shape: bf16[128,128], index: 3, kind: input, shape index: {}]
  %s4 = inlined_call_operand.vmem [shape: f32[1,128], index: 4, kind: input, shape index: {}]
  %s5 = inlined_call_operand.hbm [shape: f32[2,256,128], index: 5, kind: output, shape index: {0}]
  %s6 = inlined_call_operand.hbm [shape: f32[2,1,128], index: 6, kind: output, shape index: {1}]
  %7 = xla_tuple %s5, %s6
  %s8 = sld [smem:[#allocation0]]
  $region65: #{tpu_custom_call.1} parent=0
    _
  %s10 = ssub.s32 1, %s8
  %s11 = scalar_select 0, %s10, %s8
  $region1: #{tpu_custom_call.1} parent=0
    #allocation2 [shape = 'u8[262144]{0}', space=vmem, size = 0x40000, scoped, tag = 'output window, operand 0']
    #allocation3 [shape = 's32[2]{0}', space=sflag, size = 0x8, scoped, tag = 'scoped memory for tpu_custom_call.1']
    #allocation4 [shape = 'u8[1024]{0}', space=vmem, size = 0x400, scoped, tag = 'output window, operand 1']
    #allocation5 [shape = 's32[2]{0}', space=sflag, size = 0x8, scoped, tag = 'scoped memory for tpu_custom_call.1']
    %12 = vsyncpa [#allocation3], 0
    %s13 = scalar_lea.sflag [#allocation3], 1
    %14 = vsyncpa %s13, 0
    %15 = vsyncpa [#allocation5], 0
    %s16 = scalar_lea.sflag [#allocation5], 1
    %17 = vsyncpa %s16, 0
    loop: start=0, step=1, limit=4
    $region2: #{tpu_custom_call.1} parent=1 // loop_pre_header
      _
    $region3: #{tpu_custom_call.1} parent=1 // loop_header
      %s19 = sphi 0, %s23
      %p20 = scmp.ge.s32.totalorder %s19, 4
      %s26 = sphi 0, %s38
      %s27 = sphi 0, %s34
      %s28 = sphi 0, %s26
      %s29 = sphi 0, %s27
      %s30 = sphi 0, %s28
      %s31 = sphi 0, %s29
      %s43 = sphi 0, %s45
      %s46 = sphi 0, %s43
      %s47 = sphi 0, %s46
      %s63 = sphi 0, %s47
      %s67 = sphi 0, %s67
      %s69 = sphi 0, %s67
      %s70 = sphi 0, %s69
      %s84 = sphi 0, %s70
      %s88 = sphi 0, %s88
      %s90 = sphi 0, %s88
      %s91 = sphi 0, %s90
      %s105 = sphi 0, %s91
      %s109 = sphi 0, %s109
      %s111 = sphi 0, %s109
      %s112 = sphi 0, %s111
      %s126 = sphi 0, %s112
      %s130 = sphi 0, %s130
      %s132 = sphi 0, %s130
      %s133 = sphi 0, %s132
      %s147 = sphi 0, %s133
      %s155 = sphi 0, %s157
      %s158 = sphi 0, %s155
      %s159 = sphi 0, %s158
      %s175 = sphi 0, %s159
      %s181 = sphi 0, %s183
      %s184 = sphi 0, %s181
      %s185 = sphi 0, %s184
      %s201 = sphi 0, %s185
    $region4: #{tpu_custom_call.1} parent=1 // loop_header_branch
      %22 = sbr.rel (%p20) target = $region8
    $region5: #{tpu_custom_call.1} parent=1 // loop_body
      %s24 = ssub.s32 %s19, 1
      %s25 = ssub.s32 %s19, 2
      %s32 = sadd.s32 1, %s27
      %p33 = scmp.ge.s32.totalorder %s32, 1
      %s34 = scalar_select %p33, 0, %s32
      %s35 = sadd.s32 1, %s26
      %s36 = scalar_select %p33, %s35, %s26
      %p37 = scmp.ge.s32.totalorder %s36, 2
      %s38 = scalar_select %p37, 0, %s36
      %s39 = ssub.s32 %s26, %s38
      %s40 = ssub.s32 %s27, %s34
      %s41 = sor.u32 %s39, %s40
      %p42 = scmp.eq.s32.totalorder %s41, 0
      %s44 = sadd.s32 %s43, 1
      %s45 = scalar_select %p42, %s43, %s44
      %p48 = pneg %p42
      %p49 = scmp.eq.s32.totalorder %s19, 1
      %p50 = por %p48, %p49
      %p51 = scmp.ne.s32.totalorder %s43, %s46
      %p52 = scmp.eq.s32.totalorder %s19, 0
      %p53 = por %p51, %p52
      %p54 = scmp.ne.s32.totalorder %s43, %s46
      %p55 = scmp.eq.s32.totalorder %s24, 1
      %p56 = por %p54, %p55
      %p57 = scmp.ne.s32.totalorder %s46, %s47
      %p58 = scmp.eq.s32.totalorder %s24, 0
      %p59 = por %p57, %p58
      %p60 = scmp.ne.s32.totalorder %s46, %s47
      %p61 = scmp.eq.s32.totalorder %s25, 1
      %p62 = por %p60, %p61
      %p64 = scmp.ne.s32.totalorder %s47, %s63
      %p65 = scmp.eq.s32.totalorder %s25, 0
      %p66 = por %p64, %p65
      %s68 = sadd.s32 %s67, 1
      %p71 = scmp.eq.s32.totalorder %s19, 1
      %p72 = scmp.ne.s32.totalorder %s67, %s69
      %p73 = scmp.eq.s32.totalorder %s19, 0
      %p74 = por %p72, %p73
      %p75 = scmp.ne.s32.totalorder %s67, %s69
      %p76 = scmp.eq.s32.totalorder %s24, 1
      %p77 = por %p75, %p76
      %p78 = scmp.ne.s32.totalorder %s69, %s70
      %p79 = scmp.eq.s32.totalorder %s24, 0
      %p80 = por %p78, %p79
      %p81 = scmp.ne.s32.totalorder %s69, %s70
      %p82 = scmp.eq.s32.totalorder %s25, 1
      %p83 = por %p81, %p82
      %p85 = scmp.ne.s32.totalorder %s70, %s84
      %p86 = scmp.eq.s32.totalorder %s25, 0
      %p87 = por %p85, %p86
      %s89 = sadd.s32 %s88, 1
      %p92 = scmp.eq.s32.totalorder %s19, 1
      %p93 = scmp.ne.s32.totalorder %s88, %s90
      %p94 = scmp.eq.s32.totalorder %s19, 0
      %p95 = por %p93, %p94
      %p96 = scmp.ne.s32.totalorder %s88, %s90
      %p97 = scmp.eq.s32.totalorder %s24, 1
      %p98 = por %p96, %p97
      %p99 = scmp.ne.s32.totalorder %s90, %s91
      %p100 = scmp.eq.s32.totalorder %s24, 0
      %p101 = por %p99, %p100
      %p102 = scmp.ne.s32.totalorder %s90, %s91
      %p103 = scmp.eq.s32.totalorder %s25, 1
      %p104 = por %p102, %p103
      %p106 = scmp.ne.s32.totalorder %s91, %s105
      %p107 = scmp.eq.s32.totalorder %s25, 0
      %p108 = por %p106, %p107
      %s110 = sadd.s32 %s109, 1
      %p113 = scmp.eq.s32.totalorder %s19, 1
      %p114 = scmp.ne.s32.totalorder %s109, %s111
      %p115 = scmp.eq.s32.totalorder %s19, 0
      %p116 = por %p114, %p115
      %p117 = scmp.ne.s32.totalorder %s109, %s111
      %p118 = scmp.eq.s32.totalorder %s24, 1
      %p119 = por %p117, %p118
      %p120 = scmp.ne.s32.totalorder %s111, %s112
      %p121 = scmp.eq.s32.totalorder %s24, 0
      %p122 = por %p120, %p121
      %p123 = scmp.ne.s32.totalorder %s111, %s112
      %p124 = scmp.eq.s32.totalorder %s25, 1
      %p125 = por %p123, %p124
      %p127 = scmp.ne.s32.totalorder %s112, %s126
      %p128 = scmp.eq.s32.totalorder %s25, 0
      %p129 = por %p127, %p128
      %s131 = sadd.s32 %s130, 1
      %p134 = scmp.eq.s32.totalorder %s19, 1
      %p135 = scmp.ne.s32.totalorder %s130, %s132
      %p136 = scmp.eq.s32.totalorder %s19, 0
      %p137 = por %p135, %p136
      %p138 = scmp.ne.s32.totalorder %s130, %s132
      %p139 = scmp.eq.s32.totalorder %s24, 1
      %p140 = por %p138, %p139
      %p141 = scmp.ne.s32.totalorder %s132, %s133
      %p142 = scmp.eq.s32.totalorder %s24, 0
      %p143 = por %p141, %p142
      %p144 = scmp.ne.s32.totalorder %s132, %s133
      %p145 = scmp.eq.s32.totalorder %s25, 1
      %p146 = por %p144, %p145
      %p148 = scmp.ne.s32.totalorder %s133, %s147
      %p149 = scmp.eq.s32.totalorder %s25, 0
      %p150 = por %p148, %p149
      %s151 = ssub.s32 %s26, %s38
      %s152 = ssub.s32 %s27, %s34
      %s153 = sor.u32 %s151, %s152
      %p154 = scmp.eq.s32.totalorder %s153, 0
      %s156 = sadd.s32 %s155, 1
      %s157 = scalar_select %p154, %s155, %s156
      %p160 = pneg %p154
      %p161 = scmp.eq.s32.totalorder %s19, 1
      %p162 = por %p160, %p161
      %p163 = scmp.ne.s32.totalorder %s155, %s158
      %p164 = scmp.eq.s32.totalorder %s19, 0
      %p165 = por %p163, %p164
      %p166 = scmp.ne.s32.totalorder %s155, %s158
      %p167 = scmp.eq.s32.totalorder %s24, 1
      %p168 = por %p166, %p167
      %p169 = scmp.ne.s32.totalorder %s158, %s159
      %p170 = scmp.eq.s32.totalorder %s24, 0
      %p171 = por %p169, %p170
      %p172 = scmp.ne.s32.totalorder %s158, %s159
      %p173 = scmp.eq.s32.totalorder %s25, 1
      %p174 = por %p172, %p173
      %p176 = scmp.ne.s32.totalorder %s159, %s175
      %p177 = scmp.eq.s32.totalorder %s25, 0
      %p178 = por %p176, %p177
      %s179 = ssub.s32 %s26, %s38
      %p180 = scmp.eq.s32.totalorder %s179, 0
      %s182 = sadd.s32 %s181, 1
      %s183 = scalar_select %p180, %s181, %s182
      %p186 = pneg %p180
      %p187 = scmp.eq.s32.totalorder %s19, 1
      %p188 = por %p186, %p187
      %p189 = scmp.ne.s32.totalorder %s181, %s184
      %p190 = scmp.eq.s32.totalorder %s19, 0
      %p191 = por %p189, %p190
      %p192 = scmp.ne.s32.totalorder %s181, %s184
      %p193 = scmp.eq.s32.totalorder %s24, 1
      %p194 = por %p192, %p193
      %p195 = scmp.ne.s32.totalorder %s184, %s185
      %p196 = scmp.eq.s32.totalorder %s24, 0
      %p197 = por %p195, %p196
      %p198 = scmp.ne.s32.totalorder %s184, %s185
      %p199 = scmp.eq.s32.totalorder %s25, 1
      %p200 = por %p198, %p199
      %p202 = scmp.ne.s32.totalorder %s185, %s201
      %p203 = scmp.eq.s32.totalorder %s25, 0
      %p204 = por %p202, %p203
      %p205 = scmp.le.s32.totalorder 1, %s19
      %p206 = scmp.lt.s32.totalorder %s19, 3
      %p207 = pnand %p205, %p206
      %p208 = pneg %p207
      // Predicated region
      $region9: #{tpu_custom_call.1} parent=5 // pred_check
        _
      $region10: #{tpu_custom_call.1} parent=5 // pred_check_branch
        %210 = sbr.rel (%p207) target = $region12
      $region11: #{tpu_custom_call.1} parent=5 // pred_region
        %s211 = ssub.s32 %s19, 1
        // Predicated region
        $region13: #{tpu_custom_call.1} parent=11 // pred_check
          %p212 = pneg %p80
        $region14: #{tpu_custom_call.1} parent=11 // pred_check_branch
          %214 = sbr.rel (%p212) target = $region16
        $region15: #{tpu_custom_call.1} parent=11 // pred_region
          _
        $region16: #{tpu_custom_call.1} parent=11 // pred_fallthru
          _
        // Predicated region
        $region17: #{tpu_custom_call.1} parent=11 // pred_check
          %p215 = pneg %p101
        $region18: #{tpu_custom_call.1} parent=11 // pred_check_branch
          %217 = sbr.rel (%p215) target = $region20
        $region19: #{tpu_custom_call.1} parent=11 // pred_region
          _
        $region20: #{tpu_custom_call.1} parent=11 // pred_fallthru
          _
        // Predicated region
        $region21: #{tpu_custom_call.1} parent=11 // pred_check
          %p218 = pneg %p122
        $region22: #{tpu_custom_call.1} parent=11 // pred_check_branch
          %220 = sbr.rel (%p218) target = $region24
        $region23: #{tpu_custom_call.1} parent=11 // pred_region
          _
        $region24: #{tpu_custom_call.1} parent=11 // pred_fallthru
          _
        // Predicated region
        $region25: #{tpu_custom_call.1} parent=11 // pred_check
          %p221 = pneg %p143
        $region26: #{tpu_custom_call.1} parent=11 // pred_check_branch
          %223 = sbr.rel (%p221) target = $region28
        $region27: #{tpu_custom_call.1} parent=11 // pred_region
          _
        $region28: #{tpu_custom_call.1} parent=11 // pred_fallthru
          _
      $region12: #{tpu_custom_call.1} parent=5 // pred_fallthru
        _
      %p224 = scmp.lt.s32.totalorder %s19, 2
      // Predicated region
      $region29: #{tpu_custom_call.1} parent=5 // pred_check
        %p225 = pneg %p224
      $region30: #{tpu_custom_call.1} parent=5 // pred_check_branch
        %227 = sbr.rel (%p225) target = $region32
      $region31: #{tpu_custom_call.1} parent=5 // pred_region
        // Predicated region
        $region33: #{tpu_custom_call.1} parent=31 // pred_check
          %p228 = pneg %p53
        $region34: #{tpu_custom_call.1} parent=31 // pred_check_branch
          %230 = sbr.rel (%p228) target = $region36
        $region35: #{tpu_custom_call.1} parent=31 // pred_region
          %s231 = smul.u32 32, %s27
          %p232 = scmp.lt.s32.totalorder %s26, 1
          %s233 = scalar_select %p232, %s26, 1
          %p234 = scmp.lt.s32.totalorder %s231, 31
          %s235 = scalar_select %p234, %s231, 31
          %s236 = smul.addr %s233, 32
          %s237 = sadd.s32 %s235, %s236
          %s238 = smul.addr %s237, 8
          %s239 = scalar_lea.vmem %s0, %s238
          %s240 = smul.u32 32, %s27
        $region36: #{tpu_custom_call.1} parent=31 // pred_fallthru
          _
      $region32: #{tpu_custom_call.1} parent=5 // pred_fallthru
        _
      %p241 = scmp.le.s32.totalorder 1, %s19
      %p242 = scmp.lt.s32.totalorder %s19, 3
      %p243 = pnand %p241, %p242
      %p244 = pneg %p243
      // Predicated region
      $region37: #{tpu_custom_call.1} parent=5 // pred_check
        _
      $region38: #{tpu_custom_call.1} parent=5 // pred_check_branch
        %246 = sbr.rel (%p243) target = $region40
      $region39: #{tpu_custom_call.1} parent=5 // pred_region
        %s247 = ssub.s32 %s19, 1
        %s248 = smul.u32 32, %s29
        %p249 = scmp.lt.s32.totalorder %s28, 1
        %s250 = scalar_select %p249, %s28, 1
        %p251 = scmp.lt.s32.totalorder %s248, 31
        %s252 = scalar_select %p251, %s248, 31
        %s253 = smul.addr %s250, 32
        %s254 = sadd.s32 %s252, %s253
        %s255 = smul.addr %s254, 8
        %s256 = scalar_lea.vmem %s0, %s255
        %p257 = pneg %p59
        %p258 = pneg %p56
        %p259 = pneg %p80
        %p260 = pneg %p77
        %p261 = pneg %p101
        %p262 = pneg %p98
        %p263 = pneg %p122
        %p264 = pneg %p119
        %p265 = pneg %p143
        %p266 = pneg %p140
        %p267 = pneg %p171
        %p268 = pneg %p168
        %s269 = sand.u32 %s158, 1
        %s270 = scalar_lea.sflag [#allocation3], %s269
        %s271 = sand.u32 %s158, 1
        %s272 = smul.addr %s271, 256
        %s273 = scalar_lea.vmem [#allocation2], %s272
        %p274 = pneg %p197
        %p275 = pneg %p194
        %s276 = sand.u32 %s184, 1
        %s277 = scalar_lea.sflag [#allocation5], %s276
        %s278 = sand.u32 %s184, 1
        %s279 = scalar_lea.vmem [#allocation4], %s278
        %s280 = smul.u32 32, %s29
        %p281 = scmp.lt.s32.totalorder %s28, 1
        %s282 = scalar_select %p281, %s28, 1
        %p283 = scmp.lt.s32.totalorder %s280, 31
        %s284 = scalar_select %p283, %s280, 31
        %s285 = smul.addr %s282, 32
        %s286 = sadd.s32 %s284, %s285
        %s287 = smul.addr %s286, 8
        %s288 = scalar_lea.vmem %s0, %s287
        %s289 = smul.u32 32, %s29
        %s290 = smul.u32 32, %s29
        %v292 = vld [vmem:[%s288] sm:$0xff]
        %v293 = vld [vmem:[%s288 + $0x8] sm:$0xff]
        %v294 = vld [vmem:[%s288 + $0x10] sm:$0xff]
        %v295 = vld [vmem:[%s288 + $0x18] sm:$0xff]
        %v296 = vld [vmem:[%s288 + $0x20] sm:$0xff]
        %v297 = vld [vmem:[%s288 + $0x28] sm:$0xff]
        %v298 = vld [vmem:[%s288 + $0x30] sm:$0xff]
        %v299 = vld [vmem:[%s288 + $0x38] sm:$0xff]
        %v300 = vld [vmem:[%s288 + $0x40] sm:$0xff]
        %v301 = vld [vmem:[%s288 + $0x48] sm:$0xff]
        %v302 = vld [vmem:[%s288 + $0x50] sm:$0xff]
        %v303 = vld [vmem:[%s288 + $0x58] sm:$0xff]
        %v304 = vld [vmem:[%s288 + $0x60] sm:$0xff]
        %v305 = vld [vmem:[%s288 + $0x68] sm:$0xff]
        %v306 = vld [vmem:[%s288 + $0x70] sm:$0xff]
        %v307 = vld [vmem:[%s288 + $0x78] sm:$0xff]
        %v308 = vld [vmem:[%s288 + $0x80] sm:$0xff]
        %v309 = vld [vmem:[%s288 + $0x88] sm:$0xff]
        %v310 = vld [vmem:[%s288 + $0x90] sm:$0xff]
        %v311 = vld [vmem:[%s288 + $0x98] sm:$0xff]
        %v312 = vld [vmem:[%s288 + $0xa0] sm:$0xff]
        %v313 = vld [vmem:[%s288 + $0xa8] sm:$0xff]
        %v314 = vld [vmem:[%s288 + $0xb0] sm:$0xff]
        %v315 = vld [vmem:[%s288 + $0xb8] sm:$0xff]
        %v316 = vld [vmem:[%s288 + $0xc0] sm:$0xff]
        %v317 = vld [vmem:[%s288 + $0xc8] sm:$0xff]
        %v318 = vld [vmem:[%s288 + $0xd0] sm:$0xff]
        %v319 = vld [vmem:[%s288 + $0xd8] sm:$0xff]
        %v320 = vld [vmem:[%s288 + $0xe0] sm:$0xff]
        %v321 = vld [vmem:[%s288 + $0xe8] sm:$0xff]
        %v322 = vld [vmem:[%s288 + $0xf0] sm:$0xff]
        %v323 = vld [vmem:[%s288 + $0xf8] sm:$0xff]
        %v324 = vld [vmem:[%s1] sm:$0x1]
        %326 = vset.pattern.permute.xlu0 0
        %327 = vperm.xlu0 %326, %v292
        %v328 = vpop.permute.xlu0 %327
        %331 = vset.pattern.permute.xlu0 0
        %332 = vperm.xlu0 %331, %v293
        %v333 = vpop.permute.xlu0 %332
        %336 = vset.pattern.permute.xlu0 0
        %337 = vperm.xlu0 %336, %v294
        %v338 = vpop.permute.xlu0 %337
        %341 = vset.pattern.permute.xlu0 0
        %342 = vperm.xlu0 %341, %v295
        %v343 = vpop.permute.xlu0 %342
        %346 = vset.pattern.permute.xlu0 0
        %347 = vperm.xlu0 %346, %v296
        %v348 = vpop.permute.xlu0 %347
        %351 = vset.pattern.permute.xlu0 0
        %352 = vperm.xlu0 %351, %v297
        %v353 = vpop.permute.xlu0 %352
        %356 = vset.pattern.permute.xlu0 0
        %357 = vperm.xlu0 %356, %v298
        %v358 = vpop.permute.xlu0 %357
        %361 = vset.pattern.permute.xlu0 0
        %362 = vperm.xlu0 %361, %v299
        %v363 = vpop.permute.xlu0 %362
        %366 = vset.pattern.permute.xlu0 0
        %367 = vperm.xlu0 %366, %v300
        %v368 = vpop.permute.xlu0 %367
        %371 = vset.pattern.permute.xlu0 0
        %372 = vperm.xlu0 %371, %v301
        %v373 = vpop.permute.xlu0 %372
        %376 = vset.pattern.permute.xlu0 0
        %377 = vperm.xlu0 %376, %v302
        %v378 = vpop.permute.xlu0 %377
        %381 = vset.pattern.permute.xlu0 0
        %382 = vperm.xlu0 %381, %v303
        %v383 = vpop.permute.xlu0 %382
        %386 = vset.pattern.permute.xlu0 0
        %387 = vperm.xlu0 %386, %v304
        %v388 = vpop.permute.xlu0 %387
        %391 = vset.pattern.permute.xlu0 0
        %392 = vperm.xlu0 %391, %v305
        %v393 = vpop.permute.xlu0 %392
        %396 = vset.pattern.permute.xlu0 0
        %397 = vperm.xlu0 %396, %v306
        %v398 = vpop.permute.xlu0 %397
        %401 = vset.pattern.permute.xlu0 0
        %402 = vperm.xlu0 %401, %v307
        %v403 = vpop.permute.xlu0 %402
        %406 = vset.pattern.permute.xlu0 0
        %407 = vperm.xlu0 %406, %v308
        %v408 = vpop.permute.xlu0 %407
        %411 = vset.pattern.permute.xlu0 0
        %412 = vperm.xlu0 %411, %v309
        %v413 = vpop.permute.xlu0 %412
        %416 = vset.pattern.permute.xlu0 0
        %417 = vperm.xlu0 %416, %v310
        %v418 = vpop.permute.xlu0 %417
        %421 = vset.pattern.permute.xlu0 0
        %422 = vperm.xlu0 %421, %v311
        %v423 = vpop.permute.xlu0 %422
        %426 = vset.pattern.permute.xlu0 0
        %427 = vperm.xlu0 %426, %v312
        %v428 = vpop.permute.xlu0 %427
        %431 = vset.pattern.permute.xlu0 0
        %432 = vperm.xlu0 %431, %v313
        %v433 = vpop.permute.xlu0 %432
        %436 = vset.pattern.permute.xlu0 0
        %437 = vperm.xlu0 %436, %v314
        %v438 = vpop.permute.xlu0 %437
        %441 = vset.pattern.permute.xlu0 0
        %442 = vperm.xlu0 %441, %v315
        %v443 = vpop.permute.xlu0 %442
        %446 = vset.pattern.permute.xlu0 0
        %447 = vperm.xlu0 %446, %v316
        %v448 = vpop.permute.xlu0 %447
        %451 = vset.pattern.permute.xlu0 0
        %452 = vperm.xlu0 %451, %v317
        %v453 = vpop.permute.xlu0 %452
        %456 = vset.pattern.permute.xlu0 0
        %457 = vperm.xlu0 %456, %v318
        %v458 = vpop.permute.xlu0 %457
        %461 = vset.pattern.permute.xlu0 0
        %462 = vperm.xlu0 %461, %v319
        %v463 = vpop.permute.xlu0 %462
        %466 = vset.pattern.permute.xlu0 0
        %467 = vperm.xlu0 %466, %v320
        %v468 = vpop.permute.xlu0 %467
        %471 = vset.pattern.permute.xlu0 0
        %472 = vperm.xlu0 %471, %v321
        %v473 = vpop.permute.xlu0 %472
        %476 = vset.pattern.permute.xlu0 0
        %477 = vperm.xlu0 %476, %v322
        %v478 = vpop.permute.xlu0 %477
        %481 = vset.pattern.permute.xlu0 0
        %482 = vperm.xlu0 %481, %v323
        %v483 = vpop.permute.xlu0 %482
        %v485 = vlaneseq
        %v486 = vshrl.u32 %v485, 7
        %v487 = vsub.s32 0, %v486
        %v488 = vrot.slane %v324, %v487
        %v489 = vmul.f32 %v328, %v488
        %v490 = vmul.f32 %v333, %v488
        %v491 = vmul.f32 %v338, %v488
        %v492 = vmul.f32 %v343, %v488
        %v493 = vmul.f32 %v348, %v488
        %v494 = vmul.f32 %v353, %v488
        %v495 = vmul.f32 %v358, %v488
        %v496 = vmul.f32 %v363, %v488
        %v497 = vmul.f32 %v368, %v488
        %v498 = vmul.f32 %v373, %v488
        %v499 = vmul.f32 %v378, %v488
        %v500 = vmul.f32 %v383, %v488
        %v501 = vmul.f32 %v388, %v488
        %v502 = vmul.f32 %v393, %v488
        %v503 = vmul.f32 %v398, %v488
        %v504 = vmul.f32 %v403, %v488
        %v505 = vmul.f32 %v408, %v488
        %v506 = vmul.f32 %v413, %v488
        %v507 = vmul.f32 %v418, %v488
        %v508 = vmul.f32 %v423, %v488
        %v509 = vmul.f32 %v428, %v488
        %v510 = vmul.f32 %v433, %v488
        %v511 = vmul.f32 %v438, %v488
        %v512 = vmul.f32 %v443, %v488
        %v513 = vmul.f32 %v448, %v488
        %v514 = vmul.f32 %v453, %v488
        %v515 = vmul.f32 %v458, %v488
        %v516 = vmul.f32 %v463, %v488
        %v517 = vmul.f32 %v468, %v488
        %v518 = vmul.f32 %v473, %v488
        %v519 = vmul.f32 %v478, %v488
        %v520 = vmul.f32 %v483, %v488
        %v521 = vld [vmem:[%s1 + $0x1] sm:$0x1]
        %522 = vset.pattern.permute.xlu0 1
        %523 = vperm.xlu0 %522, %v292
        %v524 = vpop.permute.xlu0 %523
        %526 = vset.pattern.permute.xlu0 1
        %527 = vperm.xlu0 %526, %v293
        %v528 = vpop.permute.xlu0 %527
        %530 = vset.pattern.permute.xlu0 1
        %531 = vperm.xlu0 %530, %v294
        %v532 = vpop.permute.xlu0 %531
        %534 = vset.pattern.permute.xlu0 1
        %535 = vperm.xlu0 %534, %v295
        %v536 = vpop.permute.xlu0 %535
        %538 = vset.pattern.permute.xlu0 1
        %539 = vperm.xlu0 %538, %v296
        %v540 = vpop.permute.xlu0 %539
        %542 = vset.pattern.permute.xlu0 1
        %543 = vperm.xlu0 %542, %v297
        %v544 = vpop.permute.xlu0 %543
        %546 = vset.pattern.permute.xlu0 1
        %547 = vperm.xlu0 %546, %v298
        %v548 = vpop.permute.xlu0 %547
        %550 = vset.pattern.permute.xlu0 1
        %551 = vperm.xlu0 %550, %v299
        %v552 = vpop.permute.xlu0 %551
        %554 = vset.pattern.permute.xlu0 1
        %555 = vperm.xlu0 %554, %v300
        %v556 = vpop.permute.xlu0 %555
        %558 = vset.pattern.permute.xlu0 1
        %559 = vperm.xlu0 %558, %v301
        %v560 = vpop.permute.xlu0 %559
        %562 = vset.pattern.permute.xlu0 1
        %563 = vperm.xlu0 %562, %v302
        %v564 = vpop.permute.xlu0 %563
        %566 = vset.pattern.permute.xlu0 1
        %567 = vperm.xlu0 %566, %v303
        %v568 = vpop.permute.xlu0 %567
        %570 = vset.pattern.permute.xlu0 1
        %571 = vperm.xlu0 %570, %v304
        %v572 = vpop.permute.xlu0 %571
        %574 = vset.pattern.permute.xlu0 1
        %575 = vperm.xlu0 %574, %v305
        %v576 = vpop.permute.xlu0 %575
        %578 = vset.pattern.permute.xlu0 1
        %579 = vperm.xlu0 %578, %v306
        %v580 = vpop.permute.xlu0 %579
        %582 = vset.pattern.permute.xlu0 1
        %583 = vperm.xlu0 %582, %v307
        %v584 = vpop.permute.xlu0 %583
        %586 = vset.pattern.permute.xlu0 1
        %587 = vperm.xlu0 %586, %v308
        %v588 = vpop.permute.xlu0 %587
        %590 = vset.pattern.permute.xlu0 1
        %591 = vperm.xlu0 %590, %v309
        %v592 = vpop.permute.xlu0 %591
        %594 = vset.pattern.permute.xlu0 1
        %595 = vperm.xlu0 %594, %v310
        %v596 = vpop.permute.xlu0 %595
        %598 = vset.pattern.permute.xlu0 1
        %599 = vperm.xlu0 %598, %v311
        %v600 = vpop.permute.xlu0 %599
        %602 = vset.pattern.permute.xlu0 1
        %603 = vperm.xlu0 %602, %v312
        %v604 = vpop.permute.xlu0 %603
        %606 = vset.pattern.permute.xlu0 1
        %607 = vperm.xlu0 %606, %v313
        %v608 = vpop.permute.xlu0 %607
        %610 = vset.pattern.permute.xlu0 1
        %611 = vperm.xlu0 %610, %v314
        %v612 = vpop.permute.xlu0 %611
        %614 = vset.pattern.permute.xlu0 1
        %615 = vperm.xlu0 %614, %v315
        %v616 = vpop.permute.xlu0 %615
        %618 = vset.pattern.permute.xlu0 1
        %619 = vperm.xlu0 %618, %v316
        %v620 = vpop.permute.xlu0 %619
        %622 = vset.pattern.permute.xlu0 1
        %623 = vperm.xlu0 %622, %v317
        %v624 = vpop.permute.xlu0 %623
        %626 = vset.pattern.permute.xlu0 1
        %627 = vperm.xlu0 %626, %v318
        %v628 = vpop.permute.xlu0 %627
        %630 = vset.pattern.permute.xlu0 1
        %631 = vperm.xlu0 %630, %v319
        %v632 = vpop.permute.xlu0 %631
        %634 = vset.pattern.permute.xlu0 1
        %635 = vperm.xlu0 %634, %v320
        %v636 = vpop.permute.xlu0 %635
        %638 = vset.pattern.permute.xlu0 1
        %639 = vperm.xlu0 %638, %v321
        %v640 = vpop.permute.xlu0 %639
        %642 = vset.pattern.permute.xlu0 1
        %643 = vperm.xlu0 %642, %v322
        %v644 = vpop.permute.xlu0 %643
        %646 = vset.pattern.permute.xlu0 1
        %647 = vperm.xlu0 %646, %v323
        %v648 = vpop.permute.xlu0 %647
        %v650 = vlaneseq
        %v651 = vshrl.u32 %v650, 7
        %v652 = vsub.s32 0, %v651
        %v653 = vrot.slane %v521, %v652
        %v654 = vmul.f32 %v524, %v653
        %v655 = vmul.f32 %v528, %v653
        %v656 = vmul.f32 %v532, %v653
        %v657 = vmul.f32 %v536, %v653
        %v658 = vmul.f32 %v540, %v653
        %v659 = vmul.f32 %v544, %v653
        %v660 = vmul.f32 %v548, %v653
        %v661 = vmul.f32 %v552, %v653
        %v662 = vmul.f32 %v556, %v653
        %v663 = vmul.f32 %v560, %v653
        %v664 = vmul.f32 %v564, %v653
        %v665 = vmul.f32 %v568, %v653
        %v666 = vmul.f32 %v572, %v653
        %v667 = vmul.f32 %v576, %v653
        %v668 = vmul.f32 %v580, %v653
        %v669 = vmul.f32 %v584, %v653
        %v670 = vmul.f32 %v588, %v653
        %v671 = vmul.f32 %v592, %v653
        %v672 = vmul.f32 %v596, %v653
        %v673 = vmul.f32 %v600, %v653
        %v674 = vmul.f32 %v604, %v653
        %v675 = vmul.f32 %v608, %v653
        %v676 = vmul.f32 %v612, %v653
        %v677 = vmul.f32 %v616, %v653
        %v678 = vmul.f32 %v620, %v653
        %v679 = vmul.f32 %v624, %v653
        %v680 = vmul.f32 %v628, %v653
        %v681 = vmul.f32 %v632, %v653
        %v682 = vmul.f32 %v636, %v653
        %v683 = vmul.f32 %v640, %v653
        %v684 = vmul.f32 %v644, %v653
        %v685 = vmul.f32 %v648, %v653
        %v686 = vadd.f32 %v489, %v654
        %v687 = vadd.f32 %v490, %v655
        %v688 = vadd.f32 %v491, %v656
        %v689 = vadd.f32 %v492, %v657
        %v690 = vadd.f32 %v493, %v658
        %v691 = vadd.f32 %v494, %v659
        %v692 = vadd.f32 %v495, %v660
        %v693 = vadd.f32 %v496, %v661
        %v694 = vadd.f32 %v497, %v662
        %v695 = vadd.f32 %v498, %v663
        %v696 = vadd.f32 %v499, %v664
        %v697 = vadd.f32 %v500, %v665
        %v698 = vadd.f32 %v501, %v666
        %v699 = vadd.f32 %v502, %v667
        %v700 = vadd.f32 %v503, %v668
        %v701 = vadd.f32 %v504, %v669
        %v702 = vadd.f32 %v505, %v670
        %v703 = vadd.f32 %v506, %v671
        %v704 = vadd.f32 %v507, %v672
        %v705 = vadd.f32 %v508, %v673
        %v706 = vadd.f32 %v509, %v674
        %v707 = vadd.f32 %v510, %v675
        %v708 = vadd.f32 %v511, %v676
        %v709 = vadd.f32 %v512, %v677
        %v710 = vadd.f32 %v513, %v678
        %v711 = vadd.f32 %v514, %v679
        %v712 = vadd.f32 %v515, %v680
        %v713 = vadd.f32 %v516, %v681
        %v714 = vadd.f32 %v517, %v682
        %v715 = vadd.f32 %v518, %v683
        %v716 = vadd.f32 %v519, %v684
        %v717 = vadd.f32 %v520, %v685
        %v718 = vld [vmem:[%s1 + $0x2] sm:$0x1]
        %719 = vset.pattern.permute.xlu0 2
        %720 = vperm.xlu0 %719, %v292
        %v721 = vpop.permute.xlu0 %720
        %723 = vset.pattern.permute.xlu0 2
        %724 = vperm.xlu0 %723, %v293
        %v725 = vpop.permute.xlu0 %724
        %727 = vset.pattern.permute.xlu0 2
        %728 = vperm.xlu0 %727, %v294
        %v729 = vpop.permute.xlu0 %728
        %731 = vset.pattern.permute.xlu0 2
        %732 = vperm.xlu0 %731, %v295
        %v733 = vpop.permute.xlu0 %732
        %735 = vset.pattern.permute.xlu0 2
        %736 = vperm.xlu0 %735, %v296
        %v737 = vpop.permute.xlu0 %736
        %739 = vset.pattern.permute.xlu0 2
        %740 = vperm.xlu0 %739, %v297
        %v741 = vpop.permute.xlu0 %740
        %743 = vset.pattern.permute.xlu0 2
        %744 = vperm.xlu0 %743, %v298
        %v745 = vpop.permute.xlu0 %744
        %747 = vset.pattern.permute.xlu0 2
        %748 = vperm.xlu0 %747, %v299
        %v749 = vpop.permute.xlu0 %748
        %751 = vset.pattern.permute.xlu0 2
        %752 = vperm.xlu0 %751, %v300
        %v753 = vpop.permute.xlu0 %752
        %755 = vset.pattern.permute.xlu0 2
        %756 = vperm.xlu0 %755, %v301
        %v757 = vpop.permute.xlu0 %756
        %759 = vset.pattern.permute.xlu0 2
        %760 = vperm.xlu0 %759, %v302
        %v761 = vpop.permute.xlu0 %760
        %763 = vset.pattern.permute.xlu0 2
        %764 = vperm.xlu0 %763, %v303
        %v765 = vpop.permute.xlu0 %764
        %767 = vset.pattern.permute.xlu0 2
        %768 = vperm.xlu0 %767, %v304
        %v769 = vpop.permute.xlu0 %768
        %771 = vset.pattern.permute.xlu0 2
        %772 = vperm.xlu0 %771, %v305
        %v773 = vpop.permute.xlu0 %772
        %775 = vset.pattern.permute.xlu0 2
        %776 = vperm.xlu0 %775, %v306
        %v777 = vpop.permute.xlu0 %776
        %779 = vset.pattern.permute.xlu0 2
        %780 = vperm.xlu0 %779, %v307
        %v781 = vpop.permute.xlu0 %780
        %783 = vset.pattern.permute.xlu0 2
        %784 = vperm.xlu0 %783, %v308
        %v785 = vpop.permute.xlu0 %784
        %787 = vset.pattern.permute.xlu0 2
        %788 = vperm.xlu0 %787, %v309
        %v789 = vpop.permute.xlu0 %788
        %791 = vset.pattern.permute.xlu0 2
        %792 = vperm.xlu0 %791, %v310
        %v793 = vpop.permute.xlu0 %792
        %795 = vset.pattern.permute.xlu0 2
        %796 = vperm.xlu0 %795, %v311
        %v797 = vpop.permute.xlu0 %796
        %799 = vset.pattern.permute.xlu0 2
        %800 = vperm.xlu0 %799, %v312
        %v801 = vpop.permute.xlu0 %800
        %803 = vset.pattern.permute.xlu0 2
        %804 = vperm.xlu0 %803, %v313
        %v805 = vpop.permute.xlu0 %804
        %807 = vset.pattern.permute.xlu0 2
        %808 = vperm.xlu0 %807, %v314
        %v809 = vpop.permute.xlu0 %808
        %811 = vset.pattern.permute.xlu0 2
        %812 = vperm.xlu0 %811, %v315
        %v813 = vpop.permute.xlu0 %812
        %815 = vset.pattern.permute.xlu0 2
        %816 = vperm.xlu0 %815, %v316
        %v817 = vpop.permute.xlu0 %816
        %819 = vset.pattern.permute.xlu0 2
        %820 = vperm.xlu0 %819, %v317
        %v821 = vpop.permute.xlu0 %820
        %823 = vset.pattern.permute.xlu0 2
        %824 = vperm.xlu0 %823, %v318
        %v825 = vpop.permute.xlu0 %824
        %827 = vset.pattern.permute.xlu0 2
        %828 = vperm.xlu0 %827, %v319
        %v829 = vpop.permute.xlu0 %828
        %831 = vset.pattern.permute.xlu0 2
        %832 = vperm.xlu0 %831, %v320
        %v833 = vpop.permute.xlu0 %832
        %835 = vset.pattern.permute.xlu0 2
        %836 = vperm.xlu0 %835, %v321
        %v837 = vpop.permute.xlu0 %836
        %839 = vset.pattern.permute.xlu0 2
        %840 = vperm.xlu0 %839, %v322
        %v841 = vpop.permute.xlu0 %840
        %843 = vset.pattern.permute.xlu0 2
        %844 = vperm.xlu0 %843, %v323
        %v845 = vpop.permute.xlu0 %844
        %v847 = vlaneseq
        %v848 = vshrl.u32 %v847, 7
        %v849 = vsub.s32 0, %v848
        %v850 = vrot.slane %v718, %v849
        %v851 = vmul.f32 %v721, %v850
        %v852 = vmul.f32 %v725, %v850
        %v853 = vmul.f32 %v729, %v850
        %v854 = vmul.f32 %v733, %v850
        %v855 = vmul.f32 %v737, %v850
        %v856 = vmul.f32 %v741, %v850
        %v857 = vmul.f32 %v745, %v850
        %v858 = vmul.f32 %v749, %v850
        %v859 = vmul.f32 %v753, %v850
        %v860 = vmul.f32 %v757, %v850
        %v861 = vmul.f32 %v761, %v850
        %v862 = vmul.f32 %v765, %v850
        %v863 = vmul.f32 %v769, %v850
        %v864 = vmul.f32 %v773, %v850
        %v865 = vmul.f32 %v777, %v850
        %v866 = vmul.f32 %v781, %v850
        %v867 = vmul.f32 %v785, %v850
        %v868 = vmul.f32 %v789, %v850
        %v869 = vmul.f32 %v793, %v850
        %v870 = vmul.f32 %v797, %v850
        %v871 = vmul.f32 %v801, %v850
        %v872 = vmul.f32 %v805, %v850
        %v873 = vmul.f32 %v809, %v850
        %v874 = vmul.f32 %v813, %v850
        %v875 = vmul.f32 %v817, %v850
        %v876 = vmul.f32 %v821, %v850
        %v877 = vmul.f32 %v825, %v850
        %v878 = vmul.f32 %v829, %v850
        %v879 = vmul.f32 %v833, %v850
        %v880 = vmul.f32 %v837, %v850
        %v881 = vmul.f32 %v841, %v850
        %v882 = vmul.f32 %v845, %v850
        %v883 = vadd.f32 %v686, %v851
        %v884 = vadd.f32 %v687, %v852
        %v885 = vadd.f32 %v688, %v853
        %v886 = vadd.f32 %v689, %v854
        %v887 = vadd.f32 %v690, %v855
        %v888 = vadd.f32 %v691, %v856
        %v889 = vadd.f32 %v692, %v857
        %v890 = vadd.f32 %v693, %v858
        %v891 = vadd.f32 %v694, %v859
        %v892 = vadd.f32 %v695, %v860
        %v893 = vadd.f32 %v696, %v861
        %v894 = vadd.f32 %v697, %v862
        %v895 = vadd.f32 %v698, %v863
        %v896 = vadd.f32 %v699, %v864
        %v897 = vadd.f32 %v700, %v865
        %v898 = vadd.f32 %v701, %v866
        %v899 = vadd.f32 %v702, %v867
        %v900 = vadd.f32 %v703, %v868
        %v901 = vadd.f32 %v704, %v869
        %v902 = vadd.f32 %v705, %v870
        %v903 = vadd.f32 %v706, %v871
        %v904 = vadd.f32 %v707, %v872
        %v905 = vadd.f32 %v708, %v873
        %v906 = vadd.f32 %v709, %v874
        %v907 = vadd.f32 %v710, %v875
        %v908 = vadd.f32 %v711, %v876
        %v909 = vadd.f32 %v712, %v877
        %v910 = vadd.f32 %v713, %v878
        %v911 = vadd.f32 %v714, %v879
        %v912 = vadd.f32 %v715, %v880
        %v913 = vadd.f32 %v716, %v881
        %v914 = vadd.f32 %v717, %v882
        %v915 = vld [vmem:[%s1 + $0x3] sm:$0x1]
        %916 = vset.pattern.permute.xlu0 3
        %917 = vperm.xlu0 %916, %v292
        %v918 = vpop.permute.xlu0 %917
        %920 = vset.pattern.permute.xlu0 3
        %921 = vperm.xlu0 %920, %v293
        %v922 = vpop.permute.xlu0 %921
        %924 = vset.pattern.permute.xlu0 3
        %925 = vperm.xlu0 %924, %v294
        %v926 = vpop.permute.xlu0 %925
        %928 = vset.pattern.permute.xlu0 3
        %929 = vperm.xlu0 %928, %v295
        %v930 = vpop.permute.xlu0 %929
        %932 = vset.pattern.permute.xlu0 3
        %933 = vperm.xlu0 %932, %v296
        %v934 = vpop.permute.xlu0 %933
        %936 = vset.pattern.permute.xlu0 3
        %937 = vperm.xlu0 %936, %v297
        %v938 = vpop.permute.xlu0 %937
        %940 = vset.pattern.permute.xlu0 3
        %941 = vperm.xlu0 %940, %v298
        %v942 = vpop.permute.xlu0 %941
        %944 = vset.pattern.permute.xlu0 3
        %945 = vperm.xlu0 %944, %v299
        %v946 = vpop.permute.xlu0 %945
        %948 = vset.pattern.permute.xlu0 3
        %949 = vperm.xlu0 %948, %v300
        %v950 = vpop.permute.xlu0 %949
        %952 = vset.pattern.permute.xlu0 3
        %953 = vperm.xlu0 %952, %v301
        %v954 = vpop.permute.xlu0 %953
        %956 = vset.pattern.permute.xlu0 3
        %957 = vperm.xlu0 %956, %v302
        %v958 = vpop.permute.xlu0 %957
        %960 = vset.pattern.permute.xlu0 3
        %961 = vperm.xlu0 %960, %v303
        %v962 = vpop.permute.xlu0 %961
        %964 = vset.pattern.permute.xlu0 3
        %965 = vperm.xlu0 %964, %v304
        %v966 = vpop.permute.xlu0 %965
        %968 = vset.pattern.permute.xlu0 3
        %969 = vperm.xlu0 %968, %v305
        %v970 = vpop.permute.xlu0 %969
        %972 = vset.pattern.permute.xlu0 3
        %973 = vperm.xlu0 %972, %v306
        %v974 = vpop.permute.xlu0 %973
        %976 = vset.pattern.permute.xlu0 3
        %977 = vperm.xlu0 %976, %v307
        %v978 = vpop.permute.xlu0 %977
        %980 = vset.pattern.permute.xlu0 3
        %981 = vperm.xlu0 %980, %v308
        %v982 = vpop.permute.xlu0 %981
        %984 = vset.pattern.permute.xlu0 3
        %985 = vperm.xlu0 %984, %v309
        %v986 = vpop.permute.xlu0 %985
        %988 = vset.pattern.permute.xlu0 3
        %989 = vperm.xlu0 %988, %v310
        %v990 = vpop.permute.xlu0 %989
        %992 = vset.pattern.permute.xlu0 3
        %993 = vperm.xlu0 %992, %v311
        %v994 = vpop.permute.xlu0 %993
        %996 = vset.pattern.permute.xlu0 3
        %997 = vperm.xlu0 %996, %v312
        %v998 = vpop.permute.xlu0 %997
        %1000 = vset.pattern.permute.xlu0 3
        %1001 = vperm.xlu0 %1000, %v313
        %v1002 = vpop.permute.xlu0 %1001
        %1004 = vset.pattern.permute.xlu0 3
        %1005 = vperm.xlu0 %1004, %v314
        %v1006 = vpop.permute.xlu0 %1005
        %1008 = vset.pattern.permute.xlu0 3
        %1009 = vperm.xlu0 %1008, %v315
        %v1010 = vpop.permute.xlu0 %1009
        %1012 = vset.pattern.permute.xlu0 3
        %1013 = vperm.xlu0 %1012, %v316
        %v1014 = vpop.permute.xlu0 %1013
        %1016 = vset.pattern.permute.xlu0 3
        %1017 = vperm.xlu0 %1016, %v317
        %v1018 = vpop.permute.xlu0 %1017
        %1020 = vset.pattern.permute.xlu0 3
        %1021 = vperm.xlu0 %1020, %v318
        %v1022 = vpop.permute.xlu0 %1021
        %1024 = vset.pattern.permute.xlu0 3
        %1025 = vperm.xlu0 %1024, %v319
        %v1026 = vpop.permute.xlu0 %1025
        %1028 = vset.pattern.permute.xlu0 3
        %1029 = vperm.xlu0 %1028, %v320
        %v1030 = vpop.permute.xlu0 %1029
        %1032 = vset.pattern.permute.xlu0 3
        %1033 = vperm.xlu0 %1032, %v321
        %v1034 = vpop.permute.xlu0 %1033
        %1036 = vset.pattern.permute.xlu0 3
        %1037 = vperm.xlu0 %1036, %v322
        %v1038 = vpop.permute.xlu0 %1037
        %1040 = vset.pattern.permute.xlu0 3
        %1041 = vperm.xlu0 %1040, %v323
        %v1042 = vpop.permute.xlu0 %1041
        %v1044 = vlaneseq
        %v1045 = vshrl.u32 %v1044, 7
        %v1046 = vsub.s32 0, %v1045
        %v1047 = vrot.slane %v915, %v1046
        %v1048 = vmul.f32 %v918, %v1047
        %v1049 = vmul.f32 %v922, %v1047
        %v1050 = vmul.f32 %v926, %v1047
        %v1051 = vmul.f32 %v930, %v1047
        %v1052 = vmul.f32 %v934, %v1047
        %v1053 = vmul.f32 %v938, %v1047
        %v1054 = vmul.f32 %v942, %v1047
        %v1055 = vmul.f32 %v946, %v1047
        %v1056 = vmul.f32 %v950, %v1047
        %v1057 = vmul.f32 %v954, %v1047
        %v1058 = vmul.f32 %v958, %v1047
        %v1059 = vmul.f32 %v962, %v1047
        %v1060 = vmul.f32 %v966, %v1047
        %v1061 = vmul.f32 %v970, %v1047
        %v1062 = vmul.f32 %v974, %v1047
        %v1063 = vmul.f32 %v978, %v1047
        %v1064 = vmul.f32 %v982, %v1047
        %v1065 = vmul.f32 %v986, %v1047
        %v1066 = vmul.f32 %v990, %v1047
        %v1067 = vmul.f32 %v994, %v1047
        %v1068 = vmul.f32 %v998, %v1047
        %v1069 = vmul.f32 %v1002, %v1047
        %v1070 = vmul.f32 %v1006, %v1047
        %v1071 = vmul.f32 %v1010, %v1047
        %v1072 = vmul.f32 %v1014, %v1047
        %v1073 = vmul.f32 %v1018, %v1047
        %v1074 = vmul.f32 %v1022, %v1047
        %v1075 = vmul.f32 %v1026, %v1047
        %v1076 = vmul.f32 %v1030, %v1047
        %v1077 = vmul.f32 %v1034, %v1047
        %v1078 = vmul.f32 %v1038, %v1047
        %v1079 = vmul.f32 %v1042, %v1047
        %v1080 = vadd.f32 %v883, %v1048
        %v1081 = vadd.f32 %v884, %v1049
        %v1082 = vadd.f32 %v885, %v1050
        %v1083 = vadd.f32 %v886, %v1051
        %v1084 = vadd.f32 %v887, %v1052
        %v1085 = vadd.f32 %v888, %v1053
        %v1086 = vadd.f32 %v889, %v1054
        %v1087 = vadd.f32 %v890, %v1055
        %v1088 = vadd.f32 %v891, %v1056
        %v1089 = vadd.f32 %v892, %v1057
        %v1090 = vadd.f32 %v893, %v1058
        %v1091 = vadd.f32 %v894, %v1059
        %v1092 = vadd.f32 %v895, %v1060
        %v1093 = vadd.f32 %v896, %v1061
        %v1094 = vadd.f32 %v897, %v1062
        %v1095 = vadd.f32 %v898, %v1063
        %v1096 = vadd.f32 %v899, %v1064
        %v1097 = vadd.f32 %v900, %v1065
        %v1098 = vadd.f32 %v901, %v1066
        %v1099 = vadd.f32 %v902, %v1067
        %v1100 = vadd.f32 %v903, %v1068
        %v1101 = vadd.f32 %v904, %v1069
        %v1102 = vadd.f32 %v905, %v1070
        %v1103 = vadd.f32 %v906, %v1071
        %v1104 = vadd.f32 %v907, %v1072
        %v1105 = vadd.f32 %v908, %v1073
        %v1106 = vadd.f32 %v909, %v1074
        %v1107 = vadd.f32 %v910, %v1075
        %v1108 = vadd.f32 %v911, %v1076
        %v1109 = vadd.f32 %v912, %v1077
        %v1110 = vadd.f32 %v913, %v1078
        %v1111 = vadd.f32 %v914, %v1079
        %v1112 = vld [vmem:[%s2] sm:$0x1]
        %v1114 = vlaneseq
        %v1115 = vshrl.u32 %v1114, 7
        %v1116 = vsub.s32 0, %v1115
        %v1117 = vrot.slane %v1112, %v1116
        %v1119 = vadd.f32 %v1080, %v1117
        %v1120 = vadd.f32 %v1081, %v1117
        %v1121 = vadd.f32 %v1082, %v1117
        %v1122 = vadd.f32 %v1083, %v1117
        %v1123 = vadd.f32 %v1084, %v1117
        %v1124 = vadd.f32 %v1085, %v1117
        %v1125 = vadd.f32 %v1086, %v1117
        %v1126 = vadd.f32 %v1087, %v1117
        %v1127 = vadd.f32 %v1088, %v1117
        %v1128 = vadd.f32 %v1089, %v1117
        %v1129 = vadd.f32 %v1090, %v1117
        %v1130 = vadd.f32 %v1091, %v1117
        %v1131 = vadd.f32 %v1092, %v1117
        %v1132 = vadd.f32 %v1093, %v1117
        %v1133 = vadd.f32 %v1094, %v1117
        %v1134 = vadd.f32 %v1095, %v1117
        %v1135 = vadd.f32 %v1096, %v1117
        %v1136 = vadd.f32 %v1097, %v1117
        %v1137 = vadd.f32 %v1098, %v1117
        %v1138 = vadd.f32 %v1099, %v1117
        %v1139 = vadd.f32 %v1100, %v1117
        %v1140 = vadd.f32 %v1101, %v1117
        %v1141 = vadd.f32 %v1102, %v1117
        %v1142 = vadd.f32 %v1103, %v1117
        %v1143 = vadd.f32 %v1104, %v1117
        %v1144 = vadd.f32 %v1105, %v1117
        %v1145 = vadd.f32 %v1106, %v1117
        %v1146 = vadd.f32 %v1107, %v1117
        %v1147 = vadd.f32 %v1108, %v1117
        %v1148 = vadd.f32 %v1109, %v1117
        %v1149 = vadd.f32 %v1110, %v1117
        %v1150 = vadd.f32 %v1111, %v1117
        %v1151 = vmax.f32 %v1119, 0.0
        %v1152 = vmax.f32 %v1120, 0.0
        %v1153 = vmax.f32 %v1121, 0.0
        %v1154 = vmax.f32 %v1122, 0.0
        %v1155 = vmax.f32 %v1123, 0.0
        %v1156 = vmax.f32 %v1124, 0.0
        %v1157 = vmax.f32 %v1125, 0.0
        %v1158 = vmax.f32 %v1126, 0.0
        %v1159 = vmax.f32 %v1127, 0.0
        %v1160 = vmax.f32 %v1128, 0.0
        %v1161 = vmax.f32 %v1129, 0.0
        %v1162 = vmax.f32 %v1130, 0.0
        %v1163 = vmax.f32 %v1131, 0.0
        %v1164 = vmax.f32 %v1132, 0.0
        %v1165 = vmax.f32 %v1133, 0.0
        %v1166 = vmax.f32 %v1134, 0.0
        %v1167 = vmax.f32 %v1135, 0.0
        %v1168 = vmax.f32 %v1136, 0.0
        %v1169 = vmax.f32 %v1137, 0.0
        %v1170 = vmax.f32 %v1138, 0.0
        %v1171 = vmax.f32 %v1139, 0.0
        %v1172 = vmax.f32 %v1140, 0.0
        %v1173 = vmax.f32 %v1141, 0.0
        %v1174 = vmax.f32 %v1142, 0.0
        %v1175 = vmax.f32 %v1143, 0.0
        %v1176 = vmax.f32 %v1144, 0.0
        %v1177 = vmax.f32 %v1145, 0.0
        %v1178 = vmax.f32 %v1146, 0.0
        %v1179 = vmax.f32 %v1147, 0.0
        %v1180 = vmax.f32 %v1148, 0.0
        %v1181 = vmax.f32 %v1149, 0.0
        %v1182 = vmax.f32 %v1150, 0.0
        %v1183 = vpack.c.bf16 %v1152, %v1151
        %v1184 = vpack.c.bf16 %v1154, %v1153
        %v1185 = vpack.c.bf16 %v1156, %v1155
        %v1186 = vpack.c.bf16 %v1158, %v1157
        %v1187 = vpack.c.bf16 %v1160, %v1159
        %v1188 = vpack.c.bf16 %v1162, %v1161
        %v1189 = vpack.c.bf16 %v1164, %v1163
        %v1190 = vpack.c.bf16 %v1166, %v1165
        %v1191 = vpack.c.bf16 %v1168, %v1167
        %v1192 = vpack.c.bf16 %v1170, %v1169
        %v1193 = vpack.c.bf16 %v1172, %v1171
        %v1194 = vpack.c.bf16 %v1174, %v1173
        %v1195 = vpack.c.bf16 %v1176, %v1175
        %v1196 = vpack.c.bf16 %v1178, %v1177
        %v1197 = vpack.c.bf16 %v1180, %v1179
        %v1198 = vpack.c.bf16 %v1182, %v1181
        %v1199 = vld [vmem:[%s3] sm:$0xf]
        %v1200 = vld [vmem:[%s3 + $0x4] sm:$0xf]
        %v1201 = vld [vmem:[%s3 + $0x8] sm:$0xf]
        %v1202 = vld [vmem:[%s3 + $0xc] sm:$0xf]
        %v1203 = vld [vmem:[%s3 + $0x10] sm:$0xf]
        %v1204 = vld [vmem:[%s3 + $0x14] sm:$0xf]
        %v1205 = vld [vmem:[%s3 + $0x18] sm:$0xf]
        %v1206 = vld [vmem:[%s3 + $0x1c] sm:$0xf]
        %v1207 = vld [vmem:[%s3 + $0x20] sm:$0xf]
        %v1208 = vld [vmem:[%s3 + $0x24] sm:$0xf]
        %v1209 = vld [vmem:[%s3 + $0x28] sm:$0xf]
        %v1210 = vld [vmem:[%s3 + $0x2c] sm:$0xf]
        %v1211 = vld [vmem:[%s3 + $0x30] sm:$0xf]
        %v1212 = vld [vmem:[%s3 + $0x34] sm:$0xf]
        %v1213 = vld [vmem:[%s3 + $0x38] sm:$0xf]
        %v1214 = vld [vmem:[%s3 + $0x3c] sm:$0xf]
        %v1215 = vld [vmem:[%s4] sm:$0x1]
        %v1217 = vlaneseq
        %v1218 = vshrl.u32 %v1217, 7
        %v1219 = vsub.s32 0, %v1218
        %v1220 = vrot.slane %v1215, %v1219
        %v1238 = vunpack.c.l.b16 %v1199
        %v1239 = vunpack.c.l.b16 %v1200
        %v1240 = vunpack.c.l.b16 %v1201
        %v1241 = vunpack.c.l.b16 %v1202
        %v1242 = vunpack.c.l.b16 %v1203
        %v1243 = vunpack.c.l.b16 %v1204
        %v1244 = vunpack.c.l.b16 %v1205
        %v1245 = vunpack.c.l.b16 %v1206
        %v1246 = vunpack.c.l.b16 %v1207
        %v1247 = vunpack.c.l.b16 %v1208
        %v1248 = vunpack.c.l.b16 %v1209
        %v1249 = vunpack.c.l.b16 %v1210
        %v1250 = vunpack.c.l.b16 %v1211
        %v1251 = vunpack.c.l.b16 %v1212
        %v1252 = vunpack.c.l.b16 %v1213
        %v1253 = vunpack.c.l.b16 %v1214
        %v1254 = vpack.c.b16 %v1239, %v1238
        %v1255 = vpack.c.b16 %v1241, %v1240
        %v1256 = vpack.c.b16 %v1243, %v1242
        %v1257 = vpack.c.b16 %v1245, %v1244
        %v1258 = vpack.c.b16 %v1247, %v1246
        %v1259 = vpack.c.b16 %v1249, %v1248
        %v1260 = vpack.c.b16 %v1251, %v1250
        %v1261 = vpack.c.b16 %v1253, %v1252
        %1270 = vmatprep.subr.bf16.mxu0 0
        %1271 = vmatpush1.bf16.msra.mxu0 %v1254
        %1272 = vmatprep.subr.bf16.mxu0 0
        %1273 = vmatpush1.bf16.msra.mxu0 %v1255
        %1274 = vmatprep.subr.bf16.mxu0 0
        %1275 = vmatpush1.bf16.msra.mxu0 %v1256
        %1276 = vmatprep.subr.bf16.mxu0 0
        %1277 = vmatpush1.bf16.msra.mxu0 %v1257
        %1278 = vmatprep.subr.bf16.mxu0 0
        %1279 = vmatpush1.bf16.msra.mxu0 %v1258
        %1280 = vmatprep.subr.bf16.mxu0 0
        %1281 = vmatpush1.bf16.msra.mxu0 %v1259
        %1282 = vmatprep.subr.bf16.mxu0 0
        %1283 = vmatpush1.bf16.msra.mxu0 %v1260
        %1284 = vmatprep.subr.bf16.mxu0 0
        %1285 = vmatpush1.bf16.msra.mxu0 %v1261
        %1286 = vmatprep.subr.bf16.mxu0 0
        %1287 = vmatpush1.bf16.msra.mxu0 0
        %1288 = vmatprep.subr.bf16.mxu0 0
        %1289 = vmatpush1.bf16.msra.mxu0 0
        %1290 = vmatprep.subr.bf16.mxu0 0
        %1291 = vmatpush1.bf16.msra.mxu0 0
        %1292 = vmatprep.subr.bf16.mxu0 0
        %1293 = vmatpush1.bf16.msra.mxu0 0
        %1294 = vmatprep.subr.bf16.mxu0 0
        %1295 = vmatpush1.bf16.msra.mxu0 0
        %1296 = vmatprep.subr.bf16.mxu0 0
        %1297 = vmatpush1.bf16.msra.mxu0 0
        %1298 = vmatprep.subr.bf16.mxu0 0
        %1299 = vmatpush1.bf16.msra.mxu0 0
        %1300 = vmatprep.subr.bf16.mxu0 0
        %1301 = vmatpush1.bf16.msra.mxu0 0
        %1302 = vmatprep.mubr.bf16.mxu0 0
        %1303 = vmatmul.mubr.bf16.gmra.mrb[0].mxu0 %v1183
        %v1304 = vpop.f32.mrb[0].mxu0
        %v1305 = vadd.f32 %v1220, %v1304
        %v1306 = vpop.f32.mrb[0].mxu0
        %v1307 = vpop.f32.mrb[0].mxu0
        %v1308 = vadd.f32 %v1220, %v1307
        %v1309 = vpop.f32.mrb[0].mxu0
        %1310 = vmatprep.mubr.bf16.mxu0 0
        %1311 = vmatmul.mubr.bf16.gmra.mrb[0].mxu0 %v1184
        %v1312 = vpop.f32.mrb[0].mxu0
        %v1313 = vadd.f32 %v1220, %v1312
        %v1314 = vpop.f32.mrb[0].mxu0
        %v1315 = vpop.f32.mrb[0].mxu0
        %v1316 = vadd.f32 %v1220, %v1315
        %v1317 = vpop.f32.mrb[0].mxu0
        %1318 = vmatprep.mubr.bf16.mxu0 0
        %1319 = vmatmul.mubr.bf16.gmra.mrb[0].mxu0 %v1185
        %v1320 = vpop.f32.mrb[0].mxu0
        %v1321 = vadd.f32 %v1220, %v1320
        %v1322 = vpop.f32.mrb[0].mxu0
        %v1323 = vpop.f32.mrb[0].mxu0
        %v1324 = vadd.f32 %v1220, %v1323
        %v1325 = vpop.f32.mrb[0].mxu0
        %1326 = vmatprep.mubr.bf16.mxu0 0
        %1327 = vmatmul.mubr.bf16.gmra.mrb[0].mxu0 %v1186
        %v1328 = vpop.f32.mrb[0].mxu0
        %v1329 = vadd.f32 %v1220, %v1328
        %v1330 = vpop.f32.mrb[0].mxu0
        %v1331 = vpop.f32.mrb[0].mxu0
        %v1332 = vadd.f32 %v1220, %v1331
        %v1333 = vpop.f32.mrb[0].mxu0
        %1334 = vmatprep.mubr.bf16.mxu0 0
        %1335 = vmatmul.mubr.bf16.gmra.mrb[0].mxu0 %v1187
        %v1336 = vpop.f32.mrb[0].mxu0
        %v1337 = vadd.f32 %v1220, %v1336
        %v1338 = vpop.f32.mrb[0].mxu0
        %v1339 = vpop.f32.mrb[0].mxu0
        %v1340 = vadd.f32 %v1220, %v1339
        %v1341 = vpop.f32.mrb[0].mxu0
        %1342 = vmatprep.mubr.bf16.mxu0 0
        %1343 = vmatmul.mubr.bf16.gmra.mrb[0].mxu0 %v1188
        %v1344 = vpop.f32.mrb[0].mxu0
        %v1345 = vadd.f32 %v1220, %v1344
        %v1346 = vpop.f32.mrb[0].mxu0
        %v1347 = vpop.f32.mrb[0].mxu0
        %v1348 = vadd.f32 %v1220, %v1347
        %v1349 = vpop.f32.mrb[0].mxu0
        %1350 = vmatprep.mubr.bf16.mxu0 0
        %1351 = vmatmul.mubr.bf16.gmra.mrb[0].mxu0 %v1189
        %v1352 = vpop.f32.mrb[0].mxu0
        %v1353 = vadd.f32 %v1220, %v1352
        %v1354 = vpop.f32.mrb[0].mxu0
        %v1355 = vpop.f32.mrb[0].mxu0
        %v1356 = vadd.f32 %v1220, %v1355
        %v1357 = vpop.f32.mrb[0].mxu0
        %1358 = vmatprep.mubr.bf16.mxu0 0
        %1359 = vmatmul.mubr.bf16.gmra.mrb[0].mxu0 %v1190
        %v1360 = vpop.f32.mrb[0].mxu0
        %v1361 = vadd.f32 %v1220, %v1360
        %v1362 = vpop.f32.mrb[0].mxu0
        %v1363 = vpop.f32.mrb[0].mxu0
        %v1364 = vadd.f32 %v1220, %v1363
        %v1365 = vpop.f32.mrb[0].mxu0
        %1366 = vmatprep.mubr.bf16.mxu0 0
        %1367 = vmatmul.mubr.bf16.gmra.mrb[0].mxu0 %v1191
        %v1368 = vpop.f32.mrb[0].mxu0
        %v1369 = vadd.f32 %v1220, %v1368
        %v1370 = vpop.f32.mrb[0].mxu0
        %v1371 = vpop.f32.mrb[0].mxu0
        %v1372 = vadd.f32 %v1220, %v1371
        %v1373 = vpop.f32.mrb[0].mxu0
        %1374 = vmatprep.mubr.bf16.mxu0 0
        %1375 = vmatmul.mubr.bf16.gmra.mrb[0].mxu0 %v1192
        %v1376 = vpop.f32.mrb[0].mxu0
        %v1377 = vadd.f32 %v1220, %v1376
        %v1378 = vpop.f32.mrb[0].mxu0
        %v1379 = vpop.f32.mrb[0].mxu0
        %v1380 = vadd.f32 %v1220, %v1379
        %v1381 = vpop.f32.mrb[0].mxu0
        %1382 = vmatprep.mubr.bf16.mxu0 0
        %1383 = vmatmul.mubr.bf16.gmra.mrb[0].mxu0 %v1193
        %v1384 = vpop.f32.mrb[0].mxu0
        %v1385 = vadd.f32 %v1220, %v1384
        %v1386 = vpop.f32.mrb[0].mxu0
        %v1387 = vpop.f32.mrb[0].mxu0
        %v1388 = vadd.f32 %v1220, %v1387
        %v1389 = vpop.f32.mrb[0].mxu0
        %1390 = vmatprep.mubr.bf16.mxu0 0
        %1391 = vmatmul.mubr.bf16.gmra.mrb[0].mxu0 %v1194
        %v1392 = vpop.f32.mrb[0].mxu0
        %v1393 = vadd.f32 %v1220, %v1392
        %v1394 = vpop.f32.mrb[0].mxu0
        %v1395 = vpop.f32.mrb[0].mxu0
        %v1396 = vadd.f32 %v1220, %v1395
        %v1397 = vpop.f32.mrb[0].mxu0
        %1398 = vmatprep.mubr.bf16.mxu0 0
        %1399 = vmatmul.mubr.bf16.gmra.mrb[0].mxu0 %v1195
        %v1400 = vpop.f32.mrb[0].mxu0
        %v1401 = vadd.f32 %v1220, %v1400
        %v1402 = vpop.f32.mrb[0].mxu0
        %v1403 = vpop.f32.mrb[0].mxu0
        %v1404 = vadd.f32 %v1220, %v1403
        %v1405 = vpop.f32.mrb[0].mxu0
        %1406 = vmatprep.mubr.bf16.mxu0 0
        %1407 = vmatmul.mubr.bf16.gmra.mrb[0].mxu0 %v1196
        %v1408 = vpop.f32.mrb[0].mxu0
        %v1409 = vadd.f32 %v1220, %v1408
        %v1410 = vpop.f32.mrb[0].mxu0
        %v1411 = vpop.f32.mrb[0].mxu0
        %v1412 = vadd.f32 %v1220, %v1411
        %v1413 = vpop.f32.mrb[0].mxu0
        %1414 = vmatprep.mubr.bf16.mxu0 0
        %1415 = vmatmul.mubr.bf16.gmra.mrb[0].mxu0 %v1197
        %v1416 = vpop.f32.mrb[0].mxu0
        %v1417 = vadd.f32 %v1220, %v1416
        %v1418 = vpop.f32.mrb[0].mxu0
        %v1419 = vpop.f32.mrb[0].mxu0
        %v1420 = vadd.f32 %v1220, %v1419
        %v1421 = vpop.f32.mrb[0].mxu0
        %1422 = vmatprep.mubr.bf16.mxu0 0
        %1423 = vmatmul.mubr.bf16.gmra.mrb[0].mxu0 %v1198
        %v1424 = vpop.f32.mrb[0].mxu0
        %v1425 = vadd.f32 %v1220, %v1424
        %v1426 = vpop.f32.mrb[0].mxu0
        %v1427 = vpop.f32.mrb[0].mxu0
        %v1428 = vadd.f32 %v1220, %v1427
        %v1429 = vpop.f32.mrb[0].mxu0
        %1430 = vdwg.mxu0
        %1431 = vst [vmem:[%s273] sm:$0xff] %v1305
        %1432 = vst [vmem:[%s273 + $0x8] sm:$0xff] %v1308
        %1433 = vst [vmem:[%s273 + $0x10] sm:$0xff] %v1313
        %1434 = vst [vmem:[%s273 + $0x18] sm:$0xff] %v1316
        %1435 = vst [vmem:[%s273 + $0x20] sm:$0xff] %v1321
        %1436 = vst [vmem:[%s273 + $0x28] sm:$0xff] %v1324
        %1437 = vst [vmem:[%s273 + $0x30] sm:$0xff] %v1329
        %1438 = vst [vmem:[%s273 + $0x38] sm:$0xff] %v1332
        %1439 = vst [vmem:[%s273 + $0x40] sm:$0xff] %v1337
        %1440 = vst [vmem:[%s273 + $0x48] sm:$0xff] %v1340
        %1441 = vst [vmem:[%s273 + $0x50] sm:$0xff] %v1345
        %1442 = vst [vmem:[%s273 + $0x58] sm:$0xff] %v1348
        %1443 = vst [vmem:[%s273 + $0x60] sm:$0xff] %v1353
        %1444 = vst [vmem:[%s273 + $0x68] sm:$0xff] %v1356
        %1445 = vst [vmem:[%s273 + $0x70] sm:$0xff] %v1361
        %1446 = vst [vmem:[%s273 + $0x78] sm:$0xff] %v1364
        %1447 = vst [vmem:[%s273 + $0x80] sm:$0xff] %v1369
        %1448 = vst [vmem:[%s273 + $0x88] sm:$0xff] %v1372
        %1449 = vst [vmem:[%s273 + $0x90] sm:$0xff] %v1377
        %1450 = vst [vmem:[%s273 + $0x98] sm:$0xff] %v1380
        %1451 = vst [vmem:[%s273 + $0xa0] sm:$0xff] %v1385
        %1452 = vst [vmem:[%s273 + $0xa8] sm:$0xff] %v1388
        %1453 = vst [vmem:[%s273 + $0xb0] sm:$0xff] %v1393
        %1454 = vst [vmem:[%s273 + $0xb8] sm:$0xff] %v1396
        %1455 = vst [vmem:[%s273 + $0xc0] sm:$0xff] %v1401
        %1456 = vst [vmem:[%s273 + $0xc8] sm:$0xff] %v1404
        %1457 = vst [vmem:[%s273 + $0xd0] sm:$0xff] %v1409
        %1458 = vst [vmem:[%s273 + $0xd8] sm:$0xff] %v1412
        %1459 = vst [vmem:[%s273 + $0xe0] sm:$0xff] %v1417
        %1460 = vst [vmem:[%s273 + $0xe8] sm:$0xff] %v1420
        %1461 = vst [vmem:[%s273 + $0xf0] sm:$0xff] %v1425
        %1462 = vst [vmem:[%s273 + $0xf8] sm:$0xff] %v1428
        %p1463 = scmp.eq.s32.totalorder %s29, 0
        // Predicated region
        $region41: #{tpu_custom_call.1} parent=39 // pred_check
          %p1464 = pneg %p1463
        $region42: #{tpu_custom_call.1} parent=39 // pred_check_branch
          %1466 = sbr.rel (%p1464) target = $region44
        $region43: #{tpu_custom_call.1} parent=39 // pred_region
          %1467 = vst [vmem:[%s279] sm:$0x1] 0.0
        $region44: #{tpu_custom_call.1} parent=39 // pred_fallthru
          _
        %v1468 = vld [vmem:[%s279] sm:$0x1]
        %v1469 = vadd.f32 %v1151, %v1152
        %v1470 = vadd.f32 %v1469, %v1153
        %v1471 = vadd.f32 %v1470, %v1154
        %v1472 = vadd.f32 %v1471, %v1155
        %v1473 = vadd.f32 %v1472, %v1156
        %v1474 = vadd.f32 %v1473, %v1157
        %v1475 = vadd.f32 %v1474, %v1158
        %v1476 = vadd.f32 %v1475, %v1159
        %v1477 = vadd.f32 %v1476, %v1160
        %v1478 = vadd.f32 %v1477, %v1161
        %v1479 = vadd.f32 %v1478, %v1162
        %v1480 = vadd.f32 %v1479, %v1163
        %v1481 = vadd.f32 %v1480, %v1164
        %v1482 = vadd.f32 %v1481, %v1165
        %v1483 = vadd.f32 %v1482, %v1166
        %v1484 = vadd.f32 %v1483, %v1167
        %v1485 = vadd.f32 %v1484, %v1168
        %v1486 = vadd.f32 %v1485, %v1169
        %v1487 = vadd.f32 %v1486, %v1170
        %v1488 = vadd.f32 %v1487, %v1171
        %v1489 = vadd.f32 %v1488, %v1172
        %v1490 = vadd.f32 %v1489, %v1173
        %v1491 = vadd.f32 %v1490, %v1174
        %v1492 = vadd.f32 %v1491, %v1175
        %v1493 = vadd.f32 %v1492, %v1176
        %v1494 = vadd.f32 %v1493, %v1177
        %v1495 = vadd.f32 %v1494, %v1178
        %v1496 = vadd.f32 %v1495, %v1179
        %v1497 = vadd.f32 %v1496, %v1180
        %v1498 = vadd.f32 %v1497, %v1181
        %v1499 = vadd.f32 %v1498, %v1182
        %v1500 = vrot.slane %v1499, 4
        %v1501 = vadd.f32 %v1499, %v1500
        %v1502 = vrot.slane %v1501, 2
        %v1503 = vadd.f32 %v1501, %v1502
        %v1504 = vrot.slane %v1503, 1
        %v1505 = vadd.f32 %v1503, %v1504
        %v1506 = vadd.f32 %v1468, %v1505
        %1507 = vst [vmem:[%s279] sm:$0x1] %v1506
        %s1508 = sand.u32 %s158, 1
        %s1509 = scalar_lea.sflag [#allocation3], %s1508
        %s1510 = sand.u32 %s158, 1
        %s1511 = smul.addr %s1510, 256
        %s1512 = scalar_lea.vmem [#allocation2], %s1511
        %s1513 = sand.u32 %s184, 1
        %s1514 = scalar_lea.sflag [#allocation5], %s1513
        %s1515 = sand.u32 %s184, 1
        %s1516 = scalar_lea.vmem [#allocation4], %s1515
        // Predicated region
        $region45: #{tpu_custom_call.1} parent=39 // pred_check
          %p1517 = pneg %p168
        $region46: #{tpu_custom_call.1} parent=39 // pred_check_branch
          %1519 = sbr.rel (%p1517) target = $region48
        $region47: #{tpu_custom_call.1} parent=39 // pred_region
          %s1520 = smul.u32 32, %s29
          %s1522 = ssub.s32 4096, 4096
          %1523 = vsyncadd %s1509, %s1522
          %s1524 = smul.addr %s28, 32
          %s1525 = sadd.s32 %s1520, %s1524
          %s1526 = smul.addr %s1525, 128
          %s1527 = scalar_lea.hbm %s5, %s1526
          %s1528 = sshll.u32 %s1512, 4
          %s1529 = int_to_ptr.vmem [resolvable:$true] %s1528
          %1534 = dma.vmem_to_hbm [thread:$0]  %s1529, 4096, %s1527, %s1509, 128, 128, 8
        $region48: #{tpu_custom_call.1} parent=39 // pred_fallthru
          _
        // Predicated region
        $region49: #{tpu_custom_call.1} parent=39 // pred_check
          %p1535 = pneg %p194
        $region50: #{tpu_custom_call.1} parent=39 // pred_check_branch
          %1537 = sbr.rel (%p1535) target = $region52
        $region51: #{tpu_custom_call.1} parent=39 // pred_region
          %s1539 = ssub.s32 16, 16
          %1540 = vsyncadd %s1514, %s1539
          %s1541 = smul.addr %s28, 16
          %s1542 = scalar_lea.hbm %s6, %s1541
          %s1544 = sshll.u32 %s1516, 4
          %s1545 = int_to_ptr.vmem [resolvable:$true] %s1544
          %1547 = dma.vmem_to_hbm [thread:$0]  %s1545, 16, %s1542, %s1514
        $region52: #{tpu_custom_call.1} parent=39 // pred_fallthru
          _
      $region40: #{tpu_custom_call.1} parent=5 // pred_fallthru
        _
      %p1548 = scmp.le.s32.totalorder 2, %s19
      // Predicated region
      $region53: #{tpu_custom_call.1} parent=5 // pred_check
        %p1549 = pneg %p1548
      $region54: #{tpu_custom_call.1} parent=5 // pred_check_branch
        %1551 = sbr.rel (%p1549) target = $region56
      $region55: #{tpu_custom_call.1} parent=5 // pred_region
        %s1552 = ssub.s32 %s19, 2
        // Predicated region
        $region57: #{tpu_custom_call.1} parent=55 // pred_check
          %p1553 = pneg %p174
        $region58: #{tpu_custom_call.1} parent=55 // pred_check_branch
          %1555 = sbr.rel (%p1553) target = $region60
        $region59: #{tpu_custom_call.1} parent=55 // pred_region
          %s1556 = sand.u32 %s159, 1
          %s1557 = scalar_lea.sflag [#allocation3], %s1556
          %s1558 = sand.u32 %s159, 1
          %s1559 = smul.addr %s1558, 256
          %s1560 = scalar_lea.vmem [#allocation2], %s1559
          %1561 = dma.done %s1557, 4096
        $region60: #{tpu_custom_call.1} parent=55 // pred_fallthru
          _
        // Predicated region
        $region61: #{tpu_custom_call.1} parent=55 // pred_check
          %p1562 = pneg %p200
        $region62: #{tpu_custom_call.1} parent=55 // pred_check_branch
          %1564 = sbr.rel (%p1562) target = $region64
        $region63: #{tpu_custom_call.1} parent=55 // pred_region
          %s1565 = sand.u32 %s185, 1
          %s1566 = scalar_lea.sflag [#allocation5], %s1565
          %s1567 = sand.u32 %s185, 1
          %s1568 = scalar_lea.vmem [#allocation4], %s1567
          %1569 = dma.done %s1566, 16
        $region64: #{tpu_custom_call.1} parent=55 // pred_fallthru
          _
      $region56: #{tpu_custom_call.1} parent=5 // pred_fallthru
        _
    $region6: #{tpu_custom_call.1} parent=1 // loop_footer
      %s23 = sadd.s32 1, %s19
    $region7: #{tpu_custom_call.1} parent=1 // loop_footer_branch
      %18 = sbr.rel target = $region3
    $region8: #{tpu_custom_call.1} parent=1 // loop_exit
      _
    %1570 = vsyncpa [#allocation3], 1
    %s1571 = scalar_lea.sflag [#allocation3], 1
    %1572 = vsyncpa %s1571, 1
    %1573 = vsyncpa [#allocation5], 1
    %s1574 = scalar_lea.sflag [#allocation5], 1
    %1575 = vsyncpa %s1574, 1

// kernel: tpu_custom_call.1
$region0: #{tpu_custom_call.1}
  #allocation0 [shape = 'u32[]', space=smem, size = 0x4, offset = 0x4, fixed_abs, tag = 'smem constant byte address 0x4 - core index']
  #allocation1 [shape = 'u32[144,128]{1,0:T(1,128)}', space=vmem, size = 0x12000, scoped, tag = 'internal scratch']
  %s0 = inlined_call_operand.vmem [shape: f32[2,256,4], index: 0, kind: input, shape index: {}]
  %s1 = inlined_call_operand.vmem [shape: f32[4,128], index: 1, kind: input, shape index: {}]
  %s2 = inlined_call_operand.vmem [shape: f32[1,128], index: 2, kind: input, shape index: {}]
  %s3 = inlined_call_operand.vmem [shape: bf16[128,128], index: 3, kind: input, shape index: {}]
  %s4 = inlined_call_operand.vmem [shape: f32[1,128], index: 4, kind: input, shape index: {}]
  %s5 = inlined_call_operand.hbm [shape: f32[2,256,128], index: 5, kind: output, shape index: {0}]
  %s6 = inlined_call_operand.hbm [shape: f32[2,1,128], index: 6, kind: output, shape index: {1}]
  %7 = xla_tuple %s5, %s6
  %s8 = sld [smem:[#allocation0]]
  $region65: #{tpu_custom_call.1} parent=0
    _
  %s10 = ssub.s32 1, %s8
  %s11 = scalar_select 0, %s10, %s8
  $region1: #{tpu_custom_call.1} parent=0
    #allocation2 [shape = 'u8[262144]{0}', space=vmem, size = 0x40000, scoped, tag = 'output window, operand 0']
    #allocation3 [shape = 's32[2]{0}', space=sflag, size = 0x8, scoped, tag = 'scoped memory for tpu_custom_call.1']
    #allocation4 [shape = 'u8[1024]{0}', space=vmem, size = 0x400, scoped, tag = 'output window, operand 1']
    #allocation5 [shape = 's32[2]{0}', space=sflag, size = 0x8, scoped, tag = 'scoped memory for tpu_custom_call.1']
    %12 = vsyncpa [#allocation3], 0
    %s13 = scalar_lea.sflag [#allocation3], 1
    %14 = vsyncpa %s13, 0
    %15 = vsyncpa [#allocation5], 0
    %s16 = scalar_lea.sflag [#allocation5], 1
    %17 = vsyncpa %s16, 0
    loop: start=0, step=1, limit=4
    $region2: #{tpu_custom_call.1} parent=1 // loop_pre_header
      _
    $region3: #{tpu_custom_call.1} parent=1 // loop_header
      %s19 = sphi 0, %s23
      %p20 = scmp.ge.s32.totalorder %s19, 4
      %s26 = sphi 0, %s38
      %s27 = sphi 0, %s34
      %s28 = sphi 0, %s26
      %s29 = sphi 0, %s27
      %s30 = sphi 0, %s28
      %s31 = sphi 0, %s29
      %s43 = sphi 0, %s45
      %s46 = sphi 0, %s43
      %s47 = sphi 0, %s46
      %s63 = sphi 0, %s47
      %s67 = sphi 0, %s67
      %s69 = sphi 0, %s67
      %s70 = sphi 0, %s69
      %s84 = sphi 0, %s70
      %s88 = sphi 0, %s88
      %s90 = sphi 0, %s88
      %s91 = sphi 0, %s90
      %s105 = sphi 0, %s91
      %s109 = sphi 0, %s109
      %s111 = sphi 0, %s109
      %s112 = sphi 0, %s111
      %s126 = sphi 0, %s112
      %s130 = sphi 0, %s130
      %s132 = sphi 0, %s130
      %s133 = sphi 0, %s132
      %s147 = sphi 0, %s133
      %s155 = sphi 0, %s157
      %s158 = sphi 0, %s155
      %s159 = sphi 0, %s158
      %s175 = sphi 0, %s159
      %s181 = sphi 0, %s183
      %s184 = sphi 0, %s181
      %s185 = sphi 0, %s184
      %s201 = sphi 0, %s185
    $region4: #{tpu_custom_call.1} parent=1 // loop_header_branch
      %22 = sbr.rel (%p20) target = $region8
    $region5: #{tpu_custom_call.1} parent=1 // loop_body
      %s24 = ssub.s32 %s19, 1
      %s25 = ssub.s32 %s19, 2
      %s32 = sadd.s32 1, %s27
      %p33 = scmp.ge.s32.totalorder %s32, 1
      %s34 = scalar_select %p33, 0, %s32
      %s35 = sadd.s32 1, %s26
      %s36 = scalar_select %p33, %s35, %s26
      %p37 = scmp.ge.s32.totalorder %s36, 2
      %s38 = scalar_select %p37, 0, %s36
      %s39 = ssub.s32 %s26, %s38
      %s40 = ssub.s32 %s27, %s34
      %s41 = sor.u32 %s39, %s40
      %p42 = scmp.eq.s32.totalorder %s41, 0
      %s44 = sadd.s32 %s43, 1
      %s45 = scalar_select %p42, %s43, %s44
      %p48 = pneg %p42
      %p49 = scmp.eq.s32.totalorder %s19, 1
      %p50 = por %p48, %p49
      %p51 = scmp.ne.s32.totalorder %s43, %s46
      %p52 = scmp.eq.s32.totalorder %s19, 0
      %p53 = por %p51, %p52
      %p54 = scmp.ne.s32.totalorder %s43, %s46
      %p55 = scmp.eq.s32.totalorder %s24, 1
      %p56 = por %p54, %p55
      %p57 = scmp.ne.s32.totalorder %s46, %s47
      %p58 = scmp.eq.s32.totalorder %s24, 0
      %p59 = por %p57, %p58
      %p60 = scmp.ne.s32.totalorder %s46, %s47
      %p61 = scmp.eq.s32.totalorder %s25, 1
      %p62 = por %p60, %p61
      %p64 = scmp.ne.s32.totalorder %s47, %s63
      %p65 = scmp.eq.s32.totalorder %s25, 0
      %p66 = por %p64, %p65
      %s68 = sadd.s32 %s67, 1
      %p71 = scmp.eq.s32.totalorder %s19, 1
      %p72 = scmp.ne.s32.totalorder %s67, %s69
      %p73 = scmp.eq.s32.totalorder %s19, 0
      %p74 = por %p72, %p73
      %p75 = scmp.ne.s32.totalorder %s67, %s69
      %p76 = scmp.eq.s32.totalorder %s24, 1
      %p77 = por %p75, %p76
      %p78 = scmp.ne.s32.totalorder %s69, %s70
      %p79 = scmp.eq.s32.totalorder %s24, 0
      %p80 = por %p78, %p79
      %p81 = scmp.ne.s32.totalorder %s69, %s70
      %p82 = scmp.eq.s32.totalorder %s25, 1
      %p83 = por %p81, %p82
      %p85 = scmp.ne.s32.totalorder %s70, %s84
      %p86 = scmp.eq.s32.totalorder %s25, 0
      %p87 = por %p85, %p86
      %s89 = sadd.s32 %s88, 1
      %p92 = scmp.eq.s32.totalorder %s19, 1
      %p93 = scmp.ne.s32.totalorder %s88, %s90
      %p94 = scmp.eq.s32.totalorder %s19, 0
      %p95 = por %p93, %p94
      %p96 = scmp.ne.s32.totalorder %s88, %s90
      %p97 = scmp.eq.s32.totalorder %s24, 1
      %p98 = por %p96, %p97
      %p99 = scmp.ne.s32.totalorder %s90, %s91
      %p100 = scmp.eq.s32.totalorder %s24, 0
      %p101 = por %p99, %p100
      %p102 = scmp.ne.s32.totalorder %s90, %s91
      %p103 = scmp.eq.s32.totalorder %s25, 1
      %p104 = por %p102, %p103
      %p106 = scmp.ne.s32.totalorder %s91, %s105
      %p107 = scmp.eq.s32.totalorder %s25, 0
      %p108 = por %p106, %p107
      %s110 = sadd.s32 %s109, 1
      %p113 = scmp.eq.s32.totalorder %s19, 1
      %p114 = scmp.ne.s32.totalorder %s109, %s111
      %p115 = scmp.eq.s32.totalorder %s19, 0
      %p116 = por %p114, %p115
      %p117 = scmp.ne.s32.totalorder %s109, %s111
      %p118 = scmp.eq.s32.totalorder %s24, 1
      %p119 = por %p117, %p118
      %p120 = scmp.ne.s32.totalorder %s111, %s112
      %p121 = scmp.eq.s32.totalorder %s24, 0
      %p122 = por %p120, %p121
      %p123 = scmp.ne.s32.totalorder %s111, %s112
      %p124 = scmp.eq.s32.totalorder %s25, 1
      %p125 = por %p123, %p124
      %p127 = scmp.ne.s32.totalorder %s112, %s126
      %p128 = scmp.eq.s32.totalorder %s25, 0
      %p129 = por %p127, %p128
      %s131 = sadd.s32 %s130, 1
      %p134 = scmp.eq.s32.totalorder %s19, 1
      %p135 = scmp.ne.s32.totalorder %s130, %s132
      %p136 = scmp.eq.s32.totalorder %s19, 0
      %p137 = por %p135, %p136
      %p138 = scmp.ne.s32.totalorder %s130, %s132
      %p139 = scmp.eq.s32.totalorder %s24, 1
      %p140 = por %p138, %p139
      %p141 = scmp.ne.s32.totalorder %s132, %s133
      %p142 = scmp.eq.s32.totalorder %s24, 0
      %p143 = por %p141, %p142
      %p144 = scmp.ne.s32.totalorder %s132, %s133
      %p145 = scmp.eq.s32.totalorder %s25, 1
      %p146 = por %p144, %p145
      %p148 = scmp.ne.s32.totalorder %s133, %s147
      %p149 = scmp.eq.s32.totalorder %s25, 0
      %p150 = por %p148, %p149
      %s151 = ssub.s32 %s26, %s38
      %s152 = ssub.s32 %s27, %s34
      %s153 = sor.u32 %s151, %s152
      %p154 = scmp.eq.s32.totalorder %s153, 0
      %s156 = sadd.s32 %s155, 1
      %s157 = scalar_select %p154, %s155, %s156
      %p160 = pneg %p154
      %p161 = scmp.eq.s32.totalorder %s19, 1
      %p162 = por %p160, %p161
      %p163 = scmp.ne.s32.totalorder %s155, %s158
      %p164 = scmp.eq.s32.totalorder %s19, 0
      %p165 = por %p163, %p164
      %p166 = scmp.ne.s32.totalorder %s155, %s158
      %p167 = scmp.eq.s32.totalorder %s24, 1
      %p168 = por %p166, %p167
      %p169 = scmp.ne.s32.totalorder %s158, %s159
      %p170 = scmp.eq.s32.totalorder %s24, 0
      %p171 = por %p169, %p170
      %p172 = scmp.ne.s32.totalorder %s158, %s159
      %p173 = scmp.eq.s32.totalorder %s25, 1
      %p174 = por %p172, %p173
      %p176 = scmp.ne.s32.totalorder %s159, %s175
      %p177 = scmp.eq.s32.totalorder %s25, 0
      %p178 = por %p176, %p177
      %s179 = ssub.s32 %s26, %s38
      %p180 = scmp.eq.s32.totalorder %s179, 0
      %s182 = sadd.s32 %s181, 1
      %s183 = scalar_select %p180, %s181, %s182
      %p186 = pneg %p180
      %p187 = scmp.eq.s32.totalorder %s19, 1
      %p188 = por %p186, %p187
      %p189 = scmp.ne.s32.totalorder %s181, %s184
      %p190 = scmp.eq.s32.totalorder %s19, 0
      %p191 = por %p189, %p190
      %p192 = scmp.ne.s32.totalorder %s181, %s184
      %p193 = scmp.eq.s32.totalorder %s24, 1
      %p194 = por %p192, %p193
      %p195 = scmp.ne.s32.totalorder %s184, %s185
      %p196 = scmp.eq.s32.totalorder %s24, 0
      %p197 = por %p195, %p196
      %p198 = scmp.ne.s32.totalorder %s184, %s185
      %p199 = scmp.eq.s32.totalorder %s25, 1
      %p200 = por %p198, %p199
      %p202 = scmp.ne.s32.totalorder %s185, %s201
      %p203 = scmp.eq.s32.totalorder %s25, 0
      %p204 = por %p202, %p203
      %p205 = scmp.le.s32.totalorder 1, %s19
      %p206 = scmp.lt.s32.totalorder %s19, 3
      %p207 = pnand %p205, %p206
      %p208 = pneg %p207
      // Predicated region
      $region9: #{tpu_custom_call.1} parent=5 // pred_check
        _
      $region10: #{tpu_custom_call.1} parent=5 // pred_check_branch
        %210 = sbr.rel (%p207) target = $region12
      $region11: #{tpu_custom_call.1} parent=5 // pred_region
        %s211 = ssub.s32 %s19, 1
        // Predicated region
        $region13: #{tpu_custom_call.1} parent=11 // pred_check
          %p212 = pneg %p80
        $region14: #{tpu_custom_call.1} parent=11 // pred_check_branch
          %214 = sbr.rel (%p212) target = $region16
        $region15: #{tpu_custom_call.1} parent=11 // pred_region
          _
        $region16: #{tpu_custom_call.1} parent=11 // pred_fallthru
          _
        // Predicated region
        $region17: #{tpu_custom_call.1} parent=11 // pred_check
          %p215 = pneg %p101
        $region18: #{tpu_custom_call.1} parent=11 // pred_check_branch
          %217 = sbr.rel (%p215) target = $region20
        $region19: #{tpu_custom_call.1} parent=11 // pred_region
          _
        $region20: #{tpu_custom_call.1} parent=11 // pred_fallthru
          _
        // Predicated region
        $region21: #{tpu_custom_call.1} parent=11 // pred_check
          %p218 = pneg %p122
        $region22: #{tpu_custom_call.1} parent=11 // pred_check_branch
          %220 = sbr.rel (%p218) target = $region24
        $region23: #{tpu_custom_call.1} parent=11 // pred_region
          _
        $region24: #{tpu_custom_call.1} parent=11 // pred_fallthru
          _
        // Predicated region
        $region25: #{tpu_custom_call.1} parent=11 // pred_check
          %p221 = pneg %p143
        $region26: #{tpu_custom_call.1} parent=11 // pred_check_branch
          %223 = sbr.rel (%p221) target = $region28
        $region27: #{tpu_custom_call.1} parent=11 // pred_region
          _
        $region28: #{tpu_custom_call.1} parent=11 // pred_fallthru
          _
      $region12: #{tpu_custom_call.1} parent=5 // pred_fallthru
        _
      %p224 = scmp.lt.s32.totalorder %s19, 2
      // Predicated region
      $region29: #{tpu_custom_call.1} parent=5 // pred_check
        %p225 = pneg %p224
      $region30: #{tpu_custom_call.1} parent=5 // pred_check_branch
        %227 = sbr.rel (%p225) target = $region32
      $region31: #{tpu_custom_call.1} parent=5 // pred_region
        // Predicated region
        $region33: #{tpu_custom_call.1} parent=31 // pred_check
          %p228 = pneg %p53
        $region34: #{tpu_custom_call.1} parent=31 // pred_check_branch
          %230 = sbr.rel (%p228) target = $region36
        $region35: #{tpu_custom_call.1} parent=31 // pred_region
          %s231 = smul.u32 32, %s27
          %p232 = scmp.lt.s32.totalorder %s26, 1
          %s233 = scalar_select %p232, %s26, 1
          %p234 = scmp.lt.s32.totalorder %s231, 31
          %s235 = scalar_select %p234, %s231, 31
          %s236 = smul.addr %s233, 32
          %s237 = sadd.s32 %s235, %s236
          %s238 = smul.addr %s237, 8
          %s239 = scalar_lea.vmem %s0, %s238
          %s240 = smul.u32 32, %s27
        $region36: #{tpu_custom_call.1} parent=31 // pred_fallthru
          _
      $region32: #{tpu_custom_call.1} parent=5 // pred_fallthru
        _
      %p241 = scmp.le.s32.totalorder 1, %s19
      %p242 = scmp.lt.s32.totalorder %s19, 3
      %p243 = pnand %p241, %p242
      %p244 = pneg %p243
      // Predicated region
      $region37: #{tpu_custom_call.1} parent=5 // pred_check
        _
      $region38: #{tpu_custom_call.1} parent=5 // pred_check_branch
        %246 = sbr.rel (%p243) target = $region40
      $region39: #{tpu_custom_call.1} parent=5 // pred_region
        %s247 = ssub.s32 %s19, 1
        %s248 = smul.u32 32, %s29
        %p249 = scmp.lt.s32.totalorder %s28, 1
        %s250 = scalar_select %p249, %s28, 1
        %p251 = scmp.lt.s32.totalorder %s248, 31
        %s252 = scalar_select %p251, %s248, 31
        %s253 = smul.addr %s250, 32
        %s254 = sadd.s32 %s252, %s253
        %s255 = smul.addr %s254, 8
        %s256 = scalar_lea.vmem %s0, %s255
        %p257 = pneg %p59
        %p258 = pneg %p56
        %p259 = pneg %p80
        %p260 = pneg %p77
        %p261 = pneg %p101
        %p262 = pneg %p98
        %p263 = pneg %p122
        %p264 = pneg %p119
        %p265 = pneg %p143
        %p266 = pneg %p140
        %p267 = pneg %p171
        %p268 = pneg %p168
        %s269 = sand.u32 %s158, 1
        %s270 = scalar_lea.sflag [#allocation3], %s269
        %s271 = sand.u32 %s158, 1
        %s272 = smul.addr %s271, 256
        %s273 = scalar_lea.vmem [#allocation2], %s272
        %p274 = pneg %p197
        %p275 = pneg %p194
        %s276 = sand.u32 %s184, 1
        %s277 = scalar_lea.sflag [#allocation5], %s276
        %s278 = sand.u32 %s184, 1
        %s279 = scalar_lea.vmem [#allocation4], %s278
        %s280 = smul.u32 32, %s29
        %p281 = scmp.lt.s32.totalorder %s28, 1
        %s282 = scalar_select %p281, %s28, 1
        %p283 = scmp.lt.s32.totalorder %s280, 31
        %s284 = scalar_select %p283, %s280, 31
        %s285 = smul.addr %s282, 32
        %s286 = sadd.s32 %s284, %s285
        %s287 = smul.addr %s286, 8
        %s288 = scalar_lea.vmem %s0, %s287
        %s289 = smul.u32 32, %s29
        %s290 = smul.u32 32, %s29
        %v292 = vld [vmem:[%s288] sm:$0xff]
        %v293 = vld [vmem:[%s288 + $0x8] sm:$0xff]
        %v294 = vld [vmem:[%s288 + $0x10] sm:$0xff]
        %v295 = vld [vmem:[%s288 + $0x18] sm:$0xff]
        %v296 = vld [vmem:[%s288 + $0x20] sm:$0xff]
        %v297 = vld [vmem:[%s288 + $0x28] sm:$0xff]
        %v298 = vld [vmem:[%s288 + $0x30] sm:$0xff]
        %v299 = vld [vmem:[%s288 + $0x38] sm:$0xff]
        %v300 = vld [vmem:[%s288 + $0x40] sm:$0xff]
        %v301 = vld [vmem:[%s288 + $0x48] sm:$0xff]
        %v302 = vld [vmem:[%s288 + $0x50] sm:$0xff]
        %v303 = vld [vmem:[%s288 + $0x58] sm:$0xff]
        %v304 = vld [vmem:[%s288 + $0x60] sm:$0xff]
        %v305 = vld [vmem:[%s288 + $0x68] sm:$0xff]
        %v306 = vld [vmem:[%s288 + $0x70] sm:$0xff]
        %v307 = vld [vmem:[%s288 + $0x78] sm:$0xff]
        %v308 = vld [vmem:[%s288 + $0x80] sm:$0xff]
        %v309 = vld [vmem:[%s288 + $0x88] sm:$0xff]
        %v310 = vld [vmem:[%s288 + $0x90] sm:$0xff]
        %v311 = vld [vmem:[%s288 + $0x98] sm:$0xff]
        %v312 = vld [vmem:[%s288 + $0xa0] sm:$0xff]
        %v313 = vld [vmem:[%s288 + $0xa8] sm:$0xff]
        %v314 = vld [vmem:[%s288 + $0xb0] sm:$0xff]
        %v315 = vld [vmem:[%s288 + $0xb8] sm:$0xff]
        %v316 = vld [vmem:[%s288 + $0xc0] sm:$0xff]
        %v317 = vld [vmem:[%s288 + $0xc8] sm:$0xff]
        %v318 = vld [vmem:[%s288 + $0xd0] sm:$0xff]
        %v319 = vld [vmem:[%s288 + $0xd8] sm:$0xff]
        %v320 = vld [vmem:[%s288 + $0xe0] sm:$0xff]
        %v321 = vld [vmem:[%s288 + $0xe8] sm:$0xff]
        %v322 = vld [vmem:[%s288 + $0xf0] sm:$0xff]
        %v323 = vld [vmem:[%s288 + $0xf8] sm:$0xff]
        %v324 = vld [vmem:[%s1] sm:$0x1]
        %326 = vset.pattern.permute.xlu0 0
        %327 = vperm.xlu0 %326, %v292
        %v328 = vpop.permute.xlu0 %327
        %331 = vset.pattern.permute.xlu0 0
        %332 = vperm.xlu0 %331, %v293
        %v333 = vpop.permute.xlu0 %332
        %336 = vset.pattern.permute.xlu0 0
        %337 = vperm.xlu0 %336, %v294
        %v338 = vpop.permute.xlu0 %337
        %341 = vset.pattern.permute.xlu0 0
        %342 = vperm.xlu0 %341, %v295
        %v343 = vpop.permute.xlu0 %342
        %346 = vset.pattern.permute.xlu0 0
        %347 = vperm.xlu0 %346, %v296
        %v348 = vpop.permute.xlu0 %347
        %351 = vset.pattern.permute.xlu0 0
        %352 = vperm.xlu0 %351, %v297
        %v353 = vpop.permute.xlu0 %352
        %356 = vset.pattern.permute.xlu0 0
        %357 = vperm.xlu0 %356, %v298
        %v358 = vpop.permute.xlu0 %357
        %361 = vset.pattern.permute.xlu0 0
        %362 = vperm.xlu0 %361, %v299
        %v363 = vpop.permute.xlu0 %362
        %366 = vset.pattern.permute.xlu0 0
        %367 = vperm.xlu0 %366, %v300
        %v368 = vpop.permute.xlu0 %367
        %371 = vset.pattern.permute.xlu0 0
        %372 = vperm.xlu0 %371, %v301
        %v373 = vpop.permute.xlu0 %372
        %376 = vset.pattern.permute.xlu0 0
        %377 = vperm.xlu0 %376, %v302
        %v378 = vpop.permute.xlu0 %377
        %381 = vset.pattern.permute.xlu0 0
        %382 = vperm.xlu0 %381, %v303
        %v383 = vpop.permute.xlu0 %382
        %386 = vset.pattern.permute.xlu0 0
        %387 = vperm.xlu0 %386, %v304
        %v388 = vpop.permute.xlu0 %387
        %391 = vset.pattern.permute.xlu0 0
        %392 = vperm.xlu0 %391, %v305
        %v393 = vpop.permute.xlu0 %392
        %396 = vset.pattern.permute.xlu0 0
        %397 = vperm.xlu0 %396, %v306
        %v398 = vpop.permute.xlu0 %397
        %401 = vset.pattern.permute.xlu0 0
        %402 = vperm.xlu0 %401, %v307
        %v403 = vpop.permute.xlu0 %402
        %406 = vset.pattern.permute.xlu0 0
        %407 = vperm.xlu0 %406, %v308
        %v408 = vpop.permute.xlu0 %407
        %411 = vset.pattern.permute.xlu0 0
        %412 = vperm.xlu0 %411, %v309
        %v413 = vpop.permute.xlu0 %412
        %416 = vset.pattern.permute.xlu0 0
        %417 = vperm.xlu0 %416, %v310
        %v418 = vpop.permute.xlu0 %417
        %421 = vset.pattern.permute.xlu0 0
        %422 = vperm.xlu0 %421, %v311
        %v423 = vpop.permute.xlu0 %422
        %426 = vset.pattern.permute.xlu0 0
        %427 = vperm.xlu0 %426, %v312
        %v428 = vpop.permute.xlu0 %427
        %431 = vset.pattern.permute.xlu0 0
        %432 = vperm.xlu0 %431, %v313
        %v433 = vpop.permute.xlu0 %432
        %436 = vset.pattern.permute.xlu0 0
        %437 = vperm.xlu0 %436, %v314
        %v438 = vpop.permute.xlu0 %437
        %441 = vset.pattern.permute.xlu0 0
        %442 = vperm.xlu0 %441, %v315
        %v443 = vpop.permute.xlu0 %442
        %446 = vset.pattern.permute.xlu0 0
        %447 = vperm.xlu0 %446, %v316
        %v448 = vpop.permute.xlu0 %447
        %451 = vset.pattern.permute.xlu0 0
        %452 = vperm.xlu0 %451, %v317
        %v453 = vpop.permute.xlu0 %452
        %456 = vset.pattern.permute.xlu0 0
        %457 = vperm.xlu0 %456, %v318
        %v458 = vpop.permute.xlu0 %457
        %461 = vset.pattern.permute.xlu0 0
        %462 = vperm.xlu0 %461, %v319
        %v463 = vpop.permute.xlu0 %462
        %466 = vset.pattern.permute.xlu0 0
        %467 = vperm.xlu0 %466, %v320
        %v468 = vpop.permute.xlu0 %467
        %471 = vset.pattern.permute.xlu0 0
        %472 = vperm.xlu0 %471, %v321
        %v473 = vpop.permute.xlu0 %472
        %476 = vset.pattern.permute.xlu0 0
        %477 = vperm.xlu0 %476, %v322
        %v478 = vpop.permute.xlu0 %477
        %481 = vset.pattern.permute.xlu0 0
        %482 = vperm.xlu0 %481, %v323
        %v483 = vpop.permute.xlu0 %482
        %v485 = vlaneseq
        %v486 = vshrl.u32 %v485, 7
        %v487 = vsub.s32 0, %v486
        %v488 = vrot.slane %v324, %v487
        %v489 = vmul.f32 %v328, %v488
        %v490 = vmul.f32 %v333, %v488
        %v491 = vmul.f32 %v338, %v488
        %v492 = vmul.f32 %v343, %v488
        %v493 = vmul.f32 %v348, %v488
        %v494 = vmul.f32 %v353, %v488
        %v495 = vmul.f32 %v358, %v488
        %v496 = vmul.f32 %v363, %v488
        %v497 = vmul.f32 %v368, %v488
        %v498 = vmul.f32 %v373, %v488
        %v499 = vmul.f32 %v378, %v488
        %v500 = vmul.f32 %v383, %v488
        %v501 = vmul.f32 %v388, %v488
        %v502 = vmul.f32 %v393, %v488
        %v503 = vmul.f32 %v398, %v488
        %v504 = vmul.f32 %v403, %v488
        %v505 = vmul.f32 %v408, %v488
        %v506 = vmul.f32 %v413, %v488
        %v507 = vmul.f32 %v418, %v488
        %v508 = vmul.f32 %v423, %v488
        %v509 = vmul.f32 %v428, %v488
        %v510 = vmul.f32 %v433, %v488
        %v511 = vmul.f32 %v438, %v488
        %v512 = vmul.f32 %v443, %v488
        %v513 = vmul.f32 %v448, %v488
        %v514 = vmul.f32 %v453, %v488
        %v515 = vmul.f32 %v458, %v488
        %v516 = vmul.f32 %v463, %v488
        %v517 = vmul.f32 %v468, %v488
        %v518 = vmul.f32 %v473, %v488
        %v519 = vmul.f32 %v478, %v488
        %v520 = vmul.f32 %v483, %v488
        %v521 = vld [vmem:[%s1 + $0x1] sm:$0x1]
        %522 = vset.pattern.permute.xlu0 1
        %523 = vperm.xlu0 %522, %v292
        %v524 = vpop.permute.xlu0 %523
        %526 = vset.pattern.permute.xlu0 1
        %527 = vperm.xlu0 %526, %v293
        %v528 = vpop.permute.xlu0 %527
        %530 = vset.pattern.permute.xlu0 1
        %531 = vperm.xlu0 %530, %v294
        %v532 = vpop.permute.xlu0 %531
        %534 = vset.pattern.permute.xlu0 1
        %535 = vperm.xlu0 %534, %v295
        %v536 = vpop.permute.xlu0 %535
        %538 = vset.pattern.permute.xlu0 1
        %539 = vperm.xlu0 %538, %v296
        %v540 = vpop.permute.xlu0 %539
        %542 = vset.pattern.permute.xlu0 1
        %543 = vperm.xlu0 %542, %v297
        %v544 = vpop.permute.xlu0 %543
        %546 = vset.pattern.permute.xlu0 1
        %547 = vperm.xlu0 %546, %v298
        %v548 = vpop.permute.xlu0 %547
        %550 = vset.pattern.permute.xlu0 1
        %551 = vperm.xlu0 %550, %v299
        %v552 = vpop.permute.xlu0 %551
        %554 = vset.pattern.permute.xlu0 1
        %555 = vperm.xlu0 %554, %v300
        %v556 = vpop.permute.xlu0 %555
        %558 = vset.pattern.permute.xlu0 1
        %559 = vperm.xlu0 %558, %v301
        %v560 = vpop.permute.xlu0 %559
        %562 = vset.pattern.permute.xlu0 1
        %563 = vperm.xlu0 %562, %v302
        %v564 = vpop.permute.xlu0 %563
        %566 = vset.pattern.permute.xlu0 1
        %567 = vperm.xlu0 %566, %v303
        %v568 = vpop.permute.xlu0 %567
        %570 = vset.pattern.permute.xlu0 1
        %571 = vperm.xlu0 %570, %v304
        %v572 = vpop.permute.xlu0 %571
        %574 = vset.pattern.permute.xlu0 1
        %575 = vperm.xlu0 %574, %v305
        %v576 = vpop.permute.xlu0 %575
        %578 = vset.pattern.permute.xlu0 1
        %579 = vperm.xlu0 %578, %v306
        %v580 = vpop.permute.xlu0 %579
        %582 = vset.pattern.permute.xlu0 1
        %583 = vperm.xlu0 %582, %v307
        %v584 = vpop.permute.xlu0 %583
        %586 = vset.pattern.permute.xlu0 1
        %587 = vperm.xlu0 %586, %v308
        %v588 = vpop.permute.xlu0 %587
        %590 = vset.pattern.permute.xlu0 1
        %591 = vperm.xlu0 %590, %v309
        %v592 = vpop.permute.xlu0 %591
        %594 = vset.pattern.permute.xlu0 1
        %595 = vperm.xlu0 %594, %v310
        %v596 = vpop.permute.xlu0 %595
        %598 = vset.pattern.permute.xlu0 1
        %599 = vperm.xlu0 %598, %v311
        %v600 = vpop.permute.xlu0 %599
        %602 = vset.pattern.permute.xlu0 1
        %603 = vperm.xlu0 %602, %v312
        %v604 = vpop.permute.xlu0 %603
        %606 = vset.pattern.permute.xlu0 1
        %607 = vperm.xlu0 %606, %v313
        %v608 = vpop.permute.xlu0 %607
        %610 = vset.pattern.permute.xlu0 1
        %611 = vperm.xlu0 %610, %v314
        %v612 = vpop.permute.xlu0 %611
        %614 = vset.pattern.permute.xlu0 1
        %615 = vperm.xlu0 %614, %v315
        %v616 = vpop.permute.xlu0 %615
        %618 = vset.pattern.permute.xlu0 1
        %619 = vperm.xlu0 %618, %v316
        %v620 = vpop.permute.xlu0 %619
        %622 = vset.pattern.permute.xlu0 1
        %623 = vperm.xlu0 %622, %v317
        %v624 = vpop.permute.xlu0 %623
        %626 = vset.pattern.permute.xlu0 1
        %627 = vperm.xlu0 %626, %v318
        %v628 = vpop.permute.xlu0 %627
        %630 = vset.pattern.permute.xlu0 1
        %631 = vperm.xlu0 %630, %v319
        %v632 = vpop.permute.xlu0 %631
        %634 = vset.pattern.permute.xlu0 1
        %635 = vperm.xlu0 %634, %v320
        %v636 = vpop.permute.xlu0 %635
        %638 = vset.pattern.permute.xlu0 1
        %639 = vperm.xlu0 %638, %v321
        %v640 = vpop.permute.xlu0 %639
        %642 = vset.pattern.permute.xlu0 1
        %643 = vperm.xlu0 %642, %v322
        %v644 = vpop.permute.xlu0 %643
        %646 = vset.pattern.permute.xlu0 1
        %647 = vperm.xlu0 %646, %v323
        %v648 = vpop.permute.xlu0 %647
        %v650 = vlaneseq
        %v651 = vshrl.u32 %v650, 7
        %v652 = vsub.s32 0, %v651
        %v653 = vrot.slane %v521, %v652
        %v654 = vmul.f32 %v524, %v653
        %v655 = vmul.f32 %v528, %v653
        %v656 = vmul.f32 %v532, %v653
        %v657 = vmul.f32 %v536, %v653
        %v658 = vmul.f32 %v540, %v653
        %v659 = vmul.f32 %v544, %v653
        %v660 = vmul.f32 %v548, %v653
        %v661 = vmul.f32 %v552, %v653
        %v662 = vmul.f32 %v556, %v653
        %v663 = vmul.f32 %v560, %v653
        %v664 = vmul.f32 %v564, %v653
        %v665 = vmul.f32 %v568, %v653
        %v666 = vmul.f32 %v572, %v653
        %v667 = vmul.f32 %v576, %v653
        %v668 = vmul.f32 %v580, %v653
        %v669 = vmul.f32 %v584, %v653
        %v670 = vmul.f32 %v588, %v653
        %v671 = vmul.f32 %v592, %v653
        %v672 = vmul.f32 %v596, %v653
        %v673 = vmul.f32 %v600, %v653
        %v674 = vmul.f32 %v604, %v653
        %v675 = vmul.f32 %v608, %v653
        %v676 = vmul.f32 %v612, %v653
        %v677 = vmul.f32 %v616, %v653
        %v678 = vmul.f32 %v620, %v653
        %v679 = vmul.f32 %v624, %v653
        %v680 = vmul.f32 %v628, %v653
        %v681 = vmul.f32 %v632, %v653
        %v682 = vmul.f32 %v636, %v653
        %v683 = vmul.f32 %v640, %v653
        %v684 = vmul.f32 %v644, %v653
        %v685 = vmul.f32 %v648, %v653
        %v686 = vadd.f32 %v489, %v654
        %v687 = vadd.f32 %v490, %v655
        %v688 = vadd.f32 %v491, %v656
        %v689 = vadd.f32 %v492, %v657
        %v690 = vadd.f32 %v493, %v658
        %v691 = vadd.f32 %v494, %v659
        %v692 = vadd.f32 %v495, %v660
        %v693 = vadd.f32 %v496, %v661
        %v694 = vadd.f32 %v497, %v662
        %v695 = vadd.f32 %v498, %v663
        %v696 = vadd.f32 %v499, %v664
        %v697 = vadd.f32 %v500, %v665
        %v698 = vadd.f32 %v501, %v666
        %v699 = vadd.f32 %v502, %v667
        %v700 = vadd.f32 %v503, %v668
        %v701 = vadd.f32 %v504, %v669
        %v702 = vadd.f32 %v505, %v670
        %v703 = vadd.f32 %v506, %v671
        %v704 = vadd.f32 %v507, %v672
        %v705 = vadd.f32 %v508, %v673
        %v706 = vadd.f32 %v509, %v674
        %v707 = vadd.f32 %v510, %v675
        %v708 = vadd.f32 %v511, %v676
        %v709 = vadd.f32 %v512, %v677
        %v710 = vadd.f32 %v513, %v678
        %v711 = vadd.f32 %v514, %v679
        %v712 = vadd.f32 %v515, %v680
        %v713 = vadd.f32 %v516, %v681
        %v714 = vadd.f32 %v517, %v682
        %v715 = vadd.f32 %v518, %v683
        %v716 = vadd.f32 %v519, %v684
        %v717 = vadd.f32 %v520, %v685
        %v718 = vld [vmem:[%s1 + $0x2] sm:$0x1]
        %719 = vset.pattern.permute.xlu0 2
        %720 = vperm.xlu0 %719, %v292
        %v721 = vpop.permute.xlu0 %720
        %723 = vset.pattern.permute.xlu0 2
        %724 = vperm.xlu0 %723, %v293
        %v725 = vpop.permute.xlu0 %724
        %727 = vset.pattern.permute.xlu0 2
        %728 = vperm.xlu0 %727, %v294
        %v729 = vpop.permute.xlu0 %728
        %731 = vset.pattern.permute.xlu0 2
        %732 = vperm.xlu0 %731, %v295
        %v733 = vpop.permute.xlu0 %732
        %735 = vset.pattern.permute.xlu0 2
        %736 = vperm.xlu0 %735, %v296
        %v737 = vpop.permute.xlu0 %736
        %739 = vset.pattern.permute.xlu0 2
        %740 = vperm.xlu0 %739, %v297
        %v741 = vpop.permute.xlu0 %740
        %743 = vset.pattern.permute.xlu0 2
        %744 = vperm.xlu0 %743, %v298
        %v745 = vpop.permute.xlu0 %744
        %747 = vset.pattern.permute.xlu0 2
        %748 = vperm.xlu0 %747, %v299
        %v749 = vpop.permute.xlu0 %748
        %751 = vset.pattern.permute.xlu0 2
        %752 = vperm.xlu0 %751, %v300
        %v753 = vpop.permute.xlu0 %752
        %755 = vset.pattern.permute.xlu0 2
        %756 = vperm.xlu0 %755, %v301
        %v757 = vpop.permute.xlu0 %756
        %759 = vset.pattern.permute.xlu0 2
        %760 = vperm.xlu0 %759, %v302
        %v761 = vpop.permute.xlu0 %760
        %763 = vset.pattern.permute.xlu0 2
        %764 = vperm.xlu0 %763, %v303
        %v765 = vpop.permute.xlu0 %764
        %767 = vset.pattern.permute.xlu0 2
        %768 = vperm.xlu0 %767, %v304
        %v769 = vpop.permute.xlu0 %768
        %771 = vset.pattern.permute.xlu0 2
        %772 = vperm.xlu0 %771, %v305
        %v773 = vpop.permute.xlu0 %772
        %775 = vset.pattern.permute.xlu0 2
        %776 = vperm.xlu0 %775, %v306
        %v777 = vpop.permute.xlu0 %776
        %779 = vset.pattern.permute.xlu0 2
        %780 = vperm.xlu0 %779, %v307
        %v781 = vpop.permute.xlu0 %780
        %783 = vset.pattern.permute.xlu0 2
        %784 = vperm.xlu0 %783, %v308
        %v785 = vpop.permute.xlu0 %784
        %787 = vset.pattern.permute.xlu0 2
        %788 = vperm.xlu0 %787, %v309
        %v789 = vpop.permute.xlu0 %788
        %791 = vset.pattern.permute.xlu0 2
        %792 = vperm.xlu0 %791, %v310
        %v793 = vpop.permute.xlu0 %792
        %795 = vset.pattern.permute.xlu0 2
        %796 = vperm.xlu0 %795, %v311
        %v797 = vpop.permute.xlu0 %796
        %799 = vset.pattern.permute.xlu0 2
        %800 = vperm.xlu0 %799, %v312
        %v801 = vpop.permute.xlu0 %800
        %803 = vset.pattern.permute.xlu0 2
        %804 = vperm.xlu0 %803, %v313
        %v805 = vpop.permute.xlu0 %804
        %807 = vset.pattern.permute.xlu0 2
        %808 = vperm.xlu0 %807, %v314
        %v809 = vpop.permute.xlu0 %808
        %811 = vset.pattern.permute.xlu0 2
        %812 = vperm.xlu0 %811, %v315
        %v813 = vpop.permute.xlu0 %812
        %815 = vset.pattern.permute.xlu0 2
        %816 = vperm.xlu0 %815, %v316
        %v817 = vpop.permute.xlu0 %816
        %819 = vset.pattern.permute.xlu0 2
        %820 = vperm.xlu0 %819, %v317
        %v821 = vpop.permute.xlu0 %820
        %823 = vset.pattern.permute.xlu0 2
        %824 = vperm.xlu0 %823, %v318
        %v825 = vpop.permute.xlu0 %824
        %827 = vset.pattern.permute.xlu0 2
        %828 = vperm.xlu0 %827, %v319
        %v829 = vpop.permute.xlu0 %828
        %831 = vset.pattern.permute.xlu0 2
        %832 = vperm.xlu0 %831, %v320
        %v833 = vpop.permute.xlu0 %832
        %835 = vset.pattern.permute.xlu0 2
        %836 = vperm.xlu0 %835, %v321
        %v837 = vpop.permute.xlu0 %836
        %839 = vset.pattern.permute.xlu0 2
        %840 = vperm.xlu0 %839, %v322
        %v841 = vpop.permute.xlu0 %840
        %843 = vset.pattern.permute.xlu0 2
        %844 = vperm.xlu0 %843, %v323
        %v845 = vpop.permute.xlu0 %844
        %v847 = vlaneseq
        %v848 = vshrl.u32 %v847, 7
        %v849 = vsub.s32 0, %v848
        %v850 = vrot.slane %v718, %v849
        %v851 = vmul.f32 %v721, %v850
        %v852 = vmul.f32 %v725, %v850
        %v853 = vmul.f32 %v729, %v850
        %v854 = vmul.f32 %v733, %v850
        %v855 = vmul.f32 %v737, %v850
        %v856 = vmul.f32 %v741, %v850
        %v857 = vmul.f32 %v745, %v850
        %v858 = vmul.f32 %v749, %v850
        %v859 = vmul.f32 %v753, %v850
        %v860 = vmul.f32 %v757, %v850
        %v861 = vmul.f32 %v761, %v850
        %v862 = vmul.f32 %v765, %v850
        %v863 = vmul.f32 %v769, %v850
        %v864 = vmul.f32 %v773, %v850
        %v865 = vmul.f32 %v777, %v850
        %v866 = vmul.f32 %v781, %v850
        %v867 = vmul.f32 %v785, %v850
        %v868 = vmul.f32 %v789, %v850
        %v869 = vmul.f32 %v793, %v850
        %v870 = vmul.f32 %v797, %v850
        %v871 = vmul.f32 %v801, %v850
        %v872 = vmul.f32 %v805, %v850
        %v873 = vmul.f32 %v809, %v850
        %v874 = vmul.f32 %v813, %v850
        %v875 = vmul.f32 %v817, %v850
        %v876 = vmul.f32 %v821, %v850
        %v877 = vmul.f32 %v825, %v850
        %v878 = vmul.f32 %v829, %v850
        %v879 = vmul.f32 %v833, %v850
        %v880 = vmul.f32 %v837, %v850
        %v881 = vmul.f32 %v841, %v850
        %v882 = vmul.f32 %v845, %v850
        %v883 = vadd.f32 %v686, %v851
        %v884 = vadd.f32 %v687, %v852
        %v885 = vadd.f32 %v688, %v853
        %v886 = vadd.f32 %v689, %v854
        %v887 = vadd.f32 %v690, %v855
        %v888 = vadd.f32 %v691, %v856
        %v889 = vadd.f32 %v692, %v857
        %v890 = vadd.f32 %v693, %v858
        %v891 = vadd.f32 %v694, %v859
        %v892 = vadd.f32 %v695, %v860
        %v893 = vadd.f32 %v696, %v861
        %v894 = vadd.f32 %v697, %v862
        %v895 = vadd.f32 %v698, %v863
        %v896 = vadd.f32 %v699, %v864
        %v897 = vadd.f32 %v700, %v865
        %v898 = vadd.f32 %v701, %v866
        %v899 = vadd.f32 %v702, %v867
        %v900 = vadd.f32 %v703, %v868
        %v901 = vadd.f32 %v704, %v869
        %v902 = vadd.f32 %v705, %v870
        %v903 = vadd.f32 %v706, %v871
        %v904 = vadd.f32 %v707, %v872
        %v905 = vadd.f32 %v708, %v873
        %v906 = vadd.f32 %v709, %v874
        %v907 = vadd.f32 %v710, %v875
        %v908 = vadd.f32 %v711, %v876
        %v909 = vadd.f32 %v712, %v877
        %v910 = vadd.f32 %v713, %v878
        %v911 = vadd.f32 %v714, %v879
        %v912 = vadd.f32 %v715, %v880
        %v913 = vadd.f32 %v716, %v881
        %v914 = vadd.f32 %v717, %v882
        %v915 = vld [vmem:[%s1 + $0x3] sm:$0x1]
        %916 = vset.pattern.permute.xlu0 3
        %917 = vperm.xlu0 %916, %v292
        %v918 = vpop.permute.xlu0 %917
        %920 = vset.pattern.permute.xlu0 3
        %921 = vperm.xlu0 %920, %v293
        %v922 = vpop.permute.xlu0 %921
        %924 = vset.pattern.permute.xlu0 3
        %925 = vperm.xlu0 %924, %v294
        %v926 = vpop.permute.xlu0 %925
        %928 = vset.pattern.permute.xlu0 3
        %929 = vperm.xlu0 %928, %v295
        %v930 = vpop.permute.xlu0 %929
        %932 = vset.pattern.permute.xlu0 3
        %933 = vperm.xlu0 %932, %v296
        %v934 = vpop.permute.xlu0 %933
        %936 = vset.pattern.permute.xlu0 3
        %937 = vperm.xlu0 %936, %v297
        %v938 = vpop.permute.xlu0 %937
        %940 = vset.pattern.permute.xlu0 3
        %941 = vperm.xlu0 %940, %v298
        %v942 = vpop.permute.xlu0 %941
        %944 = vset.pattern.permute.xlu0 3
        %945 = vperm.xlu0 %944, %v299
        %v946 = vpop.permute.xlu0 %945
        %948 = vset.pattern.permute.xlu0 3
        %949 = vperm.xlu0 %948, %v300
        %v950 = vpop.permute.xlu0 %949
        %952 = vset.pattern.permute.xlu0 3
        %953 = vperm.xlu0 %952, %v301
        %v954 = vpop.permute.xlu0 %953
        %956 = vset.pattern.permute.xlu0 3
        %957 = vperm.xlu0 %956, %v302
        %v958 = vpop.permute.xlu0 %957
        %960 = vset.pattern.permute.xlu0 3
        %961 = vperm.xlu0 %960, %v303
        %v962 = vpop.permute.xlu0 %961
        %964 = vset.pattern.permute.xlu0 3
        %965 = vperm.xlu0 %964, %v304
        %v966 = vpop.permute.xlu0 %965
        %968 = vset.pattern.permute.xlu0 3
        %969 = vperm.xlu0 %968, %v305
        %v970 = vpop.permute.xlu0 %969
        %972 = vset.pattern.permute.xlu0 3
        %973 = vperm.xlu0 %972, %v306
        %v974 = vpop.permute.xlu0 %973
        %976 = vset.pattern.permute.xlu0 3
        %977 = vperm.xlu0 %976, %v307
        %v978 = vpop.permute.xlu0 %977
        %980 = vset.pattern.permute.xlu0 3
        %981 = vperm.xlu0 %980, %v308
        %v982 = vpop.permute.xlu0 %981
        %984 = vset.pattern.permute.xlu0 3
        %985 = vperm.xlu0 %984, %v309
        %v986 = vpop.permute.xlu0 %985
        %988 = vset.pattern.permute.xlu0 3
        %989 = vperm.xlu0 %988, %v310
        %v990 = vpop.permute.xlu0 %989
        %992 = vset.pattern.permute.xlu0 3
        %993 = vperm.xlu0 %992, %v311
        %v994 = vpop.permute.xlu0 %993
        %996 = vset.pattern.permute.xlu0 3
        %997 = vperm.xlu0 %996, %v312
        %v998 = vpop.permute.xlu0 %997
        %1000 = vset.pattern.permute.xlu0 3
        %1001 = vperm.xlu0 %1000, %v313
        %v1002 = vpop.permute.xlu0 %1001
        %1004 = vset.pattern.permute.xlu0 3
        %1005 = vperm.xlu0 %1004, %v314
        %v1006 = vpop.permute.xlu0 %1005
        %1008 = vset.pattern.permute.xlu0 3
        %1009 = vperm.xlu0 %1008, %v315
        %v1010 = vpop.permute.xlu0 %1009
        %1012 = vset.pattern.permute.xlu0 3
        %1013 = vperm.xlu0 %1012, %v316
        %v1014 = vpop.permute.xlu0 %1013
        %1016 = vset.pattern.permute.xlu0 3
        %1017 = vperm.xlu0 %1016, %v317
        %v1018 = vpop.permute.xlu0 %1017
        %1020 = vset.pattern.permute.xlu0 3
        %1021 = vperm.xlu0 %1020, %v318
        %v1022 = vpop.permute.xlu0 %1021
        %1024 = vset.pattern.permute.xlu0 3
        %1025 = vperm.xlu0 %1024, %v319
        %v1026 = vpop.permute.xlu0 %1025
        %1028 = vset.pattern.permute.xlu0 3
        %1029 = vperm.xlu0 %1028, %v320
        %v1030 = vpop.permute.xlu0 %1029
        %1032 = vset.pattern.permute.xlu0 3
        %1033 = vperm.xlu0 %1032, %v321
        %v1034 = vpop.permute.xlu0 %1033
        %1036 = vset.pattern.permute.xlu0 3
        %1037 = vperm.xlu0 %1036, %v322
        %v1038 = vpop.permute.xlu0 %1037
        %1040 = vset.pattern.permute.xlu0 3
        %1041 = vperm.xlu0 %1040, %v323
        %v1042 = vpop.permute.xlu0 %1041
        %v1044 = vlaneseq
        %v1045 = vshrl.u32 %v1044, 7
        %v1046 = vsub.s32 0, %v1045
        %v1047 = vrot.slane %v915, %v1046
        %v1048 = vmul.f32 %v918, %v1047
        %v1049 = vmul.f32 %v922, %v1047
        %v1050 = vmul.f32 %v926, %v1047
        %v1051 = vmul.f32 %v930, %v1047
        %v1052 = vmul.f32 %v934, %v1047
        %v1053 = vmul.f32 %v938, %v1047
        %v1054 = vmul.f32 %v942, %v1047
        %v1055 = vmul.f32 %v946, %v1047
        %v1056 = vmul.f32 %v950, %v1047
        %v1057 = vmul.f32 %v954, %v1047
        %v1058 = vmul.f32 %v958, %v1047
        %v1059 = vmul.f32 %v962, %v1047
        %v1060 = vmul.f32 %v966, %v1047
        %v1061 = vmul.f32 %v970, %v1047
        %v1062 = vmul.f32 %v974, %v1047
        %v1063 = vmul.f32 %v978, %v1047
        %v1064 = vmul.f32 %v982, %v1047
        %v1065 = vmul.f32 %v986, %v1047
        %v1066 = vmul.f32 %v990, %v1047
        %v1067 = vmul.f32 %v994, %v1047
        %v1068 = vmul.f32 %v998, %v1047
        %v1069 = vmul.f32 %v1002, %v1047
        %v1070 = vmul.f32 %v1006, %v1047
        %v1071 = vmul.f32 %v1010, %v1047
        %v1072 = vmul.f32 %v1014, %v1047
        %v1073 = vmul.f32 %v1018, %v1047
        %v1074 = vmul.f32 %v1022, %v1047
        %v1075 = vmul.f32 %v1026, %v1047
        %v1076 = vmul.f32 %v1030, %v1047
        %v1077 = vmul.f32 %v1034, %v1047
        %v1078 = vmul.f32 %v1038, %v1047
        %v1079 = vmul.f32 %v1042, %v1047
        %v1080 = vadd.f32 %v883, %v1048
        %v1081 = vadd.f32 %v884, %v1049
        %v1082 = vadd.f32 %v885, %v1050
        %v1083 = vadd.f32 %v886, %v1051
        %v1084 = vadd.f32 %v887, %v1052
        %v1085 = vadd.f32 %v888, %v1053
        %v1086 = vadd.f32 %v889, %v1054
        %v1087 = vadd.f32 %v890, %v1055
        %v1088 = vadd.f32 %v891, %v1056
        %v1089 = vadd.f32 %v892, %v1057
        %v1090 = vadd.f32 %v893, %v1058
        %v1091 = vadd.f32 %v894, %v1059
        %v1092 = vadd.f32 %v895, %v1060
        %v1093 = vadd.f32 %v896, %v1061
        %v1094 = vadd.f32 %v897, %v1062
        %v1095 = vadd.f32 %v898, %v1063
        %v1096 = vadd.f32 %v899, %v1064
        %v1097 = vadd.f32 %v900, %v1065
        %v1098 = vadd.f32 %v901, %v1066
        %v1099 = vadd.f32 %v902, %v1067
        %v1100 = vadd.f32 %v903, %v1068
        %v1101 = vadd.f32 %v904, %v1069
        %v1102 = vadd.f32 %v905, %v1070
        %v1103 = vadd.f32 %v906, %v1071
        %v1104 = vadd.f32 %v907, %v1072
        %v1105 = vadd.f32 %v908, %v1073
        %v1106 = vadd.f32 %v909, %v1074
        %v1107 = vadd.f32 %v910, %v1075
        %v1108 = vadd.f32 %v911, %v1076
        %v1109 = vadd.f32 %v912, %v1077
        %v1110 = vadd.f32 %v913, %v1078
        %v1111 = vadd.f32 %v914, %v1079
        %v1112 = vld [vmem:[%s2] sm:$0x1]
        %v1114 = vlaneseq
        %v1115 = vshrl.u32 %v1114, 7
        %v1116 = vsub.s32 0, %v1115
        %v1117 = vrot.slane %v1112, %v1116
        %v1119 = vadd.f32 %v1080, %v1117
        %v1120 = vadd.f32 %v1081, %v1117
        %v1121 = vadd.f32 %v1082, %v1117
        %v1122 = vadd.f32 %v1083, %v1117
        %v1123 = vadd.f32 %v1084, %v1117
        %v1124 = vadd.f32 %v1085, %v1117
        %v1125 = vadd.f32 %v1086, %v1117
        %v1126 = vadd.f32 %v1087, %v1117
        %v1127 = vadd.f32 %v1088, %v1117
        %v1128 = vadd.f32 %v1089, %v1117
        %v1129 = vadd.f32 %v1090, %v1117
        %v1130 = vadd.f32 %v1091, %v1117
        %v1131 = vadd.f32 %v1092, %v1117
        %v1132 = vadd.f32 %v1093, %v1117
        %v1133 = vadd.f32 %v1094, %v1117
        %v1134 = vadd.f32 %v1095, %v1117
        %v1135 = vadd.f32 %v1096, %v1117
        %v1136 = vadd.f32 %v1097, %v1117
        %v1137 = vadd.f32 %v1098, %v1117
        %v1138 = vadd.f32 %v1099, %v1117
        %v1139 = vadd.f32 %v1100, %v1117
        %v1140 = vadd.f32 %v1101, %v1117
        %v1141 = vadd.f32 %v1102, %v1117
        %v1142 = vadd.f32 %v1103, %v1117
        %v1143 = vadd.f32 %v1104, %v1117
        %v1144 = vadd.f32 %v1105, %v1117
        %v1145 = vadd.f32 %v1106, %v1117
        %v1146 = vadd.f32 %v1107, %v1117
        %v1147 = vadd.f32 %v1108, %v1117
        %v1148 = vadd.f32 %v1109, %v1117
        %v1149 = vadd.f32 %v1110, %v1117
        %v1150 = vadd.f32 %v1111, %v1117
        %v1151 = vmax.f32 %v1119, 0.0
        %v1152 = vmax.f32 %v1120, 0.0
        %v1153 = vmax.f32 %v1121, 0.0
        %v1154 = vmax.f32 %v1122, 0.0
        %v1155 = vmax.f32 %v1123, 0.0
        %v1156 = vmax.f32 %v1124, 0.0
        %v1157 = vmax.f32 %v1125, 0.0
        %v1158 = vmax.f32 %v1126, 0.0
        %v1159 = vmax.f32 %v1127, 0.0
        %v1160 = vmax.f32 %v1128, 0.0
        %v1161 = vmax.f32 %v1129, 0.0
        %v1162 = vmax.f32 %v1130, 0.0
        %v1163 = vmax.f32 %v1131, 0.0
        %v1164 = vmax.f32 %v1132, 0.0
        %v1165 = vmax.f32 %v1133, 0.0
        %v1166 = vmax.f32 %v1134, 0.0
        %v1167 = vmax.f32 %v1135, 0.0
        %v1168 = vmax.f32 %v1136, 0.0
        %v1169 = vmax.f32 %v1137, 0.0
        %v1170 = vmax.f32 %v1138, 0.0
        %v1171 = vmax.f32 %v1139, 0.0
        %v1172 = vmax.f32 %v1140, 0.0
        %v1173 = vmax.f32 %v1141, 0.0
        %v1174 = vmax.f32 %v1142, 0.0
        %v1175 = vmax.f32 %v1143, 0.0
        %v1176 = vmax.f32 %v1144, 0.0
        %v1177 = vmax.f32 %v1145, 0.0
        %v1178 = vmax.f32 %v1146, 0.0
        %v1179 = vmax.f32 %v1147, 0.0
        %v1180 = vmax.f32 %v1148, 0.0
        %v1181 = vmax.f32 %v1149, 0.0
        %v1182 = vmax.f32 %v1150, 0.0
        %v1183 = vpack.c.bf16 %v1152, %v1151
        %v1184 = vpack.c.bf16 %v1154, %v1153
        %v1185 = vpack.c.bf16 %v1156, %v1155
        %v1186 = vpack.c.bf16 %v1158, %v1157
        %v1187 = vpack.c.bf16 %v1160, %v1159
        %v1188 = vpack.c.bf16 %v1162, %v1161
        %v1189 = vpack.c.bf16 %v1164, %v1163
        %v1190 = vpack.c.bf16 %v1166, %v1165
        %v1191 = vpack.c.bf16 %v1168, %v1167
        %v1192 = vpack.c.bf16 %v1170, %v1169
        %v1193 = vpack.c.bf16 %v1172, %v1171
        %v1194 = vpack.c.bf16 %v1174, %v1173
        %v1195 = vpack.c.bf16 %v1176, %v1175
        %v1196 = vpack.c.bf16 %v1178, %v1177
        %v1197 = vpack.c.bf16 %v1180, %v1179
        %v1198 = vpack.c.bf16 %v1182, %v1181
        %v1199 = vld [vmem:[%s3] sm:$0xf]
        %v1200 = vld [vmem:[%s3 + $0x4] sm:$0xf]
        %v1201 = vld [vmem:[%s3 + $0x8] sm:$0xf]
        %v1202 = vld [vmem:[%s3 + $0xc] sm:$0xf]
        %v1203 = vld [vmem:[%s3 + $0x10] sm:$0xf]
        %v1204 = vld [vmem:[%s3 + $0x14] sm:$0xf]
        %v1205 = vld [vmem:[%s3 + $0x18] sm:$0xf]
        %v1206 = vld [vmem:[%s3 + $0x1c] sm:$0xf]
        %v1207 = vld [vmem:[%s3 + $0x20] sm:$0xf]
        %v1208 = vld [vmem:[%s3 + $0x24] sm:$0xf]
        %v1209 = vld [vmem:[%s3 + $0x28] sm:$0xf]
        %v1210 = vld [vmem:[%s3 + $0x2c] sm:$0xf]
        %v1211 = vld [vmem:[%s3 + $0x30] sm:$0xf]
        %v1212 = vld [vmem:[%s3 + $0x34] sm:$0xf]
        %v1213 = vld [vmem:[%s3 + $0x38] sm:$0xf]
        %v1214 = vld [vmem:[%s3 + $0x3c] sm:$0xf]
        %v1215 = vld [vmem:[%s4] sm:$0x1]
        %v1217 = vlaneseq
        %v1218 = vshrl.u32 %v1217, 7
        %v1219 = vsub.s32 0, %v1218
        %v1220 = vrot.slane %v1215, %v1219
        %v1238 = vunpack.c.l.b16 %v1199
        %v1239 = vunpack.c.l.b16 %v1200
        %v1240 = vunpack.c.l.b16 %v1201
        %v1241 = vunpack.c.l.b16 %v1202
        %v1242 = vunpack.c.l.b16 %v1203
        %v1243 = vunpack.c.l.b16 %v1204
        %v1244 = vunpack.c.l.b16 %v1205
        %v1245 = vunpack.c.l.b16 %v1206
        %v1246 = vunpack.c.l.b16 %v1207
        %v1247 = vunpack.c.l.b16 %v1208
        %v1248 = vunpack.c.l.b16 %v1209
        %v1249 = vunpack.c.l.b16 %v1210
        %v1250 = vunpack.c.l.b16 %v1211
        %v1251 = vunpack.c.l.b16 %v1212
        %v1252 = vunpack.c.l.b16 %v1213
        %v1253 = vunpack.c.l.b16 %v1214
        %v1254 = vpack.c.b16 %v1239, %v1238
        %v1255 = vpack.c.b16 %v1241, %v1240
        %v1256 = vpack.c.b16 %v1243, %v1242
        %v1257 = vpack.c.b16 %v1245, %v1244
        %v1258 = vpack.c.b16 %v1247, %v1246
        %v1259 = vpack.c.b16 %v1249, %v1248
        %v1260 = vpack.c.b16 %v1251, %v1250
        %v1261 = vpack.c.b16 %v1253, %v1252
        %1270 = vmatprep.subr.bf16.mxu0 0
        %1271 = vmatpush1.bf16.msra.mxu0 %v1254
        %1272 = vmatprep.subr.bf16.mxu0 0
        %1273 = vmatpush1.bf16.msra.mxu0 %v1255
        %1274 = vmatprep.subr.bf16.mxu0 0
        %1275 = vmatpush1.bf16.msra.mxu0 %v1256
        %1276 = vmatprep.subr.bf16.mxu0 0
        %1277 = vmatpush1.bf16.msra.mxu0 %v1257
        %1278 = vmatprep.subr.bf16.mxu0 0
        %1279 = vmatpush1.bf16.msra.mxu0 %v1258
        %1280 = vmatprep.subr.bf16.mxu0 0
        %1281 = vmatpush1.bf16.msra.mxu0 %v1259
        %1282 = vmatprep.subr.bf16.mxu0 0
        %1283 = vmatpush1.bf16.msra.mxu0 %v1260
        %1284 = vmatprep.subr.bf16.mxu0 0
        %1285 = vmatpush1.bf16.msra.mxu0 %v1261
        %1286 = vmatprep.subr.bf16.mxu0 0
        %1287 = vmatpush1.bf16.msra.mxu0 0
        %1288 = vmatprep.subr.bf16.mxu0 0
        %1289 = vmatpush1.bf16.msra.mxu0 0
        %1290 = vmatprep.subr.bf16.mxu0 0
        %1291 = vmatpush1.bf16.msra.mxu0 0
        %1292 = vmatprep.subr.bf16.mxu0 0
        %1293 = vmatpush1.bf16.msra.mxu0 0
        %1294 = vmatprep.subr.bf16.mxu0 0
        %1295 = vmatpush1.bf16.msra.mxu0 0
        %1296 = vmatprep.subr.bf16.mxu0 0
        %1297 = vmatpush1.bf16.msra.mxu0 0
        %1298 = vmatprep.subr.bf16.mxu0 0
        %1299 = vmatpush1.bf16.msra.mxu0 0
        %1300 = vmatprep.subr.bf16.mxu0 0
        %1301 = vmatpush1.bf16.msra.mxu0 0
        %1302 = vmatprep.mubr.bf16.mxu0 0
        %1303 = vmatmul.mubr.bf16.gmra.mrb[0].mxu0 %v1183
        %v1304 = vpop.f32.mrb[0].mxu0
        %v1305 = vadd.f32 %v1220, %v1304
        %v1306 = vpop.f32.mrb[0].mxu0
        %v1307 = vpop.f32.mrb[0].mxu0
        %v1308 = vadd.f32 %v1220, %v1307
        %v1309 = vpop.f32.mrb[0].mxu0
        %1310 = vmatprep.mubr.bf16.mxu0 0
        %1311 = vmatmul.mubr.bf16.gmra.mrb[0].mxu0 %v1184
        %v1312 = vpop.f32.mrb[0].mxu0
        %v1313 = vadd.f32 %v1220, %v1312
        %v1314 = vpop.f32.mrb[0].mxu0
        %v1315 = vpop.f32.mrb[0].mxu0
        %v1316 = vadd.f32 %v1220, %v1315
        %v1317 = vpop.f32.mrb[0].mxu0
        %1318 = vmatprep.mubr.bf16.mxu0 0
        %1319 = vmatmul.mubr.bf16.gmra.mrb[0].mxu0 %v1185
        %v1320 = vpop.f32.mrb[0].mxu0
        %v1321 = vadd.f32 %v1220, %v1320
        %v1322 = vpop.f32.mrb[0].mxu0
        %v1323 = vpop.f32.mrb[0].mxu0
        %v1324 = vadd.f32 %v1220, %v1323
        %v1325 = vpop.f32.mrb[0].mxu0
        %1326 = vmatprep.mubr.bf16.mxu0 0
        %1327 = vmatmul.mubr.bf16.gmra.mrb[0].mxu0 %v1186
        %v1328 = vpop.f32.mrb[0].mxu0
        %v1329 = vadd.f32 %v1220, %v1328
        %v1330 = vpop.f32.mrb[0].mxu0
        %v1331 = vpop.f32.mrb[0].mxu0
        %v1332 = vadd.f32 %v1220, %v1331
        %v1333 = vpop.f32.mrb[0].mxu0
        %1334 = vmatprep.mubr.bf16.mxu0 0
        %1335 = vmatmul.mubr.bf16.gmra.mrb[0].mxu0 %v1187
        %v1336 = vpop.f32.mrb[0].mxu0
        %v1337 = vadd.f32 %v1220, %v1336
        %v1338 = vpop.f32.mrb[0].mxu0
        %v1339 = vpop.f32.mrb[0].mxu0
        %v1340 = vadd.f32 %v1220, %v1339
        %v1341 = vpop.f32.mrb[0].mxu0
        %1342 = vmatprep.mubr.bf16.mxu0 0
        %1343 = vmatmul.mubr.bf16.gmra.mrb[0].mxu0 %v1188
        %v1344 = vpop.f32.mrb[0].mxu0
        %v1345 = vadd.f32 %v1220, %v1344
        %v1346 = vpop.f32.mrb[0].mxu0
        %v1347 = vpop.f32.mrb[0].mxu0
        %v1348 = vadd.f32 %v1220, %v1347
        %v1349 = vpop.f32.mrb[0].mxu0
        %1350 = vmatprep.mubr.bf16.mxu0 0
        %1351 = vmatmul.mubr.bf16.gmra.mrb[0].mxu0 %v1189
        %v1352 = vpop.f32.mrb[0].mxu0
        %v1353 = vadd.f32 %v1220, %v1352
        %v1354 = vpop.f32.mrb[0].mxu0
        %v1355 = vpop.f32.mrb[0].mxu0
        %v1356 = vadd.f32 %v1220, %v1355
        %v1357 = vpop.f32.mrb[0].mxu0
        %1358 = vmatprep.mubr.bf16.mxu0 0
        %1359 = vmatmul.mubr.bf16.gmra.mrb[0].mxu0 %v1190
        %v1360 = vpop.f32.mrb[0].mxu0
        %v1361 = vadd.f32 %v1220, %v1360
        %v1362 = vpop.f32.mrb[0].mxu0
        %v1363 = vpop.f32.mrb[0].mxu0
        %v1364 = vadd.f32 %v1220, %v1363
        %v1365 = vpop.f32.mrb[0].mxu0
        %1366 = vmatprep.mubr.bf16.mxu0 0
        %1367 = vmatmul.mubr.bf16.gmra.mrb[0].mxu0 %v1191
        %v1368 = vpop.f32.mrb[0].mxu0
        %v1369 = vadd.f32 %v1220, %v1368
        %v1370 = vpop.f32.mrb[0].mxu0
        %v1371 = vpop.f32.mrb[0].mxu0
        %v1372 = vadd.f32 %v1220, %v1371
        %v1373 = vpop.f32.mrb[0].mxu0
        %1374 = vmatprep.mubr.bf16.mxu0 0
        %1375 = vmatmul.mubr.bf16.gmra.mrb[0].mxu0 %v1192
        %v1376 = vpop.f32.mrb[0].mxu0
        %v1377 = vadd.f32 %v1220, %v1376
        %v1378 = vpop.f32.mrb[0].mxu0
        %v1379 = vpop.f32.mrb[0].mxu0
        %v1380 = vadd.f32 %v1220, %v1379
        %v1381 = vpop.f32.mrb[0].mxu0
        %1382 = vmatprep.mubr.bf16.mxu0 0
        %1383 = vmatmul.mubr.bf16.gmra.mrb[0].mxu0 %v1193
        %v1384 = vpop.f32.mrb[0].mxu0
        %v1385 = vadd.f32 %v1220, %v1384
        %v1386 = vpop.f32.mrb[0].mxu0
        %v1387 = vpop.f32.mrb[0].mxu0
        %v1388 = vadd.f32 %v1220, %v1387
        %v1389 = vpop.f32.mrb[0].mxu0
        %1390 = vmatprep.mubr.bf16.mxu0 0
        %1391 = vmatmul.mubr.bf16.gmra.mrb[0].mxu0 %v1194
        %v1392 = vpop.f32.mrb[0].mxu0
        %v1393 = vadd.f32 %v1220, %v1392
        %v1394 = vpop.f32.mrb[0].mxu0
        %v1395 = vpop.f32.mrb[0].mxu0
        %v1396 = vadd.f32 %v1220, %v1395
        %v1397 = vpop.f32.mrb[0].mxu0
        %1398 = vmatprep.mubr.bf16.mxu0 0
        %1399 = vmatmul.mubr.bf16.gmra.mrb[0].mxu0 %v1195
        %v1400 = vpop.f32.mrb[0].mxu0
        %v1401 = vadd.f32 %v1220, %v1400
        %v1402 = vpop.f32.mrb[0].mxu0
        %v1403 = vpop.f32.mrb[0].mxu0
        %v1404 = vadd.f32 %v1220, %v1403
        %v1405 = vpop.f32.mrb[0].mxu0
        %1406 = vmatprep.mubr.bf16.mxu0 0
        %1407 = vmatmul.mubr.bf16.gmra.mrb[0].mxu0 %v1196
        %v1408 = vpop.f32.mrb[0].mxu0
        %v1409 = vadd.f32 %v1220, %v1408
        %v1410 = vpop.f32.mrb[0].mxu0
        %v1411 = vpop.f32.mrb[0].mxu0
        %v1412 = vadd.f32 %v1220, %v1411
        %v1413 = vpop.f32.mrb[0].mxu0
        %1414 = vmatprep.mubr.bf16.mxu0 0
        %1415 = vmatmul.mubr.bf16.gmra.mrb[0].mxu0 %v1197
        %v1416 = vpop.f32.mrb[0].mxu0
        %v1417 = vadd.f32 %v1220, %v1416
        %v1418 = vpop.f32.mrb[0].mxu0
        %v1419 = vpop.f32.mrb[0].mxu0
        %v1420 = vadd.f32 %v1220, %v1419
        %v1421 = vpop.f32.mrb[0].mxu0
        %1422 = vmatprep.mubr.bf16.mxu0 0
        %1423 = vmatmul.mubr.bf16.gmra.mrb[0].mxu0 %v1198
        %v1424 = vpop.f32.mrb[0].mxu0
        %v1425 = vadd.f32 %v1220, %v1424
        %v1426 = vpop.f32.mrb[0].mxu0
        %v1427 = vpop.f32.mrb[0].mxu0
        %v1428 = vadd.f32 %v1220, %v1427
        %v1429 = vpop.f32.mrb[0].mxu0
        %1430 = vdwg.mxu0
        %1431 = vst [vmem:[%s273] sm:$0xff] %v1305
        %1432 = vst [vmem:[%s273 + $0x8] sm:$0xff] %v1308
        %1433 = vst [vmem:[%s273 + $0x10] sm:$0xff] %v1313
        %1434 = vst [vmem:[%s273 + $0x18] sm:$0xff] %v1316
        %1435 = vst [vmem:[%s273 + $0x20] sm:$0xff] %v1321
        %1436 = vst [vmem:[%s273 + $0x28] sm:$0xff] %v1324
        %1437 = vst [vmem:[%s273 + $0x30] sm:$0xff] %v1329
        %1438 = vst [vmem:[%s273 + $0x38] sm:$0xff] %v1332
        %1439 = vst [vmem:[%s273 + $0x40] sm:$0xff] %v1337
        %1440 = vst [vmem:[%s273 + $0x48] sm:$0xff] %v1340
        %1441 = vst [vmem:[%s273 + $0x50] sm:$0xff] %v1345
        %1442 = vst [vmem:[%s273 + $0x58] sm:$0xff] %v1348
        %1443 = vst [vmem:[%s273 + $0x60] sm:$0xff] %v1353
        %1444 = vst [vmem:[%s273 + $0x68] sm:$0xff] %v1356
        %1445 = vst [vmem:[%s273 + $0x70] sm:$0xff] %v1361
        %1446 = vst [vmem:[%s273 + $0x78] sm:$0xff] %v1364
        %1447 = vst [vmem:[%s273 + $0x80] sm:$0xff] %v1369
        %1448 = vst [vmem:[%s273 + $0x88] sm:$0xff] %v1372
        %1449 = vst [vmem:[%s273 + $0x90] sm:$0xff] %v1377
        %1450 = vst [vmem:[%s273 + $0x98] sm:$0xff] %v1380
        %1451 = vst [vmem:[%s273 + $0xa0] sm:$0xff] %v1385
        %1452 = vst [vmem:[%s273 + $0xa8] sm:$0xff] %v1388
        %1453 = vst [vmem:[%s273 + $0xb0] sm:$0xff] %v1393
        %1454 = vst [vmem:[%s273 + $0xb8] sm:$0xff] %v1396
        %1455 = vst [vmem:[%s273 + $0xc0] sm:$0xff] %v1401
        %1456 = vst [vmem:[%s273 + $0xc8] sm:$0xff] %v1404
        %1457 = vst [vmem:[%s273 + $0xd0] sm:$0xff] %v1409
        %1458 = vst [vmem:[%s273 + $0xd8] sm:$0xff] %v1412
        %1459 = vst [vmem:[%s273 + $0xe0] sm:$0xff] %v1417
        %1460 = vst [vmem:[%s273 + $0xe8] sm:$0xff] %v1420
        %1461 = vst [vmem:[%s273 + $0xf0] sm:$0xff] %v1425
        %1462 = vst [vmem:[%s273 + $0xf8] sm:$0xff] %v1428
        %p1463 = scmp.eq.s32.totalorder %s29, 0
        // Predicated region
        $region41: #{tpu_custom_call.1} parent=39 // pred_check
          %p1464 = pneg %p1463
        $region42: #{tpu_custom_call.1} parent=39 // pred_check_branch
          %1466 = sbr.rel (%p1464) target = $region44
        $region43: #{tpu_custom_call.1} parent=39 // pred_region
          %1467 = vst [vmem:[%s279] sm:$0x1] 0.0
        $region44: #{tpu_custom_call.1} parent=39 // pred_fallthru
          _
        %v1468 = vld [vmem:[%s279] sm:$0x1]
        %v1469 = vadd.f32 %v1151, %v1152
        %v1470 = vadd.f32 %v1469, %v1153
        %v1471 = vadd.f32 %v1470, %v1154
        %v1472 = vadd.f32 %v1471, %v1155
        %v1473 = vadd.f32 %v1472, %v1156
        %v1474 = vadd.f32 %v1473, %v1157
        %v1475 = vadd.f32 %v1474, %v1158
        %v1476 = vadd.f32 %v1475, %v1159
        %v1477 = vadd.f32 %v1476, %v1160
        %v1478 = vadd.f32 %v1477, %v1161
        %v1479 = vadd.f32 %v1478, %v1162
        %v1480 = vadd.f32 %v1479, %v1163
        %v1481 = vadd.f32 %v1480, %v1164
        %v1482 = vadd.f32 %v1481, %v1165
        %v1483 = vadd.f32 %v1482, %v1166
        %v1484 = vadd.f32 %v1483, %v1167
        %v1485 = vadd.f32 %v1484, %v1168
        %v1486 = vadd.f32 %v1485, %v1169
        %v1487 = vadd.f32 %v1486, %v1170
        %v1488 = vadd.f32 %v1487, %v1171
        %v1489 = vadd.f32 %v1488, %v1172
        %v1490 = vadd.f32 %v1489, %v1173
        %v1491 = vadd.f32 %v1490, %v1174
        %v1492 = vadd.f32 %v1491, %v1175
        %v1493 = vadd.f32 %v1492, %v1176
        %v1494 = vadd.f32 %v1493, %v1177
        %v1495 = vadd.f32 %v1494, %v1178
        %v1496 = vadd.f32 %v1495, %v1179
        %v1497 = vadd.f32 %v1496, %v1180
        %v1498 = vadd.f32 %v1497, %v1181
        %v1499 = vadd.f32 %v1498, %v1182
        %v1500 = vrot.slane %v1499, 4
        %v1501 = vadd.f32 %v1499, %v1500
        %v1502 = vrot.slane %v1501, 2
        %v1503 = vadd.f32 %v1501, %v1502
        %v1504 = vrot.slane %v1503, 1
        %v1505 = vadd.f32 %v1503, %v1504
        %v1506 = vadd.f32 %v1468, %v1505
        %1507 = vst [vmem:[%s279] sm:$0x1] %v1506
        %s1508 = sand.u32 %s158, 1
        %s1509 = scalar_lea.sflag [#allocation3], %s1508
        %s1510 = sand.u32 %s158, 1
        %s1511 = smul.addr %s1510, 256
        %s1512 = scalar_lea.vmem [#allocation2], %s1511
        %s1513 = sand.u32 %s184, 1
        %s1514 = scalar_lea.sflag [#allocation5], %s1513
        %s1515 = sand.u32 %s184, 1
        %s1516 = scalar_lea.vmem [#allocation4], %s1515
        // Predicated region
        $region45: #{tpu_custom_call.1} parent=39 // pred_check
          %p1517 = pneg %p168
        $region46: #{tpu_custom_call.1} parent=39 // pred_check_branch
          %1519 = sbr.rel (%p1517) target = $region48
        $region47: #{tpu_custom_call.1} parent=39 // pred_region
          %s1520 = smul.u32 32, %s29
          %s1522 = ssub.s32 4096, 4096
          %1523 = vsyncadd %s1509, %s1522
          %s1524 = smul.addr %s28, 32
          %s1525 = sadd.s32 %s1520, %s1524
          %s1526 = smul.addr %s1525, 128
          %s1527 = scalar_lea.hbm %s5, %s1526
          %s1528 = sshll.u32 %s1512, 4
          %s1529 = int_to_ptr.vmem [resolvable:$true] %s1528
          %1534 = dma.vmem_to_hbm [thread:$0]  %s1529, 4096, %s1527, %s1509, 128, 128, 8
        $region48: #{tpu_custom_call.1} parent=39 // pred_fallthru
          _
        // Predicated region
        $region49: #{tpu_custom_call.1} parent=39 // pred_check
          %p1535 = pneg %p194
        $region50: #{tpu_custom_call.1} parent=39 // pred_check_branch
          %1537 = sbr.rel (%p1535) target = $region52
        $region51: #{tpu_custom_call.1} parent=39 // pred_region
          %s1539 = ssub.s32 16, 16
          %1540 = vsyncadd %s1514, %s1539
          %s1541 = smul.addr %s28, 16
          %s1542 = scalar_lea.hbm %s6, %s1541
          %s1544 = sshll.u32 %s1516, 4
          %s1545 = int_to_ptr.vmem [resolvable:$true] %s1544
          %1547 = dma.vmem_to_hbm [thread:$0]  %s1545, 16, %s1542, %s1514
        $region52: #{tpu_custom_call.1} parent=39 // pred_fallthru
          _
      $region40: #{tpu_custom_call.1} parent=5 // pred_fallthru
        _
      %p1548 = scmp.le.s32.totalorder 2, %s19
      // Predicated region
      $region53: #{tpu_custom_call.1} parent=5 // pred_check
        %p1549 = pneg %p1548
      $region54: #{tpu_custom_call.1} parent=5 // pred_check_branch
        %1551 = sbr.rel (%p1549) target = $region56
      $region55: #{tpu_custom_call.1} parent=5 // pred_region
        %s1552 = ssub.s32 %s19, 2
        // Predicated region
        $region57: #{tpu_custom_call.1} parent=55 // pred_check
          %p1553 = pneg %p174
        $region58: #{tpu_custom_call.1} parent=55 // pred_check_branch
          %1555 = sbr.rel (%p1553) target = $region60
        $region59: #{tpu_custom_call.1} parent=55 // pred_region
          %s1556 = sand.u32 %s159, 1
          %s1557 = scalar_lea.sflag [#allocation3], %s1556
          %s1558 = sand.u32 %s159, 1
          %s1559 = smul.addr %s1558, 256
          %s1560 = scalar_lea.vmem [#allocation2], %s1559
          %1561 = dma.done %s1557, 4096
        $region60: #{tpu_custom_call.1} parent=55 // pred_fallthru
          _
        // Predicated region
        $region61: #{tpu_custom_call.1} parent=55 // pred_check
          %p1562 = pneg %p200
        $region62: #{tpu_custom_call.1} parent=55 // pred_check_branch
          %1564 = sbr.rel (%p1562) target = $region64
        $region63: #{tpu_custom_call.1} parent=55 // pred_region
          %s1565 = sand.u32 %s185, 1
          %s1566 = scalar_lea.sflag [#allocation5], %s1565
          %s1567 = sand.u32 %s185, 1
          %s1568 = scalar_lea.vmem [#allocation4], %s1567
          %1569 = dma.done %s1566, 16
        $region64: #{tpu_custom_call.1} parent=55 // pred_fallthru
          _
      $region56: #{tpu_custom_call.1} parent=5 // pred_fallthru
        _
    $region6: #{tpu_custom_call.1} parent=1 // loop_footer
      %s23 = sadd.s32 1, %s19
    $region7: #{tpu_custom_call.1} parent=1 // loop_footer_branch
      %18 = sbr.rel target = $region3
    $region8: #{tpu_custom_call.1} parent=1 // loop_exit
      _
    %1570 = vsyncpa [#allocation3], 1
    %s1571 = scalar_lea.sflag [#allocation3], 1
    %1572 = vsyncpa %s1571, 1
    %1573 = vsyncpa [#allocation5], 1
    %s1574 = scalar_lea.sflag [#allocation5], 1
    %1575 = vsyncpa %s1574, 1

</llo_original>
